<compile_context>
chip_gen: v5e
topology: v5e:2x2
jax: 0.10.0
libtpu: 0.0.40
codegen_flags: <defaults>
</compile_context>

<pallas_src>
import math
import jax
import jax.numpy as jnp
from jax.experimental import pallas as pl
from jax.experimental.pallas import tpu as pltpu

# ----------------------------- small config ---------------------------------
HIDDEN      = 32            # stand-in for transformer hidden size (768 in bert-base)
NUM_HEADS   = 4
HEAD_DIM    = HIDDEN // NUM_HEADS
FFN         = 4 * HIDDEN
SEQ         = 8
VOCAB       = 100
VOCAB_PAD   = 128           # word table padded to 128 rows (K-dim aligned one-hot gather)
EMB_DIM     = 16            # entity embedding_dim
NUM_EMB     = 10            # entity num_embeddings
NUM_EMB_PAD = 16
NUM_FEAT    = HIDDEN + EMB_DIM   # Regressor2 input features
H1, H2      = 512, 256      # Regressor2 hidden sizes (reference values)
BN_EPS      = 1e-5
LN_EPS      = 1e-12
BATCH       = 8
OUT_PAD     = 128           # lane-dense padded width of the regression head
VEC_W       = max(2 * HIDDEN, FFN)   # width of the packed encoder vector table (=128)
ENC_ROWS    = 12


# --------------------- Pallas kernel: fully fused forward --------------------
def fused_kernel(ids_ref, cls_ref, tid_ref, mask_ref,
                 wemb_ref, pemb_ref, eemb_ref,
                 wq_ref, wkv_ref, wo_ref, wf1_ref, wf2_ref, evec_ref,
                 w1c_ref, w1e_ref, w2_ref, w3_ref, rvec_ref,
                 o_ref):
    f32, bf16 = jnp.float32, jnp.bfloat16
    bs = ids_ref.shape[0]                 # B*S
    b, s = mask_ref.shape                 # B, S
    vpad = wemb_ref.shape[0]
    nemb = eemb_ref.shape[0]

    # packed encoder bias / LayerNorm / token-type vectors: [12, 128]
    evec = evec_ref[...]
    bq   = evec[0:1,  :HIDDEN]
    bkv  = evec[1:2,  :2 * HIDDEN]
    bo   = evec[2:3,  :HIDDEN]
    bf1  = evec[3:4,  :FFN]
    bf2  = evec[4:5,  :HIDDEN]
    ln1g = evec[5:6,  :HIDDEN]
    ln1b = evec[6:7,  :HIDDEN]
    ln2g = evec[7:8,  :HIDDEN]
    ln2b = evec[8:9,  :HIDDEN]
    embg = evec[9:10, :HIDDEN]
    embb = evec[10:11, :HIDDEN]
    tok0 = evec[11:12, :HIDDEN]

    def _ln(y, g, beta):
        mu = jnp.mean(y, axis=-1, keepdims=True)
        var = jnp.mean(jnp.square(y - mu), axis=-1, keepdims=True)
        return (y - mu) * jax.lax.rsqrt(var + LN_EPS) * g + beta

    # ---- in-kernel BERT-style embeddings (token gather via one-hot matmul) ----
    wemb = wemb_ref[...]                                               # [VOCAB_PAD, H]
    pemb = pemb_ref[...]                                               # [S, H]
    oh_full = (jax.lax.broadcasted_iota(jnp.int32, (bs, vpad), 1)
               == ids_ref[...]).astype(f32)                            # [B*S, VOCAB_PAD]
    word = jnp.dot(oh_full, wemb, preferred_element_type=f32)          # [B*S, H]
    # TODO(synk): token_type_ids hard-coded to 0 (consistent with the stand-in encoder).
    emb3 = word.reshape(b, s, HIDDEN) + pemb[None, :, :] + tok0
    x_full = _ln(emb3, embg, embb).reshape(bs, HIDDEN)                 # [B*S, H] f32

    # CLS token embedded separately (avoids strided CLS row slice of the slab)
    oh_cls = (jax.lax.broadcasted_iota(jnp.int32, (b, vpad), 1)
              == cls_ref[...]).astype(f32)                             # [B, VOCAB_PAD]
    word_cls = jnp.dot(oh_cls, wemb, preferred_element_type=f32)       # [B, H]
    x_cls = _ln(word_cls + pemb[0:1, :] + tok0, embg, embb)            # [B, H] f32

    # ---- attention: K/V over full sequence, Q only over CLS rows ----
    kvh = jnp.dot(x_full.astype(bf16), wkv_ref[...],
                  preferred_element_type=f32) + bkv                    # [B*S, 2H]
    k3 = kvh[:, :HIDDEN].astype(bf16).reshape(b, s, HIDDEN)
    v3 = kvh[:, HIDDEN:].astype(bf16).reshape(b, s, HIDDEN)
    q = jnp.dot(x_cls.astype(bf16), wq_ref[...],
                preferred_element_type=f32) + bq                       # [B, H]
    q3 = q.astype(bf16).reshape(b, 1, HIDDEN)

    neg = (1 - mask_ref[...]).astype(f32) * (-1e9)                     # [B, S] key mask
    neg = neg[:, None, :]                                              # [B, 1, S]
    scale = 1.0 / math.sqrt(HEAD_DIM)

    ctx_heads = []
    for h in range(NUM_HEADS):            # static unroll; each einsum batched over b only
        sl = slice(h * HEAD_DIM, (h + 1) * HEAD_DIM)
        sc = jnp.einsum('bqd,bkd->bqk', q3[:, :, sl], k3[:, :, sl],
                        preferred_element_type=f32) * scale            # [B, 1, S]
        sc = sc + neg
        sc = sc - jnp.max(sc, axis=-1, keepdims=True)
        p = jnp.exp(sc)
        p = p * pl.reciprocal(jnp.sum(p, axis=-1, keepdims=True), approx=True)
        ctx_heads.append(jnp.einsum('bqk,bkd->bqd', p.astype(bf16), v3[:, :, sl],
                                    preferred_element_type=f32))       # [B, 1, HD]
    ctx = jnp.concatenate(ctx_heads, axis=-1).reshape(b, HIDDEN)
    attn = jnp.dot(ctx.astype(bf16), wo_ref[...],
                   preferred_element_type=f32) + bo                    # [B, H]

    h1 = _ln(x_cls + attn, ln1g, ln1b)
    ff = jnp.dot(h1.astype(bf16), wf1_ref[...],
                 preferred_element_type=f32) + bf1
    # TODO(synk): HF bert-base uses exact erf-based GELU; tanh approximation used here.
    ff = jax.nn.gelu(ff, approximate=True)
    ff = jnp.dot(ff.astype(bf16), wf2_ref[...],
                 preferred_element_type=f32) + bf2
    hidden_cls = _ln(h1 + ff, ln2g, ln2b)                              # [B, H]

    # ---- entity embedding gather + Regressor2 (BN folded, dropout = id) ----
    oh_e = (jax.lax.broadcasted_iota(jnp.int32, (b, nemb), 1)
            == tid_ref[...]).astype(f32)                               # [B, NUM_EMB_PAD]
    ent = jnp.dot(oh_e, eemb_ref[...], preferred_element_type=f32)     # [B, EMB_DIM]

    rvec = rvec_ref[...]
    b1r = rvec[0:1, :H1]
    b2r = rvec[1:2, :H2]
    b3r = rvec[2:3, :OUT_PAD]

    # cat([cls, ent]) @ W1  ==  cls @ W1[:H] + ent @ W1[H:]
    r = (jnp.dot(hidden_cls.astype(bf16), w1c_ref[...], preferred_element_type=f32)
         + jnp.dot(ent.astype(bf16), w1e_ref[...], preferred_element_type=f32)
         + b1r)
    r = jnp.maximum(r, 0.0)
    r = jnp.dot(r.astype(bf16), w2_ref[...], preferred_element_type=f32) + b2r
    r = jnp.maximum(r, 0.0)
    o_ref[...] = jnp.dot(r.astype(bf16), w3_ref[...],
                         preferred_element_type=f32) + b3r             # lane-dense [B, 128]


# ------------------------------ wrapper / specs -------------------------------
def _fs(*shape):
    n = len(shape)
    return pl.BlockSpec(shape, lambda i, _n=n: (0,) * _n)


def transformer_entity_regressor(pp, input_ids, attention_mask, type_id):
    b, s = input_ids.shape
    ids_flat = input_ids.reshape(b * s, 1).astype(jnp.int32)
    cls_ids = input_ids[:, 0:1].astype(jnp.int32)
    tid = type_id.reshape(b, 1).astype(jnp.int32)
    mask = attention_mask.astype(jnp.int32)

    in_specs = [
        _fs(b * s, 1),                 # flattened token ids (int32)
        _fs(b, 1),                     # CLS token ids
        _fs(b, 1),                     # entity type ids
        _fs(b, s),                     # attention mask (int32)
        _fs(VOCAB_PAD, HIDDEN),        # word embedding table (f32, zero-padded rows)
        _fs(s, HIDDEN),                # position embedding table
        _fs(NUM_EMB_PAD, EMB_DIM),     # entity embedding table
        _fs(HIDDEN, HIDDEN),           # wq   (bf16)
        _fs(HIDDEN, 2 * HIDDEN),       # wkv  (bf16, fused K/V)
        _fs(HIDDEN, HIDDEN),           # wo   (bf16)
        _fs(HIDDEN, FFN),              # wf1  (bf16)
        _fs(FFN, HIDDEN),              # wf2  (bf16)
        _fs(ENC_ROWS, VEC_W),          # packed encoder biases / LN / token-type (f32)
        _fs(HIDDEN, H1),               # w1 (cls part, BN1-folded, bf16)
        _fs(EMB_DIM, H1),              # w1 (entity part, BN1-folded, bf16)
        _fs(H1, H2),                   # w2 (BN2-folded, bf16)
        _fs(H2, OUT_PAD),              # w3 padded to 128 lanes (bf16)
        _fs(3, H1),                    # packed regressor biases (f32)
    ]
    out = pl.pallas_call(
        fused_kernel,
        out_shape=jax.ShapeDtypeStruct((b, OUT_PAD), jnp.float32),
        grid=(1,),
        in_specs=in_specs,
        out_specs=_fs(b, OUT_PAD),
        compiler_params=pltpu.CompilerParams(dimension_semantics=("arbitrary",)),
    )(ids_flat, cls_ids, tid, mask,
      pp["word_emb"], pp["pos_emb"], pp["entity_emb"],
      pp["wq"], pp["wkv"], pp["wo"], pp["wf1"], pp["wf2"], pp["enc_vecs"],
      pp["w1c"], pp["w1e"], pp["w2"], pp["w3"], pp["reg_vecs"])
    return out[:, :1]


# ------------------------------ params ---------------------------------------
def init_params(key):
    ks = list(jax.random.split(key, 32))
    nrm = lambda k, shp, s=0.02: (s * jax.random.normal(k, shp)).astype(jnp.float32)
    return {
        # stand-in transformer
        "word_emb": nrm(ks[0], (VOCAB, HIDDEN)),
        "pos_emb":  nrm(ks[1], (SEQ, HIDDEN)),
        "tok_emb":  nrm(ks[2], (2, HIDDEN)),
        "emb_ln_g": jnp.ones((1, HIDDEN), jnp.float32),
        "emb_ln_b": jnp.zeros((1, HIDDEN), jnp.float32),
        "wq": nrm(ks[3], (HIDDEN, HIDDEN)), "bq": jnp.zeros((1, HIDDEN), jnp.float32),
        "wk": nrm(ks[4], (HIDDEN, HIDDEN)), "bk": jnp.zeros((1, HIDDEN), jnp.float32),
        "wv": nrm(ks[5], (HIDDEN, HIDDEN)), "bv": jnp.zeros((1, HIDDEN), jnp.float32),
        "wo": nrm(ks[6], (HIDDEN, HIDDEN)), "bo": jnp.zeros((1, HIDDEN), jnp.float32),
        "ln1_g": jnp.ones((1, HIDDEN), jnp.float32), "ln1_b": jnp.zeros((1, HIDDEN), jnp.float32),
        "wf1": nrm(ks[7], (HIDDEN, FFN)), "bf1": jnp.zeros((1, FFN), jnp.float32),
        "wf2": nrm(ks[8], (FFN, HIDDEN)), "bf2": jnp.zeros((1, HIDDEN), jnp.float32),
        "ln2_g": jnp.ones((1, HIDDEN), jnp.float32), "ln2_b": jnp.zeros((1, HIDDEN), jnp.float32),
        # entity embedding
        "entity_emb": nrm(ks[9], (NUM_EMB, EMB_DIM), 1.0),
        # Regressor2
        "w1": nrm(ks[10], (NUM_FEAT, H1)), "b1": nrm(ks[11], (1, H1)),
        "bn1_g": jnp.ones((1, H1), jnp.float32), "bn1_b": jnp.zeros((1, H1), jnp.float32),
        "bn1_m": jnp.zeros((1, H1), jnp.float32), "bn1_v": jnp.ones((1, H1), jnp.float32),
        "w2": nrm(ks[12], (H1, H2)), "b2": nrm(ks[13], (1, H2)),
        "bn2_g": jnp.ones((1, H2), jnp.float32), "bn2_b": jnp.zeros((1, H2), jnp.float32),
        "bn2_m": jnp.zeros((1, H2), jnp.float32), "bn2_v": jnp.ones((1, H2), jnp.float32),
        "w3": nrm(ks[14], (H2, 1)), "b3": nrm(ks[15], (1, 1)),
    }


def pack_params(p):
    """Fuse K/V, pack small vectors, fold eval BatchNorm, pad tables, bf16 matmul weights."""
    bf16 = jnp.bfloat16
    pad = lambda v, n: jnp.pad(v, ((0, 0), (0, n - v.shape[1])))

    wkv = jnp.concatenate([p["wk"], p["wv"]], axis=1)                   # [H, 2H]
    bkv = jnp.concatenate([p["bk"], p["bv"]], axis=1)                   # [1, 2H]
    enc_rows = [p["bq"], bkv, p["bo"], p["bf1"], p["bf2"],
                p["ln1_g"], p["ln1_b"], p["ln2_g"], p["ln2_b"],
                p["emb_ln_g"], p["emb_ln_b"], p["tok_emb"][0:1]]
    enc_vecs = jnp.concatenate([pad(v, VEC_W) for v in enc_rows],
                               axis=0).astype(jnp.float32)              # [12, 128]

    # fold eval-mode BatchNorm into the linears:  BN(Wx+b) = x(W*s) + (b*s + beta - m*s)
    s1 = p["bn1_g"] / jnp.sqrt(p["bn1_v"] + BN_EPS)
    w1 = p["w1"] * s1
    b1 = p["b1"] * s1 + p["bn1_b"] - p["bn1_m"] * s1
    s2 = p["bn2_g"] / jnp.sqrt(p["bn2_v"] + BN_EPS)
    w2 = p["w2"] * s2
    b2 = p["b2"] * s2 + p["bn2_b"] - p["bn2_m"] * s2

    w3p = jnp.pad(p["w3"], ((0, 0), (0, OUT_PAD - 1)))                  # lane-dense head
    b3p = jnp.pad(p["b3"], ((0, 0), (0, OUT_PAD - 1)))
    reg_vecs = jnp.concatenate([b1, pad(b2, H1), pad(b3p, H1)],
                               axis=0).astype(jnp.float32)              # [3, 512]

    word_pad = jnp.pad(p["word_emb"], ((0, VOCAB_PAD - VOCAB), (0, 0)))
    ent_pad = jnp.pad(p["entity_emb"], ((0, NUM_EMB_PAD - NUM_EMB), (0, 0)))

    return {
        "word_emb": word_pad.astype(jnp.float32),
        "pos_emb": p["pos_emb"].astype(jnp.float32),
        "entity_emb": ent_pad.astype(jnp.float32),
        "wq": p["wq"].astype(bf16), "wkv": wkv.astype(bf16),
        "wo": p["wo"].astype(bf16),
        "wf1": p["wf1"].astype(bf16), "wf2": p["wf2"].astype(bf16),
        "enc_vecs": enc_vecs,
        "w1c": w1[:HIDDEN].astype(bf16), "w1e": w1[HIDDEN:].astype(bf16),
        "w2": w2.astype(bf16), "w3": w3p.astype(bf16),
        "reg_vecs": reg_vecs,
    }


if __name__ == "__main__":
    key = jax.random.PRNGKey(0)
    k_param, k_ids, k_type = jax.random.split(key, 3)
    params = pack_params(init_params(k_param))

    input_ids = jax.random.randint(k_ids, (BATCH, SEQ), 0, VOCAB, dtype=jnp.int32)
    attention_mask = jnp.ones((BATCH, SEQ), dtype=jnp.int32)
    type_id = jax.random.randint(k_type, (BATCH,), 0, NUM_EMB, dtype=jnp.int32)

    fwd = jax.jit(transformer_entity_regressor)
    out = jax.block_until_ready(fwd(params, input_ids, attention_mask, type_id))
    assert out.shape == (BATCH, 1) and out.dtype == jnp.float32
    print("KERNEL_OK")
</pallas_src>

<mosaic_0001>
module attributes {stable_mosaic.version = 11 : i64} {
  func.func @fused_kernel(%arg0: i32, %arg1: memref<64x1xi32, #tpu.memory_space<vmem>>, %arg2: memref<8x1xi32, #tpu.memory_space<vmem>>, %arg3: memref<8x1xi32, #tpu.memory_space<vmem>>, %arg4: memref<8x8xi32, #tpu.memory_space<vmem>>, %arg5: memref<128x32xf32, #tpu.memory_space<vmem>>, %arg6: memref<8x32xf32, #tpu.memory_space<vmem>>, %arg7: memref<16x16xf32, #tpu.memory_space<vmem>>, %arg8: memref<32x32xbf16, #tpu.memory_space<vmem>>, %arg9: memref<32x64xbf16, #tpu.memory_space<vmem>>, %arg10: memref<32x32xbf16, #tpu.memory_space<vmem>>, %arg11: memref<32x128xbf16, #tpu.memory_space<vmem>>, %arg12: memref<128x32xbf16, #tpu.memory_space<vmem>>, %arg13: memref<12x128xf32, #tpu.memory_space<vmem>>, %arg14: memref<32x512xbf16, #tpu.memory_space<vmem>>, %arg15: memref<16x512xbf16, #tpu.memory_space<vmem>>, %arg16: memref<512x256xbf16, #tpu.memory_space<vmem>>, %arg17: memref<256x128xbf16, #tpu.memory_space<vmem>>, %arg18: memref<3x512xf32, #tpu.memory_space<vmem>>, %arg19: memref<8x128xf32, #tpu.memory_space<vmem>>) attributes {dimension_semantics = [#tpu.dimension_semantics<arbitrary>], iteration_bounds = array<i64: 1>, scalar_prefetch = 0 : i64, scratch_operands = 0 : i64, tpu.core_type = #tpu.core_type<tc>, window_params = [{pipeline_mode = #tpu.pipeline_mode<synchronous>, transform_indices = @transform_0, window_bounds = array<i64: 64, 1>}, {pipeline_mode = #tpu.pipeline_mode<synchronous>, transform_indices = @transform_1, window_bounds = array<i64: 8, 1>}, {pipeline_mode = #tpu.pipeline_mode<synchronous>, transform_indices = @transform_2, window_bounds = array<i64: 8, 1>}, {pipeline_mode = #tpu.pipeline_mode<synchronous>, transform_indices = @transform_3, window_bounds = array<i64: 8, 8>}, {pipeline_mode = #tpu.pipeline_mode<synchronous>, transform_indices = @transform_4, window_bounds = array<i64: 128, 32>}, {pipeline_mode = #tpu.pipeline_mode<synchronous>, transform_indices = @transform_5, window_bounds = array<i64: 8, 32>}, {pipeline_mode = #tpu.pipeline_mode<synchronous>, transform_indices = @transform_6, window_bounds = array<i64: 16, 16>}, {pipeline_mode = #tpu.pipeline_mode<synchronous>, transform_indices = @transform_7, window_bounds = array<i64: 32, 32>}, {pipeline_mode = #tpu.pipeline_mode<synchronous>, transform_indices = @transform_8, window_bounds = array<i64: 32, 64>}, {pipeline_mode = #tpu.pipeline_mode<synchronous>, transform_indices = @transform_9, window_bounds = array<i64: 32, 32>}, {pipeline_mode = #tpu.pipeline_mode<synchronous>, transform_indices = @transform_10, window_bounds = array<i64: 32, 128>}, {pipeline_mode = #tpu.pipeline_mode<synchronous>, transform_indices = @transform_11, window_bounds = array<i64: 128, 32>}, {pipeline_mode = #tpu.pipeline_mode<synchronous>, transform_indices = @transform_12, window_bounds = array<i64: 12, 128>}, {pipeline_mode = #tpu.pipeline_mode<synchronous>, transform_indices = @transform_13, window_bounds = array<i64: 32, 512>}, {pipeline_mode = #tpu.pipeline_mode<synchronous>, transform_indices = @transform_14, window_bounds = array<i64: 16, 512>}, {pipeline_mode = #tpu.pipeline_mode<synchronous>, transform_indices = @transform_15, window_bounds = array<i64: 512, 256>}, {pipeline_mode = #tpu.pipeline_mode<synchronous>, transform_indices = @transform_16, window_bounds = array<i64: 256, 128>}, {pipeline_mode = #tpu.pipeline_mode<synchronous>, transform_indices = @transform_17, window_bounds = array<i64: 3, 512>}, {pipeline_mode = #tpu.pipeline_mode<synchronous>, transform_indices = @transform_18, window_bounds = array<i64: 8, 128>}]} {
    %c0 = arith.constant 0 : index
    %c0_0 = arith.constant 0 : index
    %0 = vector.load %arg13[%c0, %c0_0] : memref<12x128xf32, #tpu.memory_space<vmem>>, vector<12x128xf32>
    %1 = vector.extract_strided_slice %0 {offsets = [0, 0], sizes = [1, 32], strides = [1, 1]} : vector<12x128xf32> to vector<1x32xf32>
    %2 = vector.extract_strided_slice %0 {offsets = [1, 0], sizes = [1, 64], strides = [1, 1]} : vector<12x128xf32> to vector<1x64xf32>
    %3 = vector.extract_strided_slice %0 {offsets = [2, 0], sizes = [1, 32], strides = [1, 1]} : vector<12x128xf32> to vector<1x32xf32>
    %4 = vector.extract_strided_slice %0 {offsets = [3, 0], sizes = [1, 128], strides = [1, 1]} : vector<12x128xf32> to vector<1x128xf32>
    %5 = vector.extract_strided_slice %0 {offsets = [4, 0], sizes = [1, 32], strides = [1, 1]} : vector<12x128xf32> to vector<1x32xf32>
    %6 = vector.extract_strided_slice %0 {offsets = [5, 0], sizes = [1, 32], strides = [1, 1]} : vector<12x128xf32> to vector<1x32xf32>
    %7 = vector.extract_strided_slice %0 {offsets = [6, 0], sizes = [1, 32], strides = [1, 1]} : vector<12x128xf32> to vector<1x32xf32>
    %8 = vector.extract_strided_slice %0 {offsets = [7, 0], sizes = [1, 32], strides = [1, 1]} : vector<12x128xf32> to vector<1x32xf32>
    %9 = vector.extract_strided_slice %0 {offsets = [8, 0], sizes = [1, 32], strides = [1, 1]} : vector<12x128xf32> to vector<1x32xf32>
    %10 = vector.extract_strided_slice %0 {offsets = [9, 0], sizes = [1, 32], strides = [1, 1]} : vector<12x128xf32> to vector<1x32xf32>
    %11 = vector.extract_strided_slice %0 {offsets = [10, 0], sizes = [1, 32], strides = [1, 1]} : vector<12x128xf32> to vector<1x32xf32>
    %12 = vector.extract_strided_slice %0 {offsets = [11, 0], sizes = [1, 32], strides = [1, 1]} : vector<12x128xf32> to vector<1x32xf32>
    %c0_1 = arith.constant 0 : index
    %c0_2 = arith.constant 0 : index
    %13 = vector.load %arg5[%c0_1, %c0_2] : memref<128x32xf32, #tpu.memory_space<vmem>>, vector<128x32xf32>
    %c0_3 = arith.constant 0 : index
    %c0_4 = arith.constant 0 : index
    %14 = vector.load %arg6[%c0_3, %c0_4] : memref<8x32xf32, #tpu.memory_space<vmem>>, vector<8x32xf32>
    %15 = tpu.iota {dimensions = array<i32: 1>} : vector<64x128xi32>
    %c0_5 = arith.constant 0 : index
    %c0_6 = arith.constant 0 : index
    %16 = vector.load %arg1[%c0_5, %c0_6] : memref<64x1xi32, #tpu.memory_space<vmem>>, vector<64x1xi32>
    %17 = vector.broadcast %16 : vector<64x1xi32> to vector<64x128xi32>
    %18 = arith.cmpi eq, %15, %17 : vector<64x128xi32>
    %19 = arith.extui %18 : vector<64x128xi1> to vector<64x128xi32>
    %20 = arith.sitofp %19 : vector<64x128xi32> to vector<64x128xf32>
    %cst = arith.constant dense<0.000000e+00> : vector<64x32xf32>
    %21 = tpu.matmul %20, %13, %cst {dimension_numbers = #tpu.dot_dimension_numbers<[1], [0], [0], [1], [0, 0, 1, 1], [], []>} : vector<64x128xf32>, vector<128x32xf32>, vector<64x32xf32> -> vector<64x32xf32>
    %22 = vector.shape_cast %21 : vector<64x32xf32> to vector<8x8x32xf32>
    %23 = vector.shape_cast %14 : vector<8x32xf32> to vector<1x8x32xf32>
    %24 = vector.broadcast %23 : vector<1x8x32xf32> to vector<8x8x32xf32>
    %25 = arith.addf %22, %24 : vector<8x8x32xf32>
    %26 = vector.shape_cast %12 : vector<1x32xf32> to vector<1x1x32xf32>
    %27 = vector.broadcast %26 : vector<1x1x32xf32> to vector<8x8x32xf32>
    %28 = arith.addf %25, %27 : vector<8x8x32xf32>
    %cst_7 = arith.constant dense<0.000000e+00> : vector<8x8xf32>
    %29 = vector.multi_reduction <add>, %28, %cst_7 [2] : vector<8x8x32xf32> to vector<8x8xf32>
    %30 = vector.shape_cast %29 : vector<8x8xf32> to vector<8x8x1xf32>
    %cst_8 = arith.constant 3.200000e+01 : f32
    %31 = vector.broadcast %cst_8 : f32 to vector<8x8x1xf32>
    %32 = arith.divf %30, %31 : vector<8x8x1xf32>
    %33 = vector.broadcast %32 : vector<8x8x1xf32> to vector<8x8x32xf32>
    %34 = arith.subf %28, %33 : vector<8x8x32xf32>
    %35 = arith.mulf %34, %34 : vector<8x8x32xf32>
    %cst_9 = arith.constant dense<0.000000e+00> : vector<8x8xf32>
    %36 = vector.multi_reduction <add>, %35, %cst_9 [2] : vector<8x8x32xf32> to vector<8x8xf32>
    %37 = vector.shape_cast %36 : vector<8x8xf32> to vector<8x8x1xf32>
    %cst_10 = arith.constant 3.200000e+01 : f32
    %38 = vector.broadcast %cst_10 : f32 to vector<8x8x1xf32>
    %39 = arith.divf %37, %38 : vector<8x8x1xf32>
    %40 = vector.broadcast %32 : vector<8x8x1xf32> to vector<8x8x32xf32>
    %41 = arith.subf %28, %40 : vector<8x8x32xf32>
    %cst_11 = arith.constant 9.99999996E-13 : f32
    %42 = vector.broadcast %cst_11 : f32 to vector<8x8x1xf32>
    %43 = arith.addf %39, %42 : vector<8x8x1xf32>
    %44 = math.rsqrt %43 : vector<8x8x1xf32>
    %45 = vector.broadcast %44 : vector<8x8x1xf32> to vector<8x8x32xf32>
    %46 = arith.mulf %41, %45 : vector<8x8x32xf32>
    %47 = vector.shape_cast %10 : vector<1x32xf32> to vector<1x1x32xf32>
    %48 = vector.broadcast %47 : vector<1x1x32xf32> to vector<8x8x32xf32>
    %49 = arith.mulf %46, %48 : vector<8x8x32xf32>
    %50 = vector.shape_cast %11 : vector<1x32xf32> to vector<1x1x32xf32>
    %51 = vector.broadcast %50 : vector<1x1x32xf32> to vector<8x8x32xf32>
    %52 = arith.addf %49, %51 : vector<8x8x32xf32>
    %53 = vector.shape_cast %52 : vector<8x8x32xf32> to vector<64x32xf32>
    %54 = tpu.iota {dimensions = array<i32: 1>} : vector<8x128xi32>
    %c0_12 = arith.constant 0 : index
    %c0_13 = arith.constant 0 : index
    %55 = vector.load %arg2[%c0_12, %c0_13] : memref<8x1xi32, #tpu.memory_space<vmem>>, vector<8x1xi32>
    %56 = vector.broadcast %55 : vector<8x1xi32> to vector<8x128xi32>
    %57 = arith.cmpi eq, %54, %56 : vector<8x128xi32>
    %58 = arith.extui %57 : vector<8x128xi1> to vector<8x128xi32>
    %59 = arith.sitofp %58 : vector<8x128xi32> to vector<8x128xf32>
    %cst_14 = arith.constant dense<0.000000e+00> : vector<8x32xf32>
    %60 = tpu.matmul %59, %13, %cst_14 {dimension_numbers = #tpu.dot_dimension_numbers<[1], [0], [0], [1], [0, 0, 1, 1], [], []>} : vector<8x128xf32>, vector<128x32xf32>, vector<8x32xf32> -> vector<8x32xf32>
    %61 = vector.extract_strided_slice %14 {offsets = [0, 0], sizes = [1, 32], strides = [1, 1]} : vector<8x32xf32> to vector<1x32xf32>
    %62 = vector.broadcast %61 : vector<1x32xf32> to vector<8x32xf32>
    %63 = arith.addf %60, %62 : vector<8x32xf32>
    %64 = vector.broadcast %12 : vector<1x32xf32> to vector<8x32xf32>
    %65 = arith.addf %63, %64 : vector<8x32xf32>
    %cst_15 = arith.constant dense<0.000000e+00> : vector<8xf32>
    %66 = vector.multi_reduction <add>, %65, %cst_15 [1] : vector<8x32xf32> to vector<8xf32>
    %67 = vector.shape_cast %66 : vector<8xf32> to vector<8x1xf32>
    %cst_16 = arith.constant 3.200000e+01 : f32
    %68 = vector.broadcast %cst_16 : f32 to vector<8x1xf32>
    %69 = arith.divf %67, %68 : vector<8x1xf32>
    %70 = vector.broadcast %69 : vector<8x1xf32> to vector<8x32xf32>
    %71 = arith.subf %65, %70 : vector<8x32xf32>
    %72 = arith.mulf %71, %71 : vector<8x32xf32>
    %cst_17 = arith.constant dense<0.000000e+00> : vector<8xf32>
    %73 = vector.multi_reduction <add>, %72, %cst_17 [1] : vector<8x32xf32> to vector<8xf32>
    %74 = vector.shape_cast %73 : vector<8xf32> to vector<8x1xf32>
    %cst_18 = arith.constant 3.200000e+01 : f32
    %75 = vector.broadcast %cst_18 : f32 to vector<8x1xf32>
    %76 = arith.divf %74, %75 : vector<8x1xf32>
    %77 = vector.broadcast %69 : vector<8x1xf32> to vector<8x32xf32>
    %78 = arith.subf %65, %77 : vector<8x32xf32>
    %cst_19 = arith.constant 9.99999996E-13 : f32
    %79 = vector.broadcast %cst_19 : f32 to vector<8x1xf32>
    %80 = arith.addf %76, %79 : vector<8x1xf32>
    %81 = math.rsqrt %80 : vector<8x1xf32>
    %82 = vector.broadcast %81 : vector<8x1xf32> to vector<8x32xf32>
    %83 = arith.mulf %78, %82 : vector<8x32xf32>
    %84 = vector.broadcast %10 : vector<1x32xf32> to vector<8x32xf32>
    %85 = arith.mulf %83, %84 : vector<8x32xf32>
    %86 = vector.broadcast %11 : vector<1x32xf32> to vector<8x32xf32>
    %87 = arith.addf %85, %86 : vector<8x32xf32>
    %88 = arith.truncf %53 : vector<64x32xf32> to vector<64x32xbf16>
    %c0_20 = arith.constant 0 : index
    %c0_21 = arith.constant 0 : index
    %89 = vector.load %arg9[%c0_20, %c0_21] : memref<32x64xbf16, #tpu.memory_space<vmem>>, vector<32x64xbf16>
    %cst_22 = arith.constant dense<0.000000e+00> : vector<64x64xf32>
    %90 = tpu.matmul %88, %89, %cst_22 {dimension_numbers = #tpu.dot_dimension_numbers<[1], [0], [0], [1], [0, 0, 1, 1], [], []>} : vector<64x32xbf16>, vector<32x64xbf16>, vector<64x64xf32> -> vector<64x64xf32>
    %91 = vector.broadcast %2 : vector<1x64xf32> to vector<64x64xf32>
    %92 = arith.addf %90, %91 : vector<64x64xf32>
    %93 = vector.extract_strided_slice %92 {offsets = [0, 0], sizes = [64, 32], strides = [1, 1]} : vector<64x64xf32> to vector<64x32xf32>
    %94 = arith.truncf %93 : vector<64x32xf32> to vector<64x32xbf16>
    %95 = vector.shape_cast %94 : vector<64x32xbf16> to vector<8x8x32xbf16>
    %96 = vector.extract_strided_slice %92 {offsets = [0, 32], sizes = [64, 32], strides = [1, 1]} : vector<64x64xf32> to vector<64x32xf32>
    %97 = arith.truncf %96 : vector<64x32xf32> to vector<64x32xbf16>
    %98 = vector.shape_cast %97 : vector<64x32xbf16> to vector<8x8x32xbf16>
    %99 = arith.truncf %87 : vector<8x32xf32> to vector<8x32xbf16>
    %c0_23 = arith.constant 0 : index
    %c0_24 = arith.constant 0 : index
    %100 = vector.load %arg8[%c0_23, %c0_24] : memref<32x32xbf16, #tpu.memory_space<vmem>>, vector<32x32xbf16>
    %cst_25 = arith.constant dense<0.000000e+00> : vector<8x32xf32>
    %101 = tpu.matmul %99, %100, %cst_25 {dimension_numbers = #tpu.dot_dimension_numbers<[1], [0], [0], [1], [0, 0, 1, 1], [], []>} : vector<8x32xbf16>, vector<32x32xbf16>, vector<8x32xf32> -> vector<8x32xf32>
    %102 = vector.broadcast %1 : vector<1x32xf32> to vector<8x32xf32>
    %103 = arith.addf %101, %102 : vector<8x32xf32>
    %104 = arith.truncf %103 : vector<8x32xf32> to vector<8x32xbf16>
    %105 = vector.shape_cast %104 : vector<8x32xbf16> to vector<8x1x32xbf16>
    %c0_26 = arith.constant 0 : index
    %c0_27 = arith.constant 0 : index
    %106 = vector.load %arg4[%c0_26, %c0_27] : memref<8x8xi32, #tpu.memory_space<vmem>>, vector<8x8xi32>
    %c1_i32 = arith.constant 1 : i32
    %107 = vector.broadcast %c1_i32 : i32 to vector<8x8xi32>
    %108 = arith.subi %107, %106 : vector<8x8xi32>
    %109 = arith.sitofp %108 : vector<8x8xi32> to vector<8x8xf32>
    %cst_28 = arith.constant -1.000000e+09 : f32
    %110 = vector.broadcast %cst_28 : f32 to vector<8x8xf32>
    %111 = arith.mulf %109, %110 : vector<8x8xf32>
    %112 = vector.shape_cast %111 : vector<8x8xf32> to vector<8x1x8xf32>
    %113 = vector.extract_strided_slice %105 {offsets = [0, 0, 0], sizes = [8, 1, 8], strides = [1, 1, 1]} : vector<8x1x32xbf16> to vector<8x1x8xbf16>
    %114 = vector.extract_strided_slice %95 {offsets = [0, 0, 0], sizes = [8, 8, 8], strides = [1, 1, 1]} : vector<8x8x32xbf16> to vector<8x8x8xbf16>
    "tpu.trace_start"() <{level = 10 : i32, message = "bqd,bkd->bqk"}> : () -> ()
    %cst_29 = arith.constant dense<0.000000e+00> : vector<8x1x8xf32>
    %115 = tpu.matmul %113, %114, %cst_29 {dimension_numbers = #tpu.dot_dimension_numbers<[2], [2], [1], [1], [0, 0, 0, 1, 1, 1], [0], [0]>} : vector<8x1x8xbf16>, vector<8x8x8xbf16>, vector<8x1x8xf32> -> vector<8x1x8xf32>
    "tpu.trace_stop"() : () -> ()
    %cst_30 = arith.constant 0.353553385 : f32
    %116 = vector.broadcast %cst_30 : f32 to vector<8x1x8xf32>
    %117 = arith.mulf %115, %116 : vector<8x1x8xf32>
    %118 = arith.addf %117, %112 : vector<8x1x8xf32>
    %cst_31 = arith.constant dense<0xFF800000> : vector<8x1xf32>
    %119 = vector.multi_reduction <maximumf>, %118, %cst_31 [2] : vector<8x1x8xf32> to vector<8x1xf32>
    %120 = vector.shape_cast %119 : vector<8x1xf32> to vector<8x1x1xf32>
    %121 = vector.broadcast %120 : vector<8x1x1xf32> to vector<8x1x8xf32>
    %122 = arith.subf %118, %121 : vector<8x1x8xf32>
    %123 = math.exp %122 : vector<8x1x8xf32>
    %cst_32 = arith.constant dense<0.000000e+00> : vector<8x1xf32>
    %124 = vector.multi_reduction <add>, %123, %cst_32 [2] : vector<8x1x8xf32> to vector<8x1xf32>
    %125 = vector.shape_cast %124 : vector<8x1xf32> to vector<8x1x1xf32>
    %126 = tpu.reciprocal %125 {approx = true} : vector<8x1x1xf32> -> vector<8x1x1xf32>
    %127 = vector.broadcast %126 : vector<8x1x1xf32> to vector<8x1x8xf32>
    %128 = arith.mulf %123, %127 : vector<8x1x8xf32>
    %129 = arith.truncf %128 : vector<8x1x8xf32> to vector<8x1x8xbf16>
    %130 = vector.extract_strided_slice %98 {offsets = [0, 0, 0], sizes = [8, 8, 8], strides = [1, 1, 1]} : vector<8x8x32xbf16> to vector<8x8x8xbf16>
    "tpu.trace_start"() <{level = 10 : i32, message = "bqk,bkd->bqd"}> : () -> ()
    %cst_33 = arith.constant dense<0.000000e+00> : vector<8x1x8xf32>
    %131 = tpu.matmul %129, %130, %cst_33 {dimension_numbers = #tpu.dot_dimension_numbers<[2], [1], [1], [2], [0, 0, 0, 1, 1, 2], [0], [0]>} : vector<8x1x8xbf16>, vector<8x8x8xbf16>, vector<8x1x8xf32> -> vector<8x1x8xf32>
    "tpu.trace_stop"() : () -> ()
    %132 = vector.extract_strided_slice %105 {offsets = [0, 0, 8], sizes = [8, 1, 8], strides = [1, 1, 1]} : vector<8x1x32xbf16> to vector<8x1x8xbf16>
    %133 = vector.extract_strided_slice %95 {offsets = [0, 0, 8], sizes = [8, 8, 8], strides = [1, 1, 1]} : vector<8x8x32xbf16> to vector<8x8x8xbf16>
    "tpu.trace_start"() <{level = 10 : i32, message = "bqd,bkd->bqk"}> : () -> ()
    %cst_34 = arith.constant dense<0.000000e+00> : vector<8x1x8xf32>
    %134 = tpu.matmul %132, %133, %cst_34 {dimension_numbers = #tpu.dot_dimension_numbers<[2], [2], [1], [1], [0, 0, 0, 1, 1, 1], [0], [0]>} : vector<8x1x8xbf16>, vector<8x8x8xbf16>, vector<8x1x8xf32> -> vector<8x1x8xf32>
    "tpu.trace_stop"() : () -> ()
    %cst_35 = arith.constant 0.353553385 : f32
    %135 = vector.broadcast %cst_35 : f32 to vector<8x1x8xf32>
    %136 = arith.mulf %134, %135 : vector<8x1x8xf32>
    %137 = arith.addf %136, %112 : vector<8x1x8xf32>
    %cst_36 = arith.constant dense<0xFF800000> : vector<8x1xf32>
    %138 = vector.multi_reduction <maximumf>, %137, %cst_36 [2] : vector<8x1x8xf32> to vector<8x1xf32>
    %139 = vector.shape_cast %138 : vector<8x1xf32> to vector<8x1x1xf32>
    %140 = vector.broadcast %139 : vector<8x1x1xf32> to vector<8x1x8xf32>
    %141 = arith.subf %137, %140 : vector<8x1x8xf32>
    %142 = math.exp %141 : vector<8x1x8xf32>
    %cst_37 = arith.constant dense<0.000000e+00> : vector<8x1xf32>
    %143 = vector.multi_reduction <add>, %142, %cst_37 [2] : vector<8x1x8xf32> to vector<8x1xf32>
    %144 = vector.shape_cast %143 : vector<8x1xf32> to vector<8x1x1xf32>
    %145 = tpu.reciprocal %144 {approx = true} : vector<8x1x1xf32> -> vector<8x1x1xf32>
    %146 = vector.broadcast %145 : vector<8x1x1xf32> to vector<8x1x8xf32>
    %147 = arith.mulf %142, %146 : vector<8x1x8xf32>
    %148 = arith.truncf %147 : vector<8x1x8xf32> to vector<8x1x8xbf16>
    %149 = vector.extract_strided_slice %98 {offsets = [0, 0, 8], sizes = [8, 8, 8], strides = [1, 1, 1]} : vector<8x8x32xbf16> to vector<8x8x8xbf16>
    "tpu.trace_start"() <{level = 10 : i32, message = "bqk,bkd->bqd"}> : () -> ()
    %cst_38 = arith.constant dense<0.000000e+00> : vector<8x1x8xf32>
    %150 = tpu.matmul %148, %149, %cst_38 {dimension_numbers = #tpu.dot_dimension_numbers<[2], [1], [1], [2], [0, 0, 0, 1, 1, 2], [0], [0]>} : vector<8x1x8xbf16>, vector<8x8x8xbf16>, vector<8x1x8xf32> -> vector<8x1x8xf32>
    "tpu.trace_stop"() : () -> ()
    %151 = vector.extract_strided_slice %105 {offsets = [0, 0, 16], sizes = [8, 1, 8], strides = [1, 1, 1]} : vector<8x1x32xbf16> to vector<8x1x8xbf16>
    %152 = vector.extract_strided_slice %95 {offsets = [0, 0, 16], sizes = [8, 8, 8], strides = [1, 1, 1]} : vector<8x8x32xbf16> to vector<8x8x8xbf16>
    "tpu.trace_start"() <{level = 10 : i32, message = "bqd,bkd->bqk"}> : () -> ()
    %cst_39 = arith.constant dense<0.000000e+00> : vector<8x1x8xf32>
    %153 = tpu.matmul %151, %152, %cst_39 {dimension_numbers = #tpu.dot_dimension_numbers<[2], [2], [1], [1], [0, 0, 0, 1, 1, 1], [0], [0]>} : vector<8x1x8xbf16>, vector<8x8x8xbf16>, vector<8x1x8xf32> -> vector<8x1x8xf32>
    "tpu.trace_stop"() : () -> ()
    %cst_40 = arith.constant 0.353553385 : f32
    %154 = vector.broadcast %cst_40 : f32 to vector<8x1x8xf32>
    %155 = arith.mulf %153, %154 : vector<8x1x8xf32>
    %156 = arith.addf %155, %112 : vector<8x1x8xf32>
    %cst_41 = arith.constant dense<0xFF800000> : vector<8x1xf32>
    %157 = vector.multi_reduction <maximumf>, %156, %cst_41 [2] : vector<8x1x8xf32> to vector<8x1xf32>
    %158 = vector.shape_cast %157 : vector<8x1xf32> to vector<8x1x1xf32>
    %159 = vector.broadcast %158 : vector<8x1x1xf32> to vector<8x1x8xf32>
    %160 = arith.subf %156, %159 : vector<8x1x8xf32>
    %161 = math.exp %160 : vector<8x1x8xf32>
    %cst_42 = arith.constant dense<0.000000e+00> : vector<8x1xf32>
    %162 = vector.multi_reduction <add>, %161, %cst_42 [2] : vector<8x1x8xf32> to vector<8x1xf32>
    %163 = vector.shape_cast %162 : vector<8x1xf32> to vector<8x1x1xf32>
    %164 = tpu.reciprocal %163 {approx = true} : vector<8x1x1xf32> -> vector<8x1x1xf32>
    %165 = vector.broadcast %164 : vector<8x1x1xf32> to vector<8x1x8xf32>
    %166 = arith.mulf %161, %165 : vector<8x1x8xf32>
    %167 = arith.truncf %166 : vector<8x1x8xf32> to vector<8x1x8xbf16>
    %168 = vector.extract_strided_slice %98 {offsets = [0, 0, 16], sizes = [8, 8, 8], strides = [1, 1, 1]} : vector<8x8x32xbf16> to vector<8x8x8xbf16>
    "tpu.trace_start"() <{level = 10 : i32, message = "bqk,bkd->bqd"}> : () -> ()
    %cst_43 = arith.constant dense<0.000000e+00> : vector<8x1x8xf32>
    %169 = tpu.matmul %167, %168, %cst_43 {dimension_numbers = #tpu.dot_dimension_numbers<[2], [1], [1], [2], [0, 0, 0, 1, 1, 2], [0], [0]>} : vector<8x1x8xbf16>, vector<8x8x8xbf16>, vector<8x1x8xf32> -> vector<8x1x8xf32>
    "tpu.trace_stop"() : () -> ()
    %170 = vector.extract_strided_slice %105 {offsets = [0, 0, 24], sizes = [8, 1, 8], strides = [1, 1, 1]} : vector<8x1x32xbf16> to vector<8x1x8xbf16>
    %171 = vector.extract_strided_slice %95 {offsets = [0, 0, 24], sizes = [8, 8, 8], strides = [1, 1, 1]} : vector<8x8x32xbf16> to vector<8x8x8xbf16>
    "tpu.trace_start"() <{level = 10 : i32, message = "bqd,bkd->bqk"}> : () -> ()
    %cst_44 = arith.constant dense<0.000000e+00> : vector<8x1x8xf32>
    %172 = tpu.matmul %170, %171, %cst_44 {dimension_numbers = #tpu.dot_dimension_numbers<[2], [2], [1], [1], [0, 0, 0, 1, 1, 1], [0], [0]>} : vector<8x1x8xbf16>, vector<8x8x8xbf16>, vector<8x1x8xf32> -> vector<8x1x8xf32>
    "tpu.trace_stop"() : () -> ()
    %cst_45 = arith.constant 0.353553385 : f32
    %173 = vector.broadcast %cst_45 : f32 to vector<8x1x8xf32>
    %174 = arith.mulf %172, %173 : vector<8x1x8xf32>
    %175 = arith.addf %174, %112 : vector<8x1x8xf32>
    %cst_46 = arith.constant dense<0xFF800000> : vector<8x1xf32>
    %176 = vector.multi_reduction <maximumf>, %175, %cst_46 [2] : vector<8x1x8xf32> to vector<8x1xf32>
    %177 = vector.shape_cast %176 : vector<8x1xf32> to vector<8x1x1xf32>
    %178 = vector.broadcast %177 : vector<8x1x1xf32> to vector<8x1x8xf32>
    %179 = arith.subf %175, %178 : vector<8x1x8xf32>
    %180 = math.exp %179 : vector<8x1x8xf32>
    %cst_47 = arith.constant dense<0.000000e+00> : vector<8x1xf32>
    %181 = vector.multi_reduction <add>, %180, %cst_47 [2] : vector<8x1x8xf32> to vector<8x1xf32>
    %182 = vector.shape_cast %181 : vector<8x1xf32> to vector<8x1x1xf32>
    %183 = tpu.reciprocal %182 {approx = true} : vector<8x1x1xf32> -> vector<8x1x1xf32>
    %184 = vector.broadcast %183 : vector<8x1x1xf32> to vector<8x1x8xf32>
    %185 = arith.mulf %180, %184 : vector<8x1x8xf32>
    %186 = arith.truncf %185 : vector<8x1x8xf32> to vector<8x1x8xbf16>
    %187 = vector.extract_strided_slice %98 {offsets = [0, 0, 24], sizes = [8, 8, 8], strides = [1, 1, 1]} : vector<8x8x32xbf16> to vector<8x8x8xbf16>
    "tpu.trace_start"() <{level = 10 : i32, message = "bqk,bkd->bqd"}> : () -> ()
    %cst_48 = arith.constant dense<0.000000e+00> : vector<8x1x8xf32>
    %188 = tpu.matmul %186, %187, %cst_48 {dimension_numbers = #tpu.dot_dimension_numbers<[2], [1], [1], [2], [0, 0, 0, 1, 1, 2], [0], [0]>} : vector<8x1x8xbf16>, vector<8x8x8xbf16>, vector<8x1x8xf32> -> vector<8x1x8xf32>
    "tpu.trace_stop"() : () -> ()
    %189 = tpu.concatenate %131, %150, %169, %188 in 2 : vector<8x1x8xf32>, vector<8x1x8xf32>, vector<8x1x8xf32>, vector<8x1x8xf32> -> vector<8x1x32xf32>
    %190 = vector.shape_cast %189 : vector<8x1x32xf32> to vector<8x32xf32>
    %191 = arith.truncf %190 : vector<8x32xf32> to vector<8x32xbf16>
    %c0_49 = arith.constant 0 : index
    %c0_50 = arith.constant 0 : index
    %192 = vector.load %arg10[%c0_49, %c0_50] : memref<32x32xbf16, #tpu.memory_space<vmem>>, vector<32x32xbf16>
    %cst_51 = arith.constant dense<0.000000e+00> : vector<8x32xf32>
    %193 = tpu.matmul %191, %192, %cst_51 {dimension_numbers = #tpu.dot_dimension_numbers<[1], [0], [0], [1], [0, 0, 1, 1], [], []>} : vector<8x32xbf16>, vector<32x32xbf16>, vector<8x32xf32> -> vector<8x32xf32>
    %194 = vector.broadcast %3 : vector<1x32xf32> to vector<8x32xf32>
    %195 = arith.addf %193, %194 : vector<8x32xf32>
    %196 = arith.addf %87, %195 : vector<8x32xf32>
    %cst_52 = arith.constant dense<0.000000e+00> : vector<8xf32>
    %197 = vector.multi_reduction <add>, %196, %cst_52 [1] : vector<8x32xf32> to vector<8xf32>
    %198 = vector.shape_cast %197 : vector<8xf32> to vector<8x1xf32>
    %cst_53 = arith.constant 3.200000e+01 : f32
    %199 = vector.broadcast %cst_53 : f32 to vector<8x1xf32>
    %200 = arith.divf %198, %199 : vector<8x1xf32>
    %201 = vector.broadcast %200 : vector<8x1xf32> to vector<8x32xf32>
    %202 = arith.subf %196, %201 : vector<8x32xf32>
    %203 = arith.mulf %202, %202 : vector<8x32xf32>
    %cst_54 = arith.constant dense<0.000000e+00> : vector<8xf32>
    %204 = vector.multi_reduction <add>, %203, %cst_54 [1] : vector<8x32xf32> to vector<8xf32>
    %205 = vector.shape_cast %204 : vector<8xf32> to vector<8x1xf32>
    %cst_55 = arith.constant 3.200000e+01 : f32
    %206 = vector.broadcast %cst_55 : f32 to vector<8x1xf32>
    %207 = arith.divf %205, %206 : vector<8x1xf32>
    %208 = vector.broadcast %200 : vector<8x1xf32> to vector<8x32xf32>
    %209 = arith.subf %196, %208 : vector<8x32xf32>
    %cst_56 = arith.constant 9.99999996E-13 : f32
    %210 = vector.broadcast %cst_56 : f32 to vector<8x1xf32>
    %211 = arith.addf %207, %210 : vector<8x1xf32>
    %212 = math.rsqrt %211 : vector<8x1xf32>
    %213 = vector.broadcast %212 : vector<8x1xf32> to vector<8x32xf32>
    %214 = arith.mulf %209, %213 : vector<8x32xf32>
    %215 = vector.broadcast %6 : vector<1x32xf32> to vector<8x32xf32>
    %216 = arith.mulf %214, %215 : vector<8x32xf32>
    %217 = vector.broadcast %7 : vector<1x32xf32> to vector<8x32xf32>
    %218 = arith.addf %216, %217 : vector<8x32xf32>
    %219 = arith.truncf %218 : vector<8x32xf32> to vector<8x32xbf16>
    %c0_57 = arith.constant 0 : index
    %c0_58 = arith.constant 0 : index
    %220 = vector.load %arg11[%c0_57, %c0_58] : memref<32x128xbf16, #tpu.memory_space<vmem>>, vector<32x128xbf16>
    %cst_59 = arith.constant dense<0.000000e+00> : vector<8x128xf32>
    %221 = tpu.matmul %219, %220, %cst_59 {dimension_numbers = #tpu.dot_dimension_numbers<[1], [0], [0], [1], [0, 0, 1, 1], [], []>} : vector<8x32xbf16>, vector<32x128xbf16>, vector<8x128xf32> -> vector<8x128xf32>
    %222 = vector.broadcast %4 : vector<1x128xf32> to vector<8x128xf32>
    %223 = arith.addf %221, %222 : vector<8x128xf32>
    %224 = arith.mulf %223, %223 : vector<8x128xf32>
    %225 = arith.mulf %223, %224 : vector<8x128xf32>
    %cst_60 = arith.constant 4.471500e-02 : f32
    %226 = vector.broadcast %cst_60 : f32 to vector<8x128xf32>
    %227 = arith.mulf %226, %225 : vector<8x128xf32>
    %228 = arith.addf %223, %227 : vector<8x128xf32>
    %cst_61 = arith.constant 0.797884583 : f32
    %229 = vector.broadcast %cst_61 : f32 to vector<8x128xf32>
    %230 = arith.mulf %229, %228 : vector<8x128xf32>
    %231 = math.tanh %230 : vector<8x128xf32>
    %cst_62 = arith.constant 1.000000e+00 : f32
    %232 = vector.broadcast %cst_62 : f32 to vector<8x128xf32>
    %233 = arith.addf %232, %231 : vector<8x128xf32>
    %cst_63 = arith.constant 5.000000e-01 : f32
    %234 = vector.broadcast %cst_63 : f32 to vector<8x128xf32>
    %235 = arith.mulf %234, %233 : vector<8x128xf32>
    %236 = arith.mulf %223, %235 : vector<8x128xf32>
    %237 = arith.truncf %236 : vector<8x128xf32> to vector<8x128xbf16>
    %c0_64 = arith.constant 0 : index
    %c0_65 = arith.constant 0 : index
    %238 = vector.load %arg12[%c0_64, %c0_65] : memref<128x32xbf16, #tpu.memory_space<vmem>>, vector<128x32xbf16>
    %cst_66 = arith.constant dense<0.000000e+00> : vector<8x32xf32>
    %239 = tpu.matmul %237, %238, %cst_66 {dimension_numbers = #tpu.dot_dimension_numbers<[1], [0], [0], [1], [0, 0, 1, 1], [], []>} : vector<8x128xbf16>, vector<128x32xbf16>, vector<8x32xf32> -> vector<8x32xf32>
    %240 = vector.broadcast %5 : vector<1x32xf32> to vector<8x32xf32>
    %241 = arith.addf %239, %240 : vector<8x32xf32>
    %242 = arith.addf %218, %241 : vector<8x32xf32>
    %cst_67 = arith.constant dense<0.000000e+00> : vector<8xf32>
    %243 = vector.multi_reduction <add>, %242, %cst_67 [1] : vector<8x32xf32> to vector<8xf32>
    %244 = vector.shape_cast %243 : vector<8xf32> to vector<8x1xf32>
    %cst_68 = arith.constant 3.200000e+01 : f32
    %245 = vector.broadcast %cst_68 : f32 to vector<8x1xf32>
    %246 = arith.divf %244, %245 : vector<8x1xf32>
    %247 = vector.broadcast %246 : vector<8x1xf32> to vector<8x32xf32>
    %248 = arith.subf %242, %247 : vector<8x32xf32>
    %249 = arith.mulf %248, %248 : vector<8x32xf32>
    %cst_69 = arith.constant dense<0.000000e+00> : vector<8xf32>
    %250 = vector.multi_reduction <add>, %249, %cst_69 [1] : vector<8x32xf32> to vector<8xf32>
    %251 = vector.shape_cast %250 : vector<8xf32> to vector<8x1xf32>
    %cst_70 = arith.constant 3.200000e+01 : f32
    %252 = vector.broadcast %cst_70 : f32 to vector<8x1xf32>
    %253 = arith.divf %251, %252 : vector<8x1xf32>
    %254 = vector.broadcast %246 : vector<8x1xf32> to vector<8x32xf32>
    %255 = arith.subf %242, %254 : vector<8x32xf32>
    %cst_71 = arith.constant 9.99999996E-13 : f32
    %256 = vector.broadcast %cst_71 : f32 to vector<8x1xf32>
    %257 = arith.addf %253, %256 : vector<8x1xf32>
    %258 = math.rsqrt %257 : vector<8x1xf32>
    %259 = vector.broadcast %258 : vector<8x1xf32> to vector<8x32xf32>
    %260 = arith.mulf %255, %259 : vector<8x32xf32>
    %261 = vector.broadcast %8 : vector<1x32xf32> to vector<8x32xf32>
    %262 = arith.mulf %260, %261 : vector<8x32xf32>
    %263 = vector.broadcast %9 : vector<1x32xf32> to vector<8x32xf32>
    %264 = arith.addf %262, %263 : vector<8x32xf32>
    %265 = tpu.iota {dimensions = array<i32: 1>} : vector<8x16xi32>
    %c0_72 = arith.constant 0 : index
    %c0_73 = arith.constant 0 : index
    %266 = vector.load %arg3[%c0_72, %c0_73] : memref<8x1xi32, #tpu.memory_space<vmem>>, vector<8x1xi32>
    %267 = vector.broadcast %266 : vector<8x1xi32> to vector<8x16xi32>
    %268 = arith.cmpi eq, %265, %267 : vector<8x16xi32>
    %269 = arith.extui %268 : vector<8x16xi1> to vector<8x16xi32>
    %270 = arith.sitofp %269 : vector<8x16xi32> to vector<8x16xf32>
    %c0_74 = arith.constant 0 : index
    %c0_75 = arith.constant 0 : index
    %271 = vector.load %arg7[%c0_74, %c0_75] : memref<16x16xf32, #tpu.memory_space<vmem>>, vector<16x16xf32>
    %cst_76 = arith.constant dense<0.000000e+00> : vector<8x16xf32>
    %272 = tpu.matmul %270, %271, %cst_76 {dimension_numbers = #tpu.dot_dimension_numbers<[1], [0], [0], [1], [0, 0, 1, 1], [], []>} : vector<8x16xf32>, vector<16x16xf32>, vector<8x16xf32> -> vector<8x16xf32>
    %c0_77 = arith.constant 0 : index
    %c0_78 = arith.constant 0 : index
    %273 = vector.load %arg18[%c0_77, %c0_78] : memref<3x512xf32, #tpu.memory_space<vmem>>, vector<3x512xf32>
    %274 = vector.extract_strided_slice %273 {offsets = [0, 0], sizes = [1, 512], strides = [1, 1]} : vector<3x512xf32> to vector<1x512xf32>
    %275 = vector.extract_strided_slice %273 {offsets = [1, 0], sizes = [1, 256], strides = [1, 1]} : vector<3x512xf32> to vector<1x256xf32>
    %276 = vector.extract_strided_slice %273 {offsets = [2, 0], sizes = [1, 128], strides = [1, 1]} : vector<3x512xf32> to vector<1x128xf32>
    %277 = arith.truncf %264 : vector<8x32xf32> to vector<8x32xbf16>
    %c0_79 = arith.constant 0 : index
    %c0_80 = arith.constant 0 : index
    %278 = vector.load %arg14[%c0_79, %c0_80] : memref<32x512xbf16, #tpu.memory_space<vmem>>, vector<32x512xbf16>
    %cst_81 = arith.constant dense<0.000000e+00> : vector<8x512xf32>
    %279 = tpu.matmul %277, %278, %cst_81 {dimension_numbers = #tpu.dot_dimension_numbers<[1], [0], [0], [1], [0, 0, 1, 1], [], []>} : vector<8x32xbf16>, vector<32x512xbf16>, vector<8x512xf32> -> vector<8x512xf32>
    %280 = arith.truncf %272 : vector<8x16xf32> to vector<8x16xbf16>
    %c0_82 = arith.constant 0 : index
    %c0_83 = arith.constant 0 : index
    %281 = vector.load %arg15[%c0_82, %c0_83] : memref<16x512xbf16, #tpu.memory_space<vmem>>, vector<16x512xbf16>
    %cst_84 = arith.constant dense<0.000000e+00> : vector<8x512xf32>
    %282 = tpu.matmul %280, %281, %cst_84 {dimension_numbers = #tpu.dot_dimension_numbers<[1], [0], [0], [1], [0, 0, 1, 1], [], []>} : vector<8x16xbf16>, vector<16x512xbf16>, vector<8x512xf32> -> vector<8x512xf32>
    %283 = arith.addf %279, %282 : vector<8x512xf32>
    %284 = vector.broadcast %274 : vector<1x512xf32> to vector<8x512xf32>
    %285 = arith.addf %283, %284 : vector<8x512xf32>
    %cst_85 = arith.constant 0.000000e+00 : f32
    %286 = vector.broadcast %cst_85 : f32 to vector<8x512xf32>
    %287 = arith.maximumf %285, %286 : vector<8x512xf32>
    %288 = arith.truncf %287 : vector<8x512xf32> to vector<8x512xbf16>
    %c0_86 = arith.constant 0 : index
    %c0_87 = arith.constant 0 : index
    %289 = vector.load %arg16[%c0_86, %c0_87] : memref<512x256xbf16, #tpu.memory_space<vmem>>, vector<512x256xbf16>
    %cst_88 = arith.constant dense<0.000000e+00> : vector<8x256xf32>
    %290 = tpu.matmul %288, %289, %cst_88 {dimension_numbers = #tpu.dot_dimension_numbers<[1], [0], [0], [1], [0, 0, 1, 1], [], []>} : vector<8x512xbf16>, vector<512x256xbf16>, vector<8x256xf32> -> vector<8x256xf32>
    %291 = vector.broadcast %275 : vector<1x256xf32> to vector<8x256xf32>
    %292 = arith.addf %290, %291 : vector<8x256xf32>
    %cst_89 = arith.constant 0.000000e+00 : f32
    %293 = vector.broadcast %cst_89 : f32 to vector<8x256xf32>
    %294 = arith.maximumf %292, %293 : vector<8x256xf32>
    %295 = arith.truncf %294 : vector<8x256xf32> to vector<8x256xbf16>
    %c0_90 = arith.constant 0 : index
    %c0_91 = arith.constant 0 : index
    %296 = vector.load %arg17[%c0_90, %c0_91] : memref<256x128xbf16, #tpu.memory_space<vmem>>, vector<256x128xbf16>
    %cst_92 = arith.constant dense<0.000000e+00> : vector<8x128xf32>
    %297 = tpu.matmul %295, %296, %cst_92 {dimension_numbers = #tpu.dot_dimension_numbers<[1], [0], [0], [1], [0, 0, 1, 1], [], []>} : vector<8x256xbf16>, vector<256x128xbf16>, vector<8x128xf32> -> vector<8x128xf32>
    %298 = vector.broadcast %276 : vector<1x128xf32> to vector<8x128xf32>
    %299 = arith.addf %297, %298 : vector<8x128xf32>
    %c0_93 = arith.constant 0 : index
    %c0_94 = arith.constant 0 : index
    %300 = vector.load %arg19[%c0_93, %c0_94] : memref<8x128xf32, #tpu.memory_space<vmem>>, vector<8x128xf32>
    tpu.vector_store %arg19[%c0_93, %c0_94], %299 {strides = array<i32>} : memref<8x128xf32, #tpu.memory_space<vmem>>, vector<8x128xf32>,
    return
  }
  func.func @transform_0(%arg0: i32) -> (i32, i32) {
    %c0_i32 = arith.constant 0 : i32
    %c0_i32_0 = arith.constant 0 : i32
    %c0_i32_1 = arith.constant 0 : i32
    return %c0_i32, %c0_i32_0 : i32, i32
  }
  func.func @transform_1(%arg0: i32) -> (i32, i32) {
    %c0_i32 = arith.constant 0 : i32
    %c0_i32_0 = arith.constant 0 : i32
    %c0_i32_1 = arith.constant 0 : i32
    return %c0_i32, %c0_i32_0 : i32, i32
  }
  func.func @transform_2(%arg0: i32) -> (i32, i32) {
    %c0_i32 = arith.constant 0 : i32
    %c0_i32_0 = arith.constant 0 : i32
    %c0_i32_1 = arith.constant 0 : i32
    return %c0_i32, %c0_i32_0 : i32, i32
  }
  func.func @transform_3(%arg0: i32) -> (i32, i32) {
    %c0_i32 = arith.constant 0 : i32
    %c0_i32_0 = arith.constant 0 : i32
    %c0_i32_1 = arith.constant 0 : i32
    return %c0_i32, %c0_i32_0 : i32, i32
  }
  func.func @transform_4(%arg0: i32) -> (i32, i32) {
    %c0_i32 = arith.constant 0 : i32
    %c0_i32_0 = arith.constant 0 : i32
    %c0_i32_1 = arith.constant 0 : i32
    return %c0_i32, %c0_i32_0 : i32, i32
  }
  func.func @transform_5(%arg0: i32) -> (i32, i32) {
    %c0_i32 = arith.constant 0 : i32
    %c0_i32_0 = arith.constant 0 : i32
    %c0_i32_1 = arith.constant 0 : i32
    return %c0_i32, %c0_i32_0 : i32, i32
  }
  func.func @transform_6(%arg0: i32) -> (i32, i32) {
    %c0_i32 = arith.constant 0 : i32
    %c0_i32_0 = arith.constant 0 : i32
    %c0_i32_1 = arith.constant 0 : i32
    return %c0_i32, %c0_i32_0 : i32, i32
  }
  func.func @transform_7(%arg0: i32) -> (i32, i32) {
    %c0_i32 = arith.constant 0 : i32
    %c0_i32_0 = arith.constant 0 : i32
    %c0_i32_1 = arith.constant 0 : i32
    return %c0_i32, %c0_i32_0 : i32, i32
  }
  func.func @transform_8(%arg0: i32) -> (i32, i32) {
    %c0_i32 = arith.constant 0 : i32
    %c0_i32_0 = arith.constant 0 : i32
    %c0_i32_1 = arith.constant 0 : i32
    return %c0_i32, %c0_i32_0 : i32, i32
  }
  func.func @transform_9(%arg0: i32) -> (i32, i32) {
    %c0_i32 = arith.constant 0 : i32
    %c0_i32_0 = arith.constant 0 : i32
    %c0_i32_1 = arith.constant 0 : i32
    return %c0_i32, %c0_i32_0 : i32, i32
  }
  func.func @transform_10(%arg0: i32) -> (i32, i32) {
    %c0_i32 = arith.constant 0 : i32
    %c0_i32_0 = arith.constant 0 : i32
    %c0_i32_1 = arith.constant 0 : i32
    return %c0_i32, %c0_i32_0 : i32, i32
  }
  func.func @transform_11(%arg0: i32) -> (i32, i32) {
    %c0_i32 = arith.constant 0 : i32
    %c0_i32_0 = arith.constant 0 : i32
    %c0_i32_1 = arith.constant 0 : i32
    return %c0_i32, %c0_i32_0 : i32, i32
  }
  func.func @transform_12(%arg0: i32) -> (i32, i32) {
    %c0_i32 = arith.constant 0 : i32
    %c0_i32_0 = arith.constant 0 : i32
    %c0_i32_1 = arith.constant 0 : i32
    return %c0_i32, %c0_i32_0 : i32, i32
  }
  func.func @transform_13(%arg0: i32) -> (i32, i32) {
    %c0_i32 = arith.constant 0 : i32
    %c0_i32_0 = arith.constant 0 : i32
    %c0_i32_1 = arith.constant 0 : i32
    return %c0_i32, %c0_i32_0 : i32, i32
  }
  func.func @transform_14(%arg0: i32) -> (i32, i32) {
    %c0_i32 = arith.constant 0 : i32
    %c0_i32_0 = arith.constant 0 : i32
    %c0_i32_1 = arith.constant 0 : i32
    return %c0_i32, %c0_i32_0 : i32, i32
  }
  func.func @transform_15(%arg0: i32) -> (i32, i32) {
    %c0_i32 = arith.constant 0 : i32
    %c0_i32_0 = arith.constant 0 : i32
    %c0_i32_1 = arith.constant 0 : i32
    return %c0_i32, %c0_i32_0 : i32, i32
  }
  func.func @transform_16(%arg0: i32) -> (i32, i32) {
    %c0_i32 = arith.constant 0 : i32
    %c0_i32_0 = arith.constant 0 : i32
    %c0_i32_1 = arith.constant 0 : i32
    return %c0_i32, %c0_i32_0 : i32, i32
  }
  func.func @transform_17(%arg0: i32) -> (i32, i32) {
    %c0_i32 = arith.constant 0 : i32
    %c0_i32_0 = arith.constant 0 : i32
    %c0_i32_1 = arith.constant 0 : i32
    return %c0_i32, %c0_i32_0 : i32, i32
  }
  func.func @transform_18(%arg0: i32) -> (i32, i32) {
    %c0_i32 = arith.constant 0 : i32
    %c0_i32_0 = arith.constant 0 : i32
    %c0_i32_1 = arith.constant 0 : i32
    return %c0_i32, %c0_i32_0 : i32, i32
  }
}

</mosaic_0001>

<llo_original>
// kernel: transformer_entity_regressor.1
$region0: #{transformer_entity_regressor.1}
  #allocation0 [shape = 'u32[]', space=smem, size = 0x4, offset = 0x4, fixed_abs, tag = 'smem constant byte address 0x4 - core index']
  #allocation1 [shape = 'u32[72,128]{1,0:T(1,128)}', space=vmem, size = 0x9000, scoped, tag = 'internal scratch']
  %s0 = inlined_call_operand.vmem [shape: s32[64,1], index: 0, kind: input, shape index: {}]
  %s1 = inlined_call_operand.vmem [shape: s32[8,1], index: 1, kind: input, shape index: {}]
  %s2 = inlined_call_operand.vmem [shape: s32[8,1], index: 2, kind: input, shape index: {}]
  %s3 = inlined_call_operand.hbm [shape: s32[8,8], index: 3, kind: input, shape index: {}]
  %s4 = inlined_call_operand.vmem [shape: f32[128,32], index: 4, kind: input, shape index: {}]
  %s5 = inlined_call_operand.hbm [shape: f32[8,32], index: 5, kind: input, shape index: {}]
  %s6 = inlined_call_operand.vmem [shape: f32[16,16], index: 6, kind: input, shape index: {}]
  %s7 = inlined_call_operand.vmem [shape: bf16[32,32], index: 7, kind: input, shape index: {}]
  %s8 = inlined_call_operand.vmem [shape: bf16[32,64], index: 8, kind: input, shape index: {}]
  %s9 = inlined_call_operand.hbm [shape: bf16[32,32], index: 9, kind: input, shape index: {}]
  %s10 = inlined_call_operand.hbm [shape: bf16[32,128], index: 10, kind: input, shape index: {}]
  %s11 = inlined_call_operand.vmem [shape: bf16[128,32], index: 11, kind: input, shape index: {}]
  %s12 = inlined_call_operand.hbm [shape: f32[12,128], index: 12, kind: input, shape index: {}]
  %s13 = inlined_call_operand.vmem [shape: bf16[32,512], index: 13, kind: input, shape index: {}]
  %s14 = inlined_call_operand.vmem [shape: bf16[16,512], index: 14, kind: input, shape index: {}]
  %s15 = inlined_call_operand.hbm [shape: bf16[512,256], index: 15, kind: input, shape index: {}]
  %s16 = inlined_call_operand.vmem [shape: bf16[256,128], index: 16, kind: input, shape index: {}]
  %s17 = inlined_call_operand.hbm [shape: f32[3,512], index: 17, kind: input, shape index: {}]
  %s18 = inlined_call_operand.vmem [shape: f32[8,128], index: 18, kind: output, shape index: {}]
  %s19 = sld [smem:[#allocation0]]
  $region110: #{transformer_entity_regressor.1} parent=0
    _
  %s21 = ssub.s32 1, %s19
  %s22 = scalar_select 0, %s21, %s19
  $region1: #{transformer_entity_regressor.1} parent=0
    #allocation2 [shape = 'u8[4096]{0}', space=vmem, size = 0x1000, scoped, tag = 'input window, operand 3, single buffered']
    #allocation3 [shape = 's32[1]{0}', space=sflag, size = 0x4, scoped, tag = 'scoped memory for transformer_entity_regressor.1']
    #allocation4 [shape = 'u8[4096]{0}', space=vmem, size = 0x1000, scoped, tag = 'input window, operand 5, single buffered']
    #allocation5 [shape = 's32[1]{0}', space=sflag, size = 0x4, scoped, tag = 'scoped memory for transformer_entity_regressor.1']
    #allocation6 [shape = 'u8[8192]{0}', space=vmem, size = 0x2000, scoped, tag = 'input window, operand 9, single buffered']
    #allocation7 [shape = 'u8[8192]{0}', space=vmem, size = 0x2000, scoped, tag = 'input window, operand 10, single buffered']
    #allocation8 [shape = 's32[1]{0}', space=sflag, size = 0x4, scoped, tag = 'scoped memory for transformer_entity_regressor.1']
    #allocation9 [shape = 'u8[8192]{0}', space=vmem, size = 0x2000, scoped, tag = 'input window, operand 12, single buffered']
    #allocation10 [shape = 'u8[262144]{0}', space=vmem, size = 0x40000, scoped, tag = 'input window, operand 15, single buffered']
    #allocation11 [shape = 's32[1]{0}', space=sflag, size = 0x4, scoped, tag = 'scoped memory for transformer_entity_regressor.1']
    #allocation12 [shape = 'u8[8192]{0}', space=vmem, size = 0x2000, scoped, tag = 'input window, operand 17, single buffered']
    %23 = vsyncpa [#allocation3], 0
    %24 = vsyncpa [#allocation5], 0
    %25 = vsyncpa [#allocation8], 0
    %26 = vsyncpa [#allocation11], 0
    // Predicated region
    $region2: #{transformer_entity_regressor.1} parent=1 // pred_check
      _
    $region3: #{transformer_entity_regressor.1} parent=1 // pred_check_branch
      %28 = sbr.rel (0) target = $region5
    $region4: #{transformer_entity_regressor.1} parent=1 // pred_region
      _
    $region5: #{transformer_entity_regressor.1} parent=1 // pred_fallthru
      _
    // Predicated region
    $region6: #{transformer_entity_regressor.1} parent=1 // pred_check
      _
    $region7: #{transformer_entity_regressor.1} parent=1 // pred_check_branch
      %30 = sbr.rel (0) target = $region9
    $region8: #{transformer_entity_regressor.1} parent=1 // pred_region
      _
    $region9: #{transformer_entity_regressor.1} parent=1 // pred_fallthru
      _
    // Predicated region
    $region10: #{transformer_entity_regressor.1} parent=1 // pred_check
      _
    $region11: #{transformer_entity_regressor.1} parent=1 // pred_check_branch
      %32 = sbr.rel (0) target = $region13
    $region12: #{transformer_entity_regressor.1} parent=1 // pred_region
      _
    $region13: #{transformer_entity_regressor.1} parent=1 // pred_fallthru
      _
    // Predicated region
    $region14: #{transformer_entity_regressor.1} parent=1 // pred_check
      _
    $region15: #{transformer_entity_regressor.1} parent=1 // pred_check_branch
      %34 = sbr.rel (0) target = $region17
    $region16: #{transformer_entity_regressor.1} parent=1 // pred_region
      %36 = vsyncadd [#allocation3], 0
      %s38 = sshll.u32 %s3, 4
      %s39 = int_to_ptr.hbm [resolvable:$true] %s38
      %s40 = sshll.u32 [#allocation2], 4
      %s41 = int_to_ptr.vmem [resolvable:$true] %s40
      %43 = dma.hbm_to_vmem [thread:$0]  %s39, 128, %s41, [#allocation3]
    $region17: #{transformer_entity_regressor.1} parent=1 // pred_fallthru
      _
    // Predicated region
    $region18: #{transformer_entity_regressor.1} parent=1 // pred_check
      _
    $region19: #{transformer_entity_regressor.1} parent=1 // pred_check_branch
      %45 = sbr.rel (0) target = $region21
    $region20: #{transformer_entity_regressor.1} parent=1 // pred_region
      _
    $region21: #{transformer_entity_regressor.1} parent=1 // pred_fallthru
      _
    // Predicated region
    $region22: #{transformer_entity_regressor.1} parent=1 // pred_check
      _
    $region23: #{transformer_entity_regressor.1} parent=1 // pred_check_branch
      %47 = sbr.rel (0) target = $region25
    $region24: #{transformer_entity_regressor.1} parent=1 // pred_region
      %49 = vsyncadd [#allocation5], 0
      %s51 = sshll.u32 %s5, 4
      %s52 = int_to_ptr.hbm [resolvable:$true] %s51
      %s53 = sshll.u32 [#allocation4], 4
      %s54 = int_to_ptr.vmem [resolvable:$true] %s53
      %56 = dma.hbm_to_vmem [thread:$0]  %s52, 128, %s54, [#allocation5]
    $region25: #{transformer_entity_regressor.1} parent=1 // pred_fallthru
      _
    // Predicated region
    $region26: #{transformer_entity_regressor.1} parent=1 // pred_check
      _
    $region27: #{transformer_entity_regressor.1} parent=1 // pred_check_branch
      %58 = sbr.rel (0) target = $region29
    $region28: #{transformer_entity_regressor.1} parent=1 // pred_region
      _
    $region29: #{transformer_entity_regressor.1} parent=1 // pred_fallthru
      _
    // Predicated region
    $region30: #{transformer_entity_regressor.1} parent=1 // pred_check
      _
    $region31: #{transformer_entity_regressor.1} parent=1 // pred_check_branch
      %60 = sbr.rel (0) target = $region33
    $region32: #{transformer_entity_regressor.1} parent=1 // pred_region
      _
    $region33: #{transformer_entity_regressor.1} parent=1 // pred_fallthru
      _
    // Predicated region
    $region34: #{transformer_entity_regressor.1} parent=1 // pred_check
      _
    $region35: #{transformer_entity_regressor.1} parent=1 // pred_check_branch
      %62 = sbr.rel (0) target = $region37
    $region36: #{transformer_entity_regressor.1} parent=1 // pred_region
      _
    $region37: #{transformer_entity_regressor.1} parent=1 // pred_fallthru
      _
    // Predicated region
    $region38: #{transformer_entity_regressor.1} parent=1 // pred_check
      _
    $region39: #{transformer_entity_regressor.1} parent=1 // pred_check_branch
      %64 = sbr.rel (0) target = $region41
    $region40: #{transformer_entity_regressor.1} parent=1 // pred_region
      %66 = vsyncadd [#allocation5], 0
      %s67 = sshll.u32 %s9, 4
      %s68 = int_to_ptr.hbm [resolvable:$true] %s67
      %s69 = sshll.u32 [#allocation6], 4
      %s70 = int_to_ptr.vmem [resolvable:$true] %s69
      %75 = dma.hbm_to_vmem [thread:$0]  %s68, 256, %s70, [#allocation5], 64, 64, 4
    $region41: #{transformer_entity_regressor.1} parent=1 // pred_fallthru
      _
    // Predicated region
    $region42: #{transformer_entity_regressor.1} parent=1 // pred_check
      _
    $region43: #{transformer_entity_regressor.1} parent=1 // pred_check_branch
      %77 = sbr.rel (0) target = $region45
    $region44: #{transformer_entity_regressor.1} parent=1 // pred_region
      %79 = vsyncadd [#allocation8], 0
      %s80 = sshll.u32 %s10, 4
      %s81 = int_to_ptr.hbm [resolvable:$true] %s80
      %s82 = sshll.u32 [#allocation7], 4
      %s83 = int_to_ptr.vmem [resolvable:$true] %s82
      %88 = dma.hbm_to_vmem [thread:$0]  %s81, 256, %s83, [#allocation8], 64, 64, 4
    $region45: #{transformer_entity_regressor.1} parent=1 // pred_fallthru
      _
    // Predicated region
    $region46: #{transformer_entity_regressor.1} parent=1 // pred_check
      _
    $region47: #{transformer_entity_regressor.1} parent=1 // pred_check_branch
      %90 = sbr.rel (0) target = $region49
    $region48: #{transformer_entity_regressor.1} parent=1 // pred_region
      _
    $region49: #{transformer_entity_regressor.1} parent=1 // pred_fallthru
      _
    // Predicated region
    $region50: #{transformer_entity_regressor.1} parent=1 // pred_check
      _
    $region51: #{transformer_entity_regressor.1} parent=1 // pred_check_branch
      %92 = sbr.rel (0) target = $region53
    $region52: #{transformer_entity_regressor.1} parent=1 // pred_region
      %94 = vsyncadd [#allocation8], 0
      %s95 = sshll.u32 %s12, 4
      %s96 = int_to_ptr.hbm [resolvable:$true] %s95
      %s97 = sshll.u32 [#allocation9], 4
      %s98 = int_to_ptr.vmem [resolvable:$true] %s97
      %103 = dma.hbm_to_vmem [thread:$0]  %s96, 256, %s98, [#allocation8], 128, 128, 8
    $region53: #{transformer_entity_regressor.1} parent=1 // pred_fallthru
      _
    // Predicated region
    $region54: #{transformer_entity_regressor.1} parent=1 // pred_check
      _
    $region55: #{transformer_entity_regressor.1} parent=1 // pred_check_branch
      %105 = sbr.rel (0) target = $region57
    $region56: #{transformer_entity_regressor.1} parent=1 // pred_region
      _
    $region57: #{transformer_entity_regressor.1} parent=1 // pred_fallthru
      _
    // Predicated region
    $region58: #{transformer_entity_regressor.1} parent=1 // pred_check
      _
    $region59: #{transformer_entity_regressor.1} parent=1 // pred_check_branch
      %107 = sbr.rel (0) target = $region61
    $region60: #{transformer_entity_regressor.1} parent=1 // pred_region
      _
    $region61: #{transformer_entity_regressor.1} parent=1 // pred_fallthru
      _
    // Predicated region
    $region62: #{transformer_entity_regressor.1} parent=1 // pred_check
      _
    $region63: #{transformer_entity_regressor.1} parent=1 // pred_check_branch
      %109 = sbr.rel (0) target = $region65
    $region64: #{transformer_entity_regressor.1} parent=1 // pred_region
      %111 = vsyncadd [#allocation11], 0
      %s112 = sshll.u32 %s15, 4
      %s113 = int_to_ptr.hbm [resolvable:$true] %s112
      %s114 = sshll.u32 [#allocation10], 4
      %s115 = int_to_ptr.vmem [resolvable:$true] %s114
      %120 = dma.hbm_to_vmem [thread:$0]  %s113, 8192, %s115, [#allocation11], 128, 128, 8
    $region65: #{transformer_entity_regressor.1} parent=1 // pred_fallthru
      _
    // Predicated region
    $region66: #{transformer_entity_regressor.1} parent=1 // pred_check
      _
    $region67: #{transformer_entity_regressor.1} parent=1 // pred_check_branch
      %122 = sbr.rel (0) target = $region69
    $region68: #{transformer_entity_regressor.1} parent=1 // pred_region
      _
    $region69: #{transformer_entity_regressor.1} parent=1 // pred_fallthru
      _
    // Predicated region
    $region70: #{transformer_entity_regressor.1} parent=1 // pred_check
      _
    $region71: #{transformer_entity_regressor.1} parent=1 // pred_check_branch
      %124 = sbr.rel (0) target = $region73
    $region72: #{transformer_entity_regressor.1} parent=1 // pred_region
      %126 = vsyncadd [#allocation11], 0
      %s128 = sshll.u32 %s17, 4
      %s129 = int_to_ptr.hbm [resolvable:$true] %s128
      %s130 = sshll.u32 [#allocation12], 4
      %s131 = int_to_ptr.vmem [resolvable:$true] %s130
      %133 = dma.hbm_to_vmem [thread:$0]  %s129, 256, %s131, [#allocation11]
    $region73: #{transformer_entity_regressor.1} parent=1 // pred_fallthru
      _
    // Predicated region
    $region74: #{transformer_entity_regressor.1} parent=1 // pred_check
      _
    $region75: #{transformer_entity_regressor.1} parent=1 // pred_check_branch
      %135 = sbr.rel (0) target = $region77
    $region76: #{transformer_entity_regressor.1} parent=1 // pred_region
      %137 = dma.done [#allocation3], 128
    $region77: #{transformer_entity_regressor.1} parent=1 // pred_fallthru
      _
    // Predicated region
    $region78: #{transformer_entity_regressor.1} parent=1 // pred_check
      _
    $region79: #{transformer_entity_regressor.1} parent=1 // pred_check_branch
      %139 = sbr.rel (0) target = $region81
    $region80: #{transformer_entity_regressor.1} parent=1 // pred_region
      %141 = dma.done [#allocation5], 128
    $region81: #{transformer_entity_regressor.1} parent=1 // pred_fallthru
      _
    // Predicated region
    $region82: #{transformer_entity_regressor.1} parent=1 // pred_check
      _
    $region83: #{transformer_entity_regressor.1} parent=1 // pred_check_branch
      %143 = sbr.rel (0) target = $region85
    $region84: #{transformer_entity_regressor.1} parent=1 // pred_region
      %145 = dma.done [#allocation5], 256
    $region85: #{transformer_entity_regressor.1} parent=1 // pred_fallthru
      _
    // Predicated region
    $region86: #{transformer_entity_regressor.1} parent=1 // pred_check
      _
    $region87: #{transformer_entity_regressor.1} parent=1 // pred_check_branch
      %147 = sbr.rel (0) target = $region89
    $region88: #{transformer_entity_regressor.1} parent=1 // pred_region
      %149 = dma.done [#allocation8], 256
    $region89: #{transformer_entity_regressor.1} parent=1 // pred_fallthru
      _
    // Predicated region
    $region90: #{transformer_entity_regressor.1} parent=1 // pred_check
      _
    $region91: #{transformer_entity_regressor.1} parent=1 // pred_check_branch
      %151 = sbr.rel (0) target = $region93
    $region92: #{transformer_entity_regressor.1} parent=1 // pred_region
      %153 = dma.done [#allocation8], 256
    $region93: #{transformer_entity_regressor.1} parent=1 // pred_fallthru
      _
    // Predicated region
    $region94: #{transformer_entity_regressor.1} parent=1 // pred_check
      _
    $region95: #{transformer_entity_regressor.1} parent=1 // pred_check_branch
      %155 = sbr.rel (0) target = $region97
    $region96: #{transformer_entity_regressor.1} parent=1 // pred_region
      %157 = dma.done [#allocation11], 8192
    $region97: #{transformer_entity_regressor.1} parent=1 // pred_fallthru
      _
    // Predicated region
    $region98: #{transformer_entity_regressor.1} parent=1 // pred_check
      _
    $region99: #{transformer_entity_regressor.1} parent=1 // pred_check_branch
      %159 = sbr.rel (0) target = $region101
    $region100: #{transformer_entity_regressor.1} parent=1 // pred_region
      %161 = dma.done [#allocation11], 256
    $region101: #{transformer_entity_regressor.1} parent=1 // pred_fallthru
      _
    %v163 = vld [vmem:[#allocation9] sm:$0xff]
    %v164 = vld [vmem:[#allocation9 + $0x8] sm:$0xf]
    %v165 = vld [vmem:[%s4] sm:$0xff]
    %v166 = vld [vmem:[%s4 + $0x8] sm:$0xff]
    %v167 = vld [vmem:[%s4 + $0x10] sm:$0xff]
    %v168 = vld [vmem:[%s4 + $0x18] sm:$0xff]
    %v169 = vld [vmem:[%s4 + $0x20] sm:$0xff]
    %v170 = vld [vmem:[%s4 + $0x28] sm:$0xff]
    %v171 = vld [vmem:[%s4 + $0x30] sm:$0xff]
    %v172 = vld [vmem:[%s4 + $0x38] sm:$0xff]
    %v173 = vld [vmem:[%s4 + $0x40] sm:$0xff]
    %v174 = vld [vmem:[%s4 + $0x48] sm:$0xff]
    %v175 = vld [vmem:[%s4 + $0x50] sm:$0xff]
    %v176 = vld [vmem:[%s4 + $0x58] sm:$0xff]
    %v177 = vld [vmem:[%s4 + $0x60] sm:$0xff]
    %v178 = vld [vmem:[%s4 + $0x68] sm:$0xff]
    %v179 = vld [vmem:[%s4 + $0x70] sm:$0xff]
    %v180 = vld [vmem:[%s4 + $0x78] sm:$0xff]
    %v181 = vld [vmem:[#allocation4] sm:$0xff]
    %v182 = vlaneseq
    %v183 = vand.u32 %v182, 127
    %v184 = vld [vmem:[%s0] sm:$0xff]
    %v185 = vld [vmem:[%s0 + $0x8] sm:$0xff]
    %v186 = vld [vmem:[%s0 + $0x10] sm:$0xff]
    %v187 = vld [vmem:[%s0 + $0x18] sm:$0xff]
    %v188 = vld [vmem:[%s0 + $0x20] sm:$0xff]
    %v189 = vld [vmem:[%s0 + $0x28] sm:$0xff]
    %v190 = vld [vmem:[%s0 + $0x30] sm:$0xff]
    %v191 = vld [vmem:[%s0 + $0x38] sm:$0xff]
    %192 = vset.pattern.permute.xlu0 0
    %193 = vperm.xlu0 %192, %v184
    %v194 = vpop.permute.xlu0 %193
    %195 = vset.pattern.permute.xlu0 0
    %196 = vperm.xlu0 %195, %v185
    %v197 = vpop.permute.xlu0 %196
    %198 = vset.pattern.permute.xlu0 0
    %199 = vperm.xlu0 %198, %v186
    %v200 = vpop.permute.xlu0 %199
    %201 = vset.pattern.permute.xlu0 0
    %202 = vperm.xlu0 %201, %v187
    %v203 = vpop.permute.xlu0 %202
    %204 = vset.pattern.permute.xlu0 0
    %205 = vperm.xlu0 %204, %v188
    %v206 = vpop.permute.xlu0 %205
    %207 = vset.pattern.permute.xlu0 0
    %208 = vperm.xlu0 %207, %v189
    %v209 = vpop.permute.xlu0 %208
    %210 = vset.pattern.permute.xlu0 0
    %211 = vperm.xlu0 %210, %v190
    %v212 = vpop.permute.xlu0 %211
    %213 = vset.pattern.permute.xlu0 0
    %214 = vperm.xlu0 %213, %v191
    %v215 = vpop.permute.xlu0 %214
    %vm216 = vcmp.eq.s32.totalorder %v183, %v194
    %vm217 = vcmp.eq.s32.totalorder %v183, %v197
    %vm218 = vcmp.eq.s32.totalorder %v183, %v200
    %vm219 = vcmp.eq.s32.totalorder %v183, %v203
    %vm220 = vcmp.eq.s32.totalorder %v183, %v206
    %vm221 = vcmp.eq.s32.totalorder %v183, %v209
    %vm222 = vcmp.eq.s32.totalorder %v183, %v212
    %vm223 = vcmp.eq.s32.totalorder %v183, %v215
    %v224 = vsel %vm216, 1, 0
    %v225 = vsel %vm217, 1, 0
    %v226 = vsel %vm218, 1, 0
    %v227 = vsel %vm219, 1, 0
    %v228 = vsel %vm220, 1, 0
    %v229 = vsel %vm221, 1, 0
    %v230 = vsel %vm222, 1, 0
    %v231 = vsel %vm223, 1, 0
    %v232 = vcvt.s32.f32 %v224
    %v233 = vcvt.s32.f32 %v225
    %v234 = vcvt.s32.f32 %v226
    %v235 = vcvt.s32.f32 %v227
    %v236 = vcvt.s32.f32 %v228
    %v237 = vcvt.s32.f32 %v229
    %v238 = vcvt.s32.f32 %v230
    %v239 = vcvt.s32.f32 %v231
    %240 = vmatpush.msra.mxu0 %v180
    %241 = vmatpush.msra.mxu0 %v179
    %242 = vmatpush.msra.mxu0 %v178
    %243 = vmatpush.msra.mxu0 %v177
    %244 = vmatpush.msra.mxu0 %v176
    %245 = vmatpush.msra.mxu0 %v175
    %246 = vmatpush.msra.mxu0 %v174
    %247 = vmatpush.msra.mxu0 %v173
    %248 = vmatpush.msra.mxu0 %v172
    %249 = vmatpush.msra.mxu0 %v171
    %250 = vmatpush.msra.mxu0 %v170
    %251 = vmatpush.msra.mxu0 %v169
    %252 = vmatpush.msra.mxu0 %v168
    %253 = vmatpush.msra.mxu0 %v167
    %254 = vmatpush.msra.mxu0 %v166
    %255 = vmatpush.msra.mxu0 %v165
    %256 = vmatmul.f32.gmra.mxu0 %v232
    %v257 = vpop.f32.mrf.mxu0
    %v258 = vadd.f32 0.0, %v257
    %259 = vmatmul.f32.gmra.mxu0 %v233
    %v260 = vpop.f32.mrf.mxu0
    %v261 = vadd.f32 0.0, %v260
    %262 = vmatmul.f32.gmra.mxu0 %v234
    %v263 = vpop.f32.mrf.mxu0
    %v264 = vadd.f32 0.0, %v263
    %265 = vmatmul.f32.gmra.mxu0 %v235
    %v266 = vpop.f32.mrf.mxu0
    %v267 = vadd.f32 0.0, %v266
    %268 = vmatmul.f32.gmra.mxu0 %v236
    %v269 = vpop.f32.mrf.mxu0
    %v270 = vadd.f32 0.0, %v269
    %271 = vmatmul.f32.gmra.mxu0 %v237
    %v272 = vpop.f32.mrf.mxu0
    %v273 = vadd.f32 0.0, %v272
    %274 = vmatmul.f32.gmra.mxu0 %v238
    %v275 = vpop.f32.mrf.mxu0
    %v276 = vadd.f32 0.0, %v275
    %277 = vmatmul.f32.gmra.mxu0 %v239
    %v278 = vpop.f32.mrf.mxu0
    %v279 = vadd.f32 0.0, %v278
    %280 = vdwg.mxu0
    %v281 = vadd.f32 %v258, %v181
    %v282 = vadd.f32 %v261, %v181
    %v283 = vadd.f32 %v264, %v181
    %v284 = vadd.f32 %v267, %v181
    %v285 = vadd.f32 %v270, %v181
    %v286 = vadd.f32 %v273, %v181
    %v287 = vadd.f32 %v276, %v181
    %v288 = vadd.f32 %v279, %v181
    %v289 = vperm.slane %v164, 3
    %v290 = vadd.f32 %v281, %v289
    %v291 = vadd.f32 %v282, %v289
    %v292 = vadd.f32 %v283, %v289
    %v293 = vadd.f32 %v284, %v289
    %v294 = vadd.f32 %v285, %v289
    %v295 = vadd.f32 %v286, %v289
    %v296 = vadd.f32 %v287, %v289
    %v297 = vadd.f32 %v288, %v289
    %vm298 = vcmask 261120
    %v299 = vsel %vm298, %v290, 0.0
    %300 = vadd.xlane.f32.xlu0 %v299
    %v301 = vpop.xlane.xlu0 %300
    %v302 = vsel %vm298, %v291, 0.0
    %303 = vadd.xlane.f32.xlu0 %v302
    %v304 = vpop.xlane.xlu0 %303
    %v305 = vsel %vm298, %v292, 0.0
    %306 = vadd.xlane.f32.xlu0 %v305
    %v307 = vpop.xlane.xlu0 %306
    %v308 = vsel %vm298, %v293, 0.0
    %309 = vadd.xlane.f32.xlu0 %v308
    %v310 = vpop.xlane.xlu0 %309
    %v311 = vsel %vm298, %v294, 0.0
    %312 = vadd.xlane.f32.xlu0 %v311
    %v313 = vpop.xlane.xlu0 %312
    %v314 = vsel %vm298, %v295, 0.0
    %315 = vadd.xlane.f32.xlu0 %v314
    %v316 = vpop.xlane.xlu0 %315
    %v317 = vsel %vm298, %v296, 0.0
    %318 = vadd.xlane.f32.xlu0 %v317
    %v319 = vpop.xlane.xlu0 %318
    %v320 = vsel %vm298, %v297, 0.0
    %321 = vadd.xlane.f32.xlu0 %v320
    %v322 = vpop.xlane.xlu0 %321
    %v323 = vrcp.pop 32.0
    %v324 = vmul.f32 32.0, %v323
    %v325 = vsub.f32 1.0, %v324
    %v326 = vmul.f32 %v323, %v325
    %v327 = vadd.f32 %v323, %v326
    %vm328 = vweird.f32 %v323
    %v329 = vsel %vm328, %v323, %v327
    %v330 = vmul.f32 %v301, %v329
    %v331 = vmul.f32 %v304, %v329
    %v332 = vmul.f32 %v307, %v329
    %v333 = vmul.f32 %v310, %v329
    %v334 = vmul.f32 %v313, %v329
    %v335 = vmul.f32 %v316, %v329
    %v336 = vmul.f32 %v319, %v329
    %v337 = vmul.f32 %v322, %v329
    %v338 = vsub.f32 %v290, %v330
    %v339 = vsub.f32 %v291, %v331
    %v340 = vsub.f32 %v292, %v332
    %v341 = vsub.f32 %v293, %v333
    %v342 = vsub.f32 %v294, %v334
    %v343 = vsub.f32 %v295, %v335
    %v344 = vsub.f32 %v296, %v336
    %v345 = vsub.f32 %v297, %v337
    %v346 = vmul.f32 %v338, %v338
    %v347 = vmul.f32 %v339, %v339
    %v348 = vmul.f32 %v340, %v340
    %v349 = vmul.f32 %v341, %v341
    %v350 = vmul.f32 %v342, %v342
    %v351 = vmul.f32 %v343, %v343
    %v352 = vmul.f32 %v344, %v344
    %v353 = vmul.f32 %v345, %v345
    %v354 = vsel %vm298, %v346, 0.0
    %355 = vadd.xlane.f32.xlu0 %v354
    %v356 = vpop.xlane.xlu0 %355
    %v357 = vsel %vm298, %v347, 0.0
    %358 = vadd.xlane.f32.xlu0 %v357
    %v359 = vpop.xlane.xlu0 %358
    %v360 = vsel %vm298, %v348, 0.0
    %361 = vadd.xlane.f32.xlu0 %v360
    %v362 = vpop.xlane.xlu0 %361
    %v363 = vsel %vm298, %v349, 0.0
    %364 = vadd.xlane.f32.xlu0 %v363
    %v365 = vpop.xlane.xlu0 %364
    %v366 = vsel %vm298, %v350, 0.0
    %367 = vadd.xlane.f32.xlu0 %v366
    %v368 = vpop.xlane.xlu0 %367
    %v369 = vsel %vm298, %v351, 0.0
    %370 = vadd.xlane.f32.xlu0 %v369
    %v371 = vpop.xlane.xlu0 %370
    %v372 = vsel %vm298, %v352, 0.0
    %373 = vadd.xlane.f32.xlu0 %v372
    %v374 = vpop.xlane.xlu0 %373
    %v375 = vsel %vm298, %v353, 0.0
    %376 = vadd.xlane.f32.xlu0 %v375
    %v377 = vpop.xlane.xlu0 %376
    %v378 = vmul.f32 %v356, %v329
    %v379 = vmul.f32 %v359, %v329
    %v380 = vmul.f32 %v362, %v329
    %v381 = vmul.f32 %v365, %v329
    %v382 = vmul.f32 %v368, %v329
    %v383 = vmul.f32 %v371, %v329
    %v384 = vmul.f32 %v374, %v329
    %v385 = vmul.f32 %v377, %v329
    %v386 = vadd.f32 %v378, 1e-12
    %v387 = vadd.f32 %v379, 1e-12
    %v388 = vadd.f32 %v380, 1e-12
    %v389 = vadd.f32 %v381, 1e-12
    %v390 = vadd.f32 %v382, 1e-12
    %v391 = vadd.f32 %v383, 1e-12
    %v392 = vadd.f32 %v384, 1e-12
    %v393 = vadd.f32 %v385, 1e-12
    %v394 = vrsqrt.pop %v386
    %v395 = vmul.f32 %v394, %v386
    %v396 = vmul.f32 %v395, %v394
    %v397 = vmul.f32 0.5, %v396
    %v398 = vsub.f32 1.5, %v397
    %v399 = vmul.f32 %v394, %v398
    %vm400 = vweird.f32 %v386
    %vm401 = vweird.f32 %v394
    %vm402 = vmor %vm400, %vm401
    %v403 = vsel %vm402, %v394, %v399
    %v404 = vrsqrt.pop %v387
    %v405 = vmul.f32 %v404, %v387
    %v406 = vmul.f32 %v405, %v404
    %v407 = vmul.f32 0.5, %v406
    %v408 = vsub.f32 1.5, %v407
    %v409 = vmul.f32 %v404, %v408
    %vm410 = vweird.f32 %v387
    %vm411 = vweird.f32 %v404
    %vm412 = vmor %vm410, %vm411
    %v413 = vsel %vm412, %v404, %v409
    %v414 = vrsqrt.pop %v388
    %v415 = vmul.f32 %v414, %v388
    %v416 = vmul.f32 %v415, %v414
    %v417 = vmul.f32 0.5, %v416
    %v418 = vsub.f32 1.5, %v417
    %v419 = vmul.f32 %v414, %v418
    %vm420 = vweird.f32 %v388
    %vm421 = vweird.f32 %v414
    %vm422 = vmor %vm420, %vm421
    %v423 = vsel %vm422, %v414, %v419
    %v424 = vrsqrt.pop %v389
    %v425 = vmul.f32 %v424, %v389
    %v426 = vmul.f32 %v425, %v424
    %v427 = vmul.f32 0.5, %v426
    %v428 = vsub.f32 1.5, %v427
    %v429 = vmul.f32 %v424, %v428
    %vm430 = vweird.f32 %v389
    %vm431 = vweird.f32 %v424
    %vm432 = vmor %vm430, %vm431
    %v433 = vsel %vm432, %v424, %v429
    %v434 = vrsqrt.pop %v390
    %v435 = vmul.f32 %v434, %v390
    %v436 = vmul.f32 %v435, %v434
    %v437 = vmul.f32 0.5, %v436
    %v438 = vsub.f32 1.5, %v437
    %v439 = vmul.f32 %v434, %v438
    %vm440 = vweird.f32 %v390
    %vm441 = vweird.f32 %v434
    %vm442 = vmor %vm440, %vm441
    %v443 = vsel %vm442, %v434, %v439
    %v444 = vrsqrt.pop %v391
    %v445 = vmul.f32 %v444, %v391
    %v446 = vmul.f32 %v445, %v444
    %v447 = vmul.f32 0.5, %v446
    %v448 = vsub.f32 1.5, %v447
    %v449 = vmul.f32 %v444, %v448
    %vm450 = vweird.f32 %v391
    %vm451 = vweird.f32 %v444
    %vm452 = vmor %vm450, %vm451
    %v453 = vsel %vm452, %v444, %v449
    %v454 = vrsqrt.pop %v392
    %v455 = vmul.f32 %v454, %v392
    %v456 = vmul.f32 %v455, %v454
    %v457 = vmul.f32 0.5, %v456
    %v458 = vsub.f32 1.5, %v457
    %v459 = vmul.f32 %v454, %v458
    %vm460 = vweird.f32 %v392
    %vm461 = vweird.f32 %v454
    %vm462 = vmor %vm460, %vm461
    %v463 = vsel %vm462, %v454, %v459
    %v464 = vrsqrt.pop %v393
    %v465 = vmul.f32 %v464, %v393
    %v466 = vmul.f32 %v465, %v464
    %v467 = vmul.f32 0.5, %v466
    %v468 = vsub.f32 1.5, %v467
    %v469 = vmul.f32 %v464, %v468
    %vm470 = vweird.f32 %v393
    %vm471 = vweird.f32 %v464
    %vm472 = vmor %vm470, %vm471
    %v473 = vsel %vm472, %v464, %v469
    %v474 = vmul.f32 %v338, %v403
    %v475 = vmul.f32 %v339, %v413
    %v476 = vmul.f32 %v340, %v423
    %v477 = vmul.f32 %v341, %v433
    %v478 = vmul.f32 %v342, %v443
    %v479 = vmul.f32 %v343, %v453
    %v480 = vmul.f32 %v344, %v463
    %v481 = vmul.f32 %v345, %v473
    %v482 = vperm.slane %v164, 1
    %v483 = vmul.f32 %v474, %v482
    %v484 = vmul.f32 %v475, %v482
    %v485 = vmul.f32 %v476, %v482
    %v486 = vmul.f32 %v477, %v482
    %v487 = vmul.f32 %v478, %v482
    %v488 = vmul.f32 %v479, %v482
    %v489 = vmul.f32 %v480, %v482
    %v490 = vmul.f32 %v481, %v482
    %v491 = vperm.slane %v164, 2
    %v492 = vadd.f32 %v483, %v491
    %v493 = vadd.f32 %v484, %v491
    %v494 = vadd.f32 %v485, %v491
    %v495 = vadd.f32 %v486, %v491
    %v496 = vadd.f32 %v487, %v491
    %v497 = vadd.f32 %v488, %v491
    %v498 = vadd.f32 %v489, %v491
    %v499 = vadd.f32 %v490, %v491
    %v500 = vld [vmem:[%s1] sm:$0xff]
    %501 = vset.pattern.permute.xlu0 0
    %502 = vperm.xlu0 %501, %v500
    %v503 = vpop.permute.xlu0 %502
    %vm504 = vcmp.eq.s32.totalorder %v183, %v503
    %v505 = vsel %vm504, 1, 0
    %v506 = vcvt.s32.f32 %v505
    %v507 = vperm.slane %v181, 0
    %508 = vmatpush.msra.mxu0 %v180
    %509 = vmatpush.msra.mxu0 %v179
    %510 = vmatpush.msra.mxu0 %v178
    %511 = vmatpush.msra.mxu0 %v177
    %512 = vmatpush.msra.mxu0 %v176
    %513 = vmatpush.msra.mxu0 %v175
    %514 = vmatpush.msra.mxu0 %v174
    %515 = vmatpush.msra.mxu0 %v173
    %516 = vmatpush.msra.mxu0 %v172
    %517 = vmatpush.msra.mxu0 %v171
    %518 = vmatpush.msra.mxu0 %v170
    %519 = vmatpush.msra.mxu0 %v169
    %520 = vmatpush.msra.mxu0 %v168
    %521 = vmatpush.msra.mxu0 %v167
    %522 = vmatpush.msra.mxu0 %v166
    %523 = vmatpush.msra.mxu0 %v165
    %524 = vmatmul.f32.gmra.mxu0 %v506
    %v525 = vpop.f32.mrf.mxu0
    %v526 = vadd.f32 %v507, %v525
    %527 = vdwg.mxu0
    %v528 = vadd.f32 %v526, %v289
    %v529 = vsel %vm298, %v528, 0.0
    %530 = vadd.xlane.f32.xlu0 %v529
    %v531 = vpop.xlane.xlu0 %530
    %v532 = vmul.f32 %v531, %v329
    %v533 = vsub.f32 %v528, %v532
    %v534 = vmul.f32 %v533, %v533
    %v535 = vsel %vm298, %v534, 0.0
    %536 = vadd.xlane.f32.xlu0 %v535
    %v537 = vpop.xlane.xlu0 %536
    %v538 = vmul.f32 %v537, %v329
    %v539 = vadd.f32 %v538, 1e-12
    %v540 = vrsqrt.pop %v539
    %v541 = vmul.f32 %v540, %v539
    %v542 = vmul.f32 %v541, %v540
    %v543 = vmul.f32 0.5, %v542
    %v544 = vsub.f32 1.5, %v543
    %v545 = vmul.f32 %v540, %v544
    %vm546 = vweird.f32 %v539
    %vm547 = vweird.f32 %v540
    %vm548 = vmor %vm546, %vm547
    %v549 = vsel %vm548, %v540, %v545
    %v550 = vmul.f32 %v533, %v549
    %v551 = vmul.f32 %v550, %v482
    %v552 = vadd.f32 %v551, %v491
    %v553 = vpack.c.bf16 %v493, %v492
    %v554 = vpack.c.bf16 %v495, %v494
    %v555 = vpack.c.bf16 %v497, %v496
    %v556 = vpack.c.bf16 %v499, %v498
    %v557 = vld [vmem:[%s8] sm:$0xf]
    %v558 = vld [vmem:[%s8 + $0x4] sm:$0xf]
    %v559 = vld [vmem:[%s8 + $0x8] sm:$0xf]
    %v560 = vld [vmem:[%s8 + $0xc] sm:$0xf]
    %v561 = vperm.slane %v163, 1
    %v566 = vunpack.c.l.b16 %v557
    %v567 = vunpack.c.l.b16 %v558
    %v568 = vunpack.c.l.b16 %v559
    %v569 = vunpack.c.l.b16 %v560
    %v570 = vpack.c.b16 %v567, %v566
    %v571 = vpack.c.b16 %v569, %v568
    %v575 = vsel %vm298, %v553, 0
    %v578 = vsel %vm298, %v554, 0
    %v581 = vsel %vm298, %v555, 0
    %v584 = vsel %vm298, %v556, 0
    %586 = vmatpush.bf16.msra.mxu0 0
    %587 = vmatpush.bf16.msra.mxu0 0
    %588 = vmatpush.bf16.msra.mxu0 0
    %589 = vmatpush.bf16.msra.mxu0 0
    %590 = vmatpush.bf16.msra.mxu0 0
    %591 = vmatpush.bf16.msra.mxu0 0
    %592 = vmatpush.bf16.msra.mxu0 %v571
    %593 = vmatpush.bf16.msra.mxu0 %v570
    %594 = vmatmul.bf16.gmra.mxu0 %v575
    %v595 = vpop.f32.mrf.mxu0
    %v596 = vadd.f32 %v561, %v595
    %v597 = vpop.f32.mrf.mxu0
    %v598 = vadd.f32 %v561, %v597
    %599 = vmatmul.bf16.gmra.mxu0 %v578
    %v600 = vpop.f32.mrf.mxu0
    %v601 = vadd.f32 %v561, %v600
    %v602 = vpop.f32.mrf.mxu0
    %v603 = vadd.f32 %v561, %v602
    %604 = vmatmul.bf16.gmra.mxu0 %v581
    %v605 = vpop.f32.mrf.mxu0
    %v606 = vadd.f32 %v561, %v605
    %v607 = vpop.f32.mrf.mxu0
    %v608 = vadd.f32 %v561, %v607
    %609 = vmatmul.bf16.gmra.mxu0 %v584
    %v610 = vpop.f32.mrf.mxu0
    %v611 = vadd.f32 %v561, %v610
    %v612 = vpop.f32.mrf.mxu0
    %v613 = vadd.f32 %v561, %v612
    %614 = vdwg.mxu0
    %v615 = vpack.c.bf16 %v596, %v596
    %v616 = vpack.c.bf16 %v598, %v598
    %v617 = vpack.c.bf16 %v601, %v601
    %v618 = vpack.c.bf16 %v603, %v603
    %v619 = vpack.c.bf16 %v606, %v606
    %v620 = vpack.c.bf16 %v608, %v608
    %v621 = vpack.c.bf16 %v611, %v611
    %v622 = vpack.c.bf16 %v613, %v613
    %v623 = vpack.c.bf16 %v552, %v552
    %v624 = vld [vmem:[%s7] sm:$0xf]
    %v625 = vld [vmem:[%s7 + $0x4] sm:$0xf]
    %v626 = vld [vmem:[%s7 + $0x8] sm:$0xf]
    %v627 = vld [vmem:[%s7 + $0xc] sm:$0xf]
    %v628 = vperm.slane %v163, 0
    %v633 = vunpack.c.l.b16 %v624
    %v634 = vunpack.c.l.b16 %v625
    %v635 = vunpack.c.l.b16 %v626
    %v636 = vunpack.c.l.b16 %v627
    %v637 = vpack.c.b16 %v634, %v633
    %v638 = vpack.c.b16 %v636, %v635
    %v642 = vsel %vm298, %v623, 0
    %644 = vmatpush.bf16.msra.mxu0 0
    %645 = vmatpush.bf16.msra.mxu0 0
    %646 = vmatpush.bf16.msra.mxu0 0
    %647 = vmatpush.bf16.msra.mxu0 0
    %648 = vmatpush.bf16.msra.mxu0 0
    %649 = vmatpush.bf16.msra.mxu0 0
    %650 = vmatpush.bf16.msra.mxu0 %v638
    %651 = vmatpush.bf16.msra.mxu0 %v637
    %652 = vmatmul.bf16.gmra.mxu0 %v642
    %v653 = vpop.f32.mrf.mxu0
    %v654 = vadd.f32 %v628, %v653
    %v655 = vpop.f32.mrf.mxu0
    %656 = vdwg.mxu0
    %v657 = vpack.c.bf16 %v654, %v654
    %v659 = vrot.slane %v657, 3
    %vm660 = vcmask 1040384
    %v663 = vsel %vm660, %v657, %v659
    %vm665 = vcmask 1041409
    %v666 = vsel %vm665, %v657, %v659
    %v668 = vrot.slane %v666, 1
    %vm669 = vcmask 1042434
    %v670 = vsel %vm669, %v657, %v659
    %v672 = vrot.slane %v670, 2
    %vm673 = vcmask 1043459
    %v674 = vsel %vm673, %v657, %v659
    %v676 = vrot.slane %v674, 3
    %v677 = vunpack.i.l.s16 %v663
    %v678 = vunpack.i.h.s16 %v663
    %v679 = vunpack.i.l.s16 %v668
    %v680 = vunpack.i.h.s16 %v668
    %v681 = vunpack.i.l.s16 %v672
    %v682 = vunpack.i.h.s16 %v672
    %v683 = vunpack.i.l.s16 %v676
    %v684 = vunpack.i.h.s16 %v676
    %v685 = vld [vmem:[#allocation2] sm:$0xff]
    %v686 = vsub.s32 1, %v685
    %v687 = vcvt.s32.f32 %v686
    %v688 = vmul.f32 %v687, -1e+09
    %v690 = vrot.slane %v688, 1
    %v691 = vrot.slane %v688, 2
    %v692 = vrot.slane %v688, 3
    %v693 = vrot.slane %v688, 4
    %v694 = vrot.slane %v688, 5
    %v695 = vrot.slane %v688, 6
    %v696 = vrot.slane %v688, 7
    %v704 = vpack.i.b16 %v677, %v677
    %v705 = vperm.slane %v704, 0
    %vm706 = vcmask 64512
    %v708 = vsel %vm706, %v705, 0
    %v711 = vsel %vm706, %v615, 0
    %713 = vmatpush.bf16.xpose.msra.mxu0 0
    %714 = vmatpush.bf16.xpose.msra.mxu0 0
    %715 = vmatpush.bf16.xpose.msra.mxu0 0
    %716 = vmatpush.bf16.xpose.msra.mxu0 0
    %717 = vmatpush.bf16.xpose.msra.mxu0 0
    %718 = vmatpush.bf16.xpose.msra.mxu0 0
    %719 = vmatpush.bf16.xpose.msra.mxu0 0
    %720 = vmatpush.bf16.xpose.msra.mxu0 %v711
    %721 = vmatmul.bf16.gmra.mxu0 %v708
    %v722 = vpop.f32.mrf.mxu0
    %v723 = vadd.f32 0.0, %v722
    %v724 = vpop.f32.mrf.mxu0
    %725 = vdwg.mxu0
    %v726 = vpack.i.b16 %v678, %v678
    %v727 = vperm.slane %v726, 0
    %v729 = vsel %vm706, %v727, 0
    %v732 = vsel %vm706, %v616, 0
    %734 = vmatpush.bf16.xpose.msra.mxu0 0
    %735 = vmatpush.bf16.xpose.msra.mxu0 0
    %736 = vmatpush.bf16.xpose.msra.mxu0 0
    %737 = vmatpush.bf16.xpose.msra.mxu0 0
    %738 = vmatpush.bf16.xpose.msra.mxu0 0
    %739 = vmatpush.bf16.xpose.msra.mxu0 0
    %740 = vmatpush.bf16.xpose.msra.mxu0 0
    %741 = vmatpush.bf16.xpose.msra.mxu0 %v732
    %742 = vmatmul.bf16.gmra.mxu0 %v729
    %v743 = vpop.f32.mrf.mxu0
    %v744 = vadd.f32 0.0, %v743
    %v745 = vpop.f32.mrf.mxu0
    %746 = vdwg.mxu0
    %v747 = vpack.i.b16 %v679, %v679
    %v748 = vperm.slane %v747, 0
    %v750 = vsel %vm706, %v748, 0
    %v753 = vsel %vm706, %v617, 0
    %755 = vmatpush.bf16.xpose.msra.mxu0 0
    %756 = vmatpush.bf16.xpose.msra.mxu0 0
    %757 = vmatpush.bf16.xpose.msra.mxu0 0
    %758 = vmatpush.bf16.xpose.msra.mxu0 0
    %759 = vmatpush.bf16.xpose.msra.mxu0 0
    %760 = vmatpush.bf16.xpose.msra.mxu0 0
    %761 = vmatpush.bf16.xpose.msra.mxu0 0
    %762 = vmatpush.bf16.xpose.msra.mxu0 %v753
    %763 = vmatmul.bf16.gmra.mxu0 %v750
    %v764 = vpop.f32.mrf.mxu0
    %v765 = vadd.f32 0.0, %v764
    %v766 = vpop.f32.mrf.mxu0
    %767 = vdwg.mxu0
    %v768 = vpack.i.b16 %v680, %v680
    %v769 = vperm.slane %v768, 0
    %v771 = vsel %vm706, %v769, 0
    %v774 = vsel %vm706, %v618, 0
    %776 = vmatpush.bf16.xpose.msra.mxu0 0
    %777 = vmatpush.bf16.xpose.msra.mxu0 0
    %778 = vmatpush.bf16.xpose.msra.mxu0 0
    %779 = vmatpush.bf16.xpose.msra.mxu0 0
    %780 = vmatpush.bf16.xpose.msra.mxu0 0
    %781 = vmatpush.bf16.xpose.msra.mxu0 0
    %782 = vmatpush.bf16.xpose.msra.mxu0 0
    %783 = vmatpush.bf16.xpose.msra.mxu0 %v774
    %784 = vmatmul.bf16.gmra.mxu0 %v771
    %v785 = vpop.f32.mrf.mxu0
    %v786 = vadd.f32 0.0, %v785
    %v787 = vpop.f32.mrf.mxu0
    %788 = vdwg.mxu0
    %v789 = vpack.i.b16 %v681, %v681
    %v790 = vperm.slane %v789, 0
    %v792 = vsel %vm706, %v790, 0
    %v795 = vsel %vm706, %v619, 0
    %797 = vmatpush.bf16.xpose.msra.mxu0 0
    %798 = vmatpush.bf16.xpose.msra.mxu0 0
    %799 = vmatpush.bf16.xpose.msra.mxu0 0
    %800 = vmatpush.bf16.xpose.msra.mxu0 0
    %801 = vmatpush.bf16.xpose.msra.mxu0 0
    %802 = vmatpush.bf16.xpose.msra.mxu0 0
    %803 = vmatpush.bf16.xpose.msra.mxu0 0
    %804 = vmatpush.bf16.xpose.msra.mxu0 %v795
    %805 = vmatmul.bf16.gmra.mxu0 %v792
    %v806 = vpop.f32.mrf.mxu0
    %v807 = vadd.f32 0.0, %v806
    %v808 = vpop.f32.mrf.mxu0
    %809 = vdwg.mxu0
    %v810 = vpack.i.b16 %v682, %v682
    %v811 = vperm.slane %v810, 0
    %v813 = vsel %vm706, %v811, 0
    %v816 = vsel %vm706, %v620, 0
    %818 = vmatpush.bf16.xpose.msra.mxu0 0
    %819 = vmatpush.bf16.xpose.msra.mxu0 0
    %820 = vmatpush.bf16.xpose.msra.mxu0 0
    %821 = vmatpush.bf16.xpose.msra.mxu0 0
    %822 = vmatpush.bf16.xpose.msra.mxu0 0
    %823 = vmatpush.bf16.xpose.msra.mxu0 0
    %824 = vmatpush.bf16.xpose.msra.mxu0 0
    %825 = vmatpush.bf16.xpose.msra.mxu0 %v816
    %826 = vmatmul.bf16.gmra.mxu0 %v813
    %v827 = vpop.f32.mrf.mxu0
    %v828 = vadd.f32 0.0, %v827
    %v829 = vpop.f32.mrf.mxu0
    %830 = vdwg.mxu0
    %v831 = vpack.i.b16 %v683, %v683
    %v832 = vperm.slane %v831, 0
    %v834 = vsel %vm706, %v832, 0
    %v837 = vsel %vm706, %v621, 0
    %839 = vmatpush.bf16.xpose.msra.mxu0 0
    %840 = vmatpush.bf16.xpose.msra.mxu0 0
    %841 = vmatpush.bf16.xpose.msra.mxu0 0
    %842 = vmatpush.bf16.xpose.msra.mxu0 0
    %843 = vmatpush.bf16.xpose.msra.mxu0 0
    %844 = vmatpush.bf16.xpose.msra.mxu0 0
    %845 = vmatpush.bf16.xpose.msra.mxu0 0
    %846 = vmatpush.bf16.xpose.msra.mxu0 %v837
    %847 = vmatmul.bf16.gmra.mxu0 %v834
    %v848 = vpop.f32.mrf.mxu0
    %v849 = vadd.f32 0.0, %v848
    %v850 = vpop.f32.mrf.mxu0
    %851 = vdwg.mxu0
    %v852 = vpack.i.b16 %v684, %v684
    %v853 = vperm.slane %v852, 0
    %v855 = vsel %vm706, %v853, 0
    %v858 = vsel %vm706, %v622, 0
    %860 = vmatpush.bf16.xpose.msra.mxu0 0
    %861 = vmatpush.bf16.xpose.msra.mxu0 0
    %862 = vmatpush.bf16.xpose.msra.mxu0 0
    %863 = vmatpush.bf16.xpose.msra.mxu0 0
    %864 = vmatpush.bf16.xpose.msra.mxu0 0
    %865 = vmatpush.bf16.xpose.msra.mxu0 0
    %866 = vmatpush.bf16.xpose.msra.mxu0 0
    %867 = vmatpush.bf16.xpose.msra.mxu0 %v858
    %868 = vmatmul.bf16.gmra.mxu0 %v855
    %v869 = vpop.f32.mrf.mxu0
    %v870 = vadd.f32 0.0, %v869
    %v871 = vpop.f32.mrf.mxu0
    %872 = vdwg.mxu0
    %v873 = vmul.f32 %v723, 0.35355338
    %v874 = vmul.f32 %v744, 0.35355338
    %v875 = vmul.f32 %v765, 0.35355338
    %v876 = vmul.f32 %v786, 0.35355338
    %v877 = vmul.f32 %v807, 0.35355338
    %v878 = vmul.f32 %v828, 0.35355338
    %v879 = vmul.f32 %v849, 0.35355338
    %v880 = vmul.f32 %v870, 0.35355338
    %v881 = vadd.f32 %v873, %v688
    %v882 = vadd.f32 %v874, %v690
    %v883 = vadd.f32 %v875, %v691
    %v884 = vadd.f32 %v876, %v692
    %v885 = vadd.f32 %v877, %v693
    %v886 = vadd.f32 %v878, %v694
    %v887 = vadd.f32 %v879, %v695
    %v888 = vadd.f32 %v880, %v696
    %vm889 = vcmask 57344
    %v890 = vsel %vm889, %v881, -inf
    %891 = vmax.xlane.f32.xlu0 %v890
    %v892 = vpop.xlane.xlu0 %891
    %v893 = vsel %vm889, %v882, -inf
    %894 = vmax.xlane.f32.xlu0 %v893
    %v895 = vpop.xlane.xlu0 %894
    %v896 = vsel %vm889, %v883, -inf
    %897 = vmax.xlane.f32.xlu0 %v896
    %v898 = vpop.xlane.xlu0 %897
    %v899 = vsel %vm889, %v884, -inf
    %900 = vmax.xlane.f32.xlu0 %v899
    %v901 = vpop.xlane.xlu0 %900
    %v902 = vsel %vm889, %v885, -inf
    %903 = vmax.xlane.f32.xlu0 %v902
    %v904 = vpop.xlane.xlu0 %903
    %v905 = vsel %vm889, %v886, -inf
    %906 = vmax.xlane.f32.xlu0 %v905
    %v907 = vpop.xlane.xlu0 %906
    %v908 = vsel %vm889, %v887, -inf
    %909 = vmax.xlane.f32.xlu0 %v908
    %v910 = vpop.xlane.xlu0 %909
    %v911 = vsel %vm889, %v888, -inf
    %912 = vmax.xlane.f32.xlu0 %v911
    %v913 = vpop.xlane.xlu0 %912
    %v914 = vsub.f32 %v881, %v892
    %v915 = vsub.f32 %v882, %v895
    %v916 = vsub.f32 %v883, %v898
    %v917 = vsub.f32 %v884, %v901
    %v918 = vsub.f32 %v885, %v904
    %v919 = vsub.f32 %v886, %v907
    %v920 = vsub.f32 %v887, %v910
    %v921 = vsub.f32 %v888, %v913
    %v922 = vmul.f32 %v914, 1.442695
    %v923 = vpow.pop %v922
    %v924 = vmul.f32 %v915, 1.442695
    %v925 = vpow.pop %v924
    %v926 = vmul.f32 %v916, 1.442695
    %v927 = vpow.pop %v926
    %v928 = vmul.f32 %v917, 1.442695
    %v929 = vpow.pop %v928
    %v930 = vmul.f32 %v918, 1.442695
    %v931 = vpow.pop %v930
    %v932 = vmul.f32 %v919, 1.442695
    %v933 = vpow.pop %v932
    %v934 = vmul.f32 %v920, 1.442695
    %v935 = vpow.pop %v934
    %v936 = vmul.f32 %v921, 1.442695
    %v937 = vpow.pop %v936
    %v938 = vsel %vm889, %v923, 0.0
    %939 = vadd.xlane.f32.xlu0 %v938
    %v940 = vpop.xlane.xlu0 %939
    %v941 = vsel %vm889, %v925, 0.0
    %942 = vadd.xlane.f32.xlu0 %v941
    %v943 = vpop.xlane.xlu0 %942
    %v944 = vsel %vm889, %v927, 0.0
    %945 = vadd.xlane.f32.xlu0 %v944
    %v946 = vpop.xlane.xlu0 %945
    %v947 = vsel %vm889, %v929, 0.0
    %948 = vadd.xlane.f32.xlu0 %v947
    %v949 = vpop.xlane.xlu0 %948
    %v950 = vsel %vm889, %v931, 0.0
    %951 = vadd.xlane.f32.xlu0 %v950
    %v952 = vpop.xlane.xlu0 %951
    %v953 = vsel %vm889, %v933, 0.0
    %954 = vadd.xlane.f32.xlu0 %v953
    %v955 = vpop.xlane.xlu0 %954
    %v956 = vsel %vm889, %v935, 0.0
    %957 = vadd.xlane.f32.xlu0 %v956
    %v958 = vpop.xlane.xlu0 %957
    %v959 = vsel %vm889, %v937, 0.0
    %960 = vadd.xlane.f32.xlu0 %v959
    %v961 = vpop.xlane.xlu0 %960
    %v962 = vrcp.pop %v940
    %v963 = vrcp.pop %v943
    %v964 = vrcp.pop %v946
    %v965 = vrcp.pop %v949
    %v966 = vrcp.pop %v952
    %v967 = vrcp.pop %v955
    %v968 = vrcp.pop %v958
    %v969 = vrcp.pop %v961
    %v970 = vmul.f32 %v923, %v962
    %v971 = vmul.f32 %v925, %v963
    %v972 = vmul.f32 %v927, %v964
    %v973 = vmul.f32 %v929, %v965
    %v974 = vmul.f32 %v931, %v966
    %v975 = vmul.f32 %v933, %v967
    %v976 = vmul.f32 %v935, %v968
    %v977 = vmul.f32 %v937, %v969
    %v978 = vpack.c.bf16 %v970, %v970
    %v979 = vpack.c.bf16 %v971, %v971
    %v980 = vpack.c.bf16 %v972, %v972
    %v981 = vpack.c.bf16 %v973, %v973
    %v982 = vpack.c.bf16 %v974, %v974
    %v983 = vpack.c.bf16 %v975, %v975
    %v984 = vpack.c.bf16 %v976, %v976
    %v985 = vpack.c.bf16 %v977, %v977
    %v987 = vunpack.c.l.b16 %v615
    %v988 = vpack.c.b16 %v987, %v987
    %989 = vrot.lane.b32.xlu0 %v988, 96
    %v990 = vpop.permute.xlu0 %989
    %v992 = vsel %vm706, %v978, 0
    %vm994 = vcmask 1043456
    %v996 = vsel %vm994, %v990, 0
    %998 = vmatpush.bf16.msra.mxu0 0
    %999 = vmatpush.bf16.msra.mxu0 0
    %1000 = vmatpush.bf16.msra.mxu0 0
    %1001 = vmatpush.bf16.msra.mxu0 0
    %1002 = vmatpush.bf16.msra.mxu0 0
    %1003 = vmatpush.bf16.msra.mxu0 0
    %1004 = vmatpush.bf16.msra.mxu0 0
    %1005 = vmatpush.bf16.msra.mxu0 %v996
    %1006 = vmatmul.bf16.gmra.mxu0 %v992
    %v1007 = vpop.f32.mrf.mxu0
    %v1008 = vadd.f32 0.0, %v1007
    %v1009 = vpop.f32.mrf.mxu0
    %1010 = vdwg.mxu0
    %v1012 = vunpack.c.l.b16 %v616
    %v1013 = vpack.c.b16 %v1012, %v1012
    %1014 = vrot.lane.b32.xlu0 %v1013, 96
    %v1015 = vpop.permute.xlu0 %1014
    %v1017 = vsel %vm706, %v979, 0
    %v1020 = vsel %vm994, %v1015, 0
    %1022 = vmatpush.bf16.msra.mxu0 0
    %1023 = vmatpush.bf16.msra.mxu0 0
    %1024 = vmatpush.bf16.msra.mxu0 0
    %1025 = vmatpush.bf16.msra.mxu0 0
    %1026 = vmatpush.bf16.msra.mxu0 0
    %1027 = vmatpush.bf16.msra.mxu0 0
    %1028 = vmatpush.bf16.msra.mxu0 0
    %1029 = vmatpush.bf16.msra.mxu0 %v1020
    %1030 = vmatmul.bf16.gmra.mxu0 %v1017
    %v1031 = vpop.f32.mrf.mxu0
    %v1032 = vadd.f32 0.0, %v1031
    %v1033 = vpop.f32.mrf.mxu0
    %1034 = vdwg.mxu0
    %v1036 = vunpack.c.l.b16 %v617
    %v1037 = vpack.c.b16 %v1036, %v1036
    %1038 = vrot.lane.b32.xlu0 %v1037, 96
    %v1039 = vpop.permute.xlu0 %1038
    %v1041 = vsel %vm706, %v980, 0
    %v1044 = vsel %vm994, %v1039, 0
    %1046 = vmatpush.bf16.msra.mxu0 0
    %1047 = vmatpush.bf16.msra.mxu0 0
    %1048 = vmatpush.bf16.msra.mxu0 0
    %1049 = vmatpush.bf16.msra.mxu0 0
    %1050 = vmatpush.bf16.msra.mxu0 0
    %1051 = vmatpush.bf16.msra.mxu0 0
    %1052 = vmatpush.bf16.msra.mxu0 0
    %1053 = vmatpush.bf16.msra.mxu0 %v1044
    %1054 = vmatmul.bf16.gmra.mxu0 %v1041
    %v1055 = vpop.f32.mrf.mxu0
    %v1056 = vadd.f32 0.0, %v1055
    %v1057 = vpop.f32.mrf.mxu0
    %1058 = vdwg.mxu0
    %v1060 = vunpack.c.l.b16 %v618
    %v1061 = vpack.c.b16 %v1060, %v1060
    %1062 = vrot.lane.b32.xlu0 %v1061, 96
    %v1063 = vpop.permute.xlu0 %1062
    %v1065 = vsel %vm706, %v981, 0
    %v1068 = vsel %vm994, %v1063, 0
    %1070 = vmatpush.bf16.msra.mxu0 0
    %1071 = vmatpush.bf16.msra.mxu0 0
    %1072 = vmatpush.bf16.msra.mxu0 0
    %1073 = vmatpush.bf16.msra.mxu0 0
    %1074 = vmatpush.bf16.msra.mxu0 0
    %1075 = vmatpush.bf16.msra.mxu0 0
    %1076 = vmatpush.bf16.msra.mxu0 0
    %1077 = vmatpush.bf16.msra.mxu0 %v1068
    %1078 = vmatmul.bf16.gmra.mxu0 %v1065
    %v1079 = vpop.f32.mrf.mxu0
    %v1080 = vadd.f32 0.0, %v1079
    %v1081 = vpop.f32.mrf.mxu0
    %1082 = vdwg.mxu0
    %v1084 = vunpack.c.l.b16 %v619
    %v1085 = vpack.c.b16 %v1084, %v1084
    %1086 = vrot.lane.b32.xlu0 %v1085, 96
    %v1087 = vpop.permute.xlu0 %1086
    %v1089 = vsel %vm706, %v982, 0
    %v1092 = vsel %vm994, %v1087, 0
    %1094 = vmatpush.bf16.msra.mxu0 0
    %1095 = vmatpush.bf16.msra.mxu0 0
    %1096 = vmatpush.bf16.msra.mxu0 0
    %1097 = vmatpush.bf16.msra.mxu0 0
    %1098 = vmatpush.bf16.msra.mxu0 0
    %1099 = vmatpush.bf16.msra.mxu0 0
    %1100 = vmatpush.bf16.msra.mxu0 0
    %1101 = vmatpush.bf16.msra.mxu0 %v1092
    %1102 = vmatmul.bf16.gmra.mxu0 %v1089
    %v1103 = vpop.f32.mrf.mxu0
    %v1104 = vadd.f32 0.0, %v1103
    %v1105 = vpop.f32.mrf.mxu0
    %1106 = vdwg.mxu0
    %v1108 = vunpack.c.l.b16 %v620
    %v1109 = vpack.c.b16 %v1108, %v1108
    %1110 = vrot.lane.b32.xlu0 %v1109, 96
    %v1111 = vpop.permute.xlu0 %1110
    %v1113 = vsel %vm706, %v983, 0
    %v1116 = vsel %vm994, %v1111, 0
    %1118 = vmatpush.bf16.msra.mxu0 0
    %1119 = vmatpush.bf16.msra.mxu0 0
    %1120 = vmatpush.bf16.msra.mxu0 0
    %1121 = vmatpush.bf16.msra.mxu0 0
    %1122 = vmatpush.bf16.msra.mxu0 0
    %1123 = vmatpush.bf16.msra.mxu0 0
    %1124 = vmatpush.bf16.msra.mxu0 0
    %1125 = vmatpush.bf16.msra.mxu0 %v1116
    %1126 = vmatmul.bf16.gmra.mxu0 %v1113
    %v1127 = vpop.f32.mrf.mxu0
    %v1128 = vadd.f32 0.0, %v1127
    %v1129 = vpop.f32.mrf.mxu0
    %1130 = vdwg.mxu0
    %v1132 = vunpack.c.l.b16 %v621
    %v1133 = vpack.c.b16 %v1132, %v1132
    %1134 = vrot.lane.b32.xlu0 %v1133, 96
    %v1135 = vpop.permute.xlu0 %1134
    %v1137 = vsel %vm706, %v984, 0
    %v1140 = vsel %vm994, %v1135, 0
    %1142 = vmatpush.bf16.msra.mxu0 0
    %1143 = vmatpush.bf16.msra.mxu0 0
    %1144 = vmatpush.bf16.msra.mxu0 0
    %1145 = vmatpush.bf16.msra.mxu0 0
    %1146 = vmatpush.bf16.msra.mxu0 0
    %1147 = vmatpush.bf16.msra.mxu0 0
    %1148 = vmatpush.bf16.msra.mxu0 0
    %1149 = vmatpush.bf16.msra.mxu0 %v1140
    %1150 = vmatmul.bf16.gmra.mxu0 %v1137
    %v1151 = vpop.f32.mrf.mxu0
    %v1152 = vadd.f32 0.0, %v1151
    %v1153 = vpop.f32.mrf.mxu0
    %1154 = vdwg.mxu0
    %v1156 = vunpack.c.l.b16 %v622
    %v1157 = vpack.c.b16 %v1156, %v1156
    %1158 = vrot.lane.b32.xlu0 %v1157, 96
    %v1159 = vpop.permute.xlu0 %1158
    %v1161 = vsel %vm706, %v985, 0
    %v1164 = vsel %vm994, %v1159, 0
    %1166 = vmatpush.bf16.msra.mxu0 0
    %1167 = vmatpush.bf16.msra.mxu0 0
    %1168 = vmatpush.bf16.msra.mxu0 0
    %1169 = vmatpush.bf16.msra.mxu0 0
    %1170 = vmatpush.bf16.msra.mxu0 0
    %1171 = vmatpush.bf16.msra.mxu0 0
    %1172 = vmatpush.bf16.msra.mxu0 0
    %1173 = vmatpush.bf16.msra.mxu0 %v1164
    %1174 = vmatmul.bf16.gmra.mxu0 %v1161
    %v1175 = vpop.f32.mrf.mxu0
    %v1176 = vadd.f32 0.0, %v1175
    %v1177 = vpop.f32.mrf.mxu0
    %1178 = vdwg.mxu0
    %1179 = vrot.lane.b32.xlu0 %v705, 120
    %v1180 = vpop.permute.xlu0 %1179
    %1181 = vrot.lane.b32.xlu0 %v988, 120
    %v1182 = vpop.permute.xlu0 %1181
    %v1184 = vsel %vm706, %v1180, 0
    %v1187 = vsel %vm706, %v1182, 0
    %1189 = vmatpush.bf16.xpose.msra.mxu0 0
    %1190 = vmatpush.bf16.xpose.msra.mxu0 0
    %1191 = vmatpush.bf16.xpose.msra.mxu0 0
    %1192 = vmatpush.bf16.xpose.msra.mxu0 0
    %1193 = vmatpush.bf16.xpose.msra.mxu0 0
    %1194 = vmatpush.bf16.xpose.msra.mxu0 0
    %1195 = vmatpush.bf16.xpose.msra.mxu0 0
    %1196 = vmatpush.bf16.xpose.msra.mxu0 %v1187
    %1197 = vmatmul.bf16.gmra.mxu0 %v1184
    %v1198 = vpop.f32.mrf.mxu0
    %v1199 = vadd.f32 0.0, %v1198
    %v1200 = vpop.f32.mrf.mxu0
    %1201 = vdwg.mxu0
    %1202 = vrot.lane.b32.xlu0 %v727, 120
    %v1203 = vpop.permute.xlu0 %1202
    %1204 = vrot.lane.b32.xlu0 %v1013, 120
    %v1205 = vpop.permute.xlu0 %1204
    %v1207 = vsel %vm706, %v1203, 0
    %v1210 = vsel %vm706, %v1205, 0
    %1212 = vmatpush.bf16.xpose.msra.mxu0 0
    %1213 = vmatpush.bf16.xpose.msra.mxu0 0
    %1214 = vmatpush.bf16.xpose.msra.mxu0 0
    %1215 = vmatpush.bf16.xpose.msra.mxu0 0
    %1216 = vmatpush.bf16.xpose.msra.mxu0 0
    %1217 = vmatpush.bf16.xpose.msra.mxu0 0
    %1218 = vmatpush.bf16.xpose.msra.mxu0 0
    %1219 = vmatpush.bf16.xpose.msra.mxu0 %v1210
    %1220 = vmatmul.bf16.gmra.mxu0 %v1207
    %v1221 = vpop.f32.mrf.mxu0
    %v1222 = vadd.f32 0.0, %v1221
    %v1223 = vpop.f32.mrf.mxu0
    %1224 = vdwg.mxu0
    %1225 = vrot.lane.b32.xlu0 %v748, 120
    %v1226 = vpop.permute.xlu0 %1225
    %1227 = vrot.lane.b32.xlu0 %v1037, 120
    %v1228 = vpop.permute.xlu0 %1227
    %v1230 = vsel %vm706, %v1226, 0
    %v1233 = vsel %vm706, %v1228, 0
    %1235 = vmatpush.bf16.xpose.msra.mxu0 0
    %1236 = vmatpush.bf16.xpose.msra.mxu0 0
    %1237 = vmatpush.bf16.xpose.msra.mxu0 0
    %1238 = vmatpush.bf16.xpose.msra.mxu0 0
    %1239 = vmatpush.bf16.xpose.msra.mxu0 0
    %1240 = vmatpush.bf16.xpose.msra.mxu0 0
    %1241 = vmatpush.bf16.xpose.msra.mxu0 0
    %1242 = vmatpush.bf16.xpose.msra.mxu0 %v1233
    %1243 = vmatmul.bf16.gmra.mxu0 %v1230
    %v1244 = vpop.f32.mrf.mxu0
    %v1245 = vadd.f32 0.0, %v1244
    %v1246 = vpop.f32.mrf.mxu0
    %1247 = vdwg.mxu0
    %1248 = vrot.lane.b32.xlu0 %v769, 120
    %v1249 = vpop.permute.xlu0 %1248
    %1250 = vrot.lane.b32.xlu0 %v1061, 120
    %v1251 = vpop.permute.xlu0 %1250
    %v1253 = vsel %vm706, %v1249, 0
    %v1256 = vsel %vm706, %v1251, 0
    %1258 = vmatpush.bf16.xpose.msra.mxu0 0
    %1259 = vmatpush.bf16.xpose.msra.mxu0 0
    %1260 = vmatpush.bf16.xpose.msra.mxu0 0
    %1261 = vmatpush.bf16.xpose.msra.mxu0 0
    %1262 = vmatpush.bf16.xpose.msra.mxu0 0
    %1263 = vmatpush.bf16.xpose.msra.mxu0 0
    %1264 = vmatpush.bf16.xpose.msra.mxu0 0
    %1265 = vmatpush.bf16.xpose.msra.mxu0 %v1256
    %1266 = vmatmul.bf16.gmra.mxu0 %v1253
    %v1267 = vpop.f32.mrf.mxu0
    %v1268 = vadd.f32 0.0, %v1267
    %v1269 = vpop.f32.mrf.mxu0
    %1270 = vdwg.mxu0
    %1271 = vrot.lane.b32.xlu0 %v790, 120
    %v1272 = vpop.permute.xlu0 %1271
    %1273 = vrot.lane.b32.xlu0 %v1085, 120
    %v1274 = vpop.permute.xlu0 %1273
    %v1276 = vsel %vm706, %v1272, 0
    %v1279 = vsel %vm706, %v1274, 0
    %1281 = vmatpush.bf16.xpose.msra.mxu0 0
    %1282 = vmatpush.bf16.xpose.msra.mxu0 0
    %1283 = vmatpush.bf16.xpose.msra.mxu0 0
    %1284 = vmatpush.bf16.xpose.msra.mxu0 0
    %1285 = vmatpush.bf16.xpose.msra.mxu0 0
    %1286 = vmatpush.bf16.xpose.msra.mxu0 0
    %1287 = vmatpush.bf16.xpose.msra.mxu0 0
    %1288 = vmatpush.bf16.xpose.msra.mxu0 %v1279
    %1289 = vmatmul.bf16.gmra.mxu0 %v1276
    %v1290 = vpop.f32.mrf.mxu0
    %v1291 = vadd.f32 0.0, %v1290
    %v1292 = vpop.f32.mrf.mxu0
    %1293 = vdwg.mxu0
    %1294 = vrot.lane.b32.xlu0 %v811, 120
    %v1295 = vpop.permute.xlu0 %1294
    %1296 = vrot.lane.b32.xlu0 %v1109, 120
    %v1297 = vpop.permute.xlu0 %1296
    %v1299 = vsel %vm706, %v1295, 0
    %v1302 = vsel %vm706, %v1297, 0
    %1304 = vmatpush.bf16.xpose.msra.mxu0 0
    %1305 = vmatpush.bf16.xpose.msra.mxu0 0
    %1306 = vmatpush.bf16.xpose.msra.mxu0 0
    %1307 = vmatpush.bf16.xpose.msra.mxu0 0
    %1308 = vmatpush.bf16.xpose.msra.mxu0 0
    %1309 = vmatpush.bf16.xpose.msra.mxu0 0
    %1310 = vmatpush.bf16.xpose.msra.mxu0 0
    %1311 = vmatpush.bf16.xpose.msra.mxu0 %v1302
    %1312 = vmatmul.bf16.gmra.mxu0 %v1299
    %v1313 = vpop.f32.mrf.mxu0
    %v1314 = vadd.f32 0.0, %v1313
    %v1315 = vpop.f32.mrf.mxu0
    %1316 = vdwg.mxu0
    %1317 = vrot.lane.b32.xlu0 %v832, 120
    %v1318 = vpop.permute.xlu0 %1317
    %1319 = vrot.lane.b32.xlu0 %v1133, 120
    %v1320 = vpop.permute.xlu0 %1319
    %v1322 = vsel %vm706, %v1318, 0
    %v1325 = vsel %vm706, %v1320, 0
    %1327 = vmatpush.bf16.xpose.msra.mxu0 0
    %1328 = vmatpush.bf16.xpose.msra.mxu0 0
    %1329 = vmatpush.bf16.xpose.msra.mxu0 0
    %1330 = vmatpush.bf16.xpose.msra.mxu0 0
    %1331 = vmatpush.bf16.xpose.msra.mxu0 0
    %1332 = vmatpush.bf16.xpose.msra.mxu0 0
    %1333 = vmatpush.bf16.xpose.msra.mxu0 0
    %1334 = vmatpush.bf16.xpose.msra.mxu0 %v1325
    %1335 = vmatmul.bf16.gmra.mxu0 %v1322
    %v1336 = vpop.f32.mrf.mxu0
    %v1337 = vadd.f32 0.0, %v1336
    %v1338 = vpop.f32.mrf.mxu0
    %1339 = vdwg.mxu0
    %1340 = vrot.lane.b32.xlu0 %v853, 120
    %v1341 = vpop.permute.xlu0 %1340
    %1342 = vrot.lane.b32.xlu0 %v1157, 120
    %v1343 = vpop.permute.xlu0 %1342
    %v1345 = vsel %vm706, %v1341, 0
    %v1348 = vsel %vm706, %v1343, 0
    %1350 = vmatpush.bf16.xpose.msra.mxu0 0
    %1351 = vmatpush.bf16.xpose.msra.mxu0 0
    %1352 = vmatpush.bf16.xpose.msra.mxu0 0
    %1353 = vmatpush.bf16.xpose.msra.mxu0 0
    %1354 = vmatpush.bf16.xpose.msra.mxu0 0
    %1355 = vmatpush.bf16.xpose.msra.mxu0 0
    %1356 = vmatpush.bf16.xpose.msra.mxu0 0
    %1357 = vmatpush.bf16.xpose.msra.mxu0 %v1348
    %1358 = vmatmul.bf16.gmra.mxu0 %v1345
    %v1359 = vpop.f32.mrf.mxu0
    %v1360 = vadd.f32 0.0, %v1359
    %v1361 = vpop.f32.mrf.mxu0
    %1362 = vdwg.mxu0
    %v1363 = vmul.f32 %v1199, 0.35355338
    %v1364 = vmul.f32 %v1222, 0.35355338
    %v1365 = vmul.f32 %v1245, 0.35355338
    %v1366 = vmul.f32 %v1268, 0.35355338
    %v1367 = vmul.f32 %v1291, 0.35355338
    %v1368 = vmul.f32 %v1314, 0.35355338
    %v1369 = vmul.f32 %v1337, 0.35355338
    %v1370 = vmul.f32 %v1360, 0.35355338
    %v1371 = vadd.f32 %v1363, %v688
    %v1372 = vadd.f32 %v1364, %v690
    %v1373 = vadd.f32 %v1365, %v691
    %v1374 = vadd.f32 %v1366, %v692
    %v1375 = vadd.f32 %v1367, %v693
    %v1376 = vadd.f32 %v1368, %v694
    %v1377 = vadd.f32 %v1369, %v695
    %v1378 = vadd.f32 %v1370, %v696
    %v1379 = vsel %vm889, %v1371, -inf
    %1380 = vmax.xlane.f32.xlu0 %v1379
    %v1381 = vpop.xlane.xlu0 %1380
    %v1382 = vsel %vm889, %v1372, -inf
    %1383 = vmax.xlane.f32.xlu0 %v1382
    %v1384 = vpop.xlane.xlu0 %1383
    %v1385 = vsel %vm889, %v1373, -inf
    %1386 = vmax.xlane.f32.xlu0 %v1385
    %v1387 = vpop.xlane.xlu0 %1386
    %v1388 = vsel %vm889, %v1374, -inf
    %1389 = vmax.xlane.f32.xlu0 %v1388
    %v1390 = vpop.xlane.xlu0 %1389
    %v1391 = vsel %vm889, %v1375, -inf
    %1392 = vmax.xlane.f32.xlu0 %v1391
    %v1393 = vpop.xlane.xlu0 %1392
    %v1394 = vsel %vm889, %v1376, -inf
    %1395 = vmax.xlane.f32.xlu0 %v1394
    %v1396 = vpop.xlane.xlu0 %1395
    %v1397 = vsel %vm889, %v1377, -inf
    %1398 = vmax.xlane.f32.xlu0 %v1397
    %v1399 = vpop.xlane.xlu0 %1398
    %v1400 = vsel %vm889, %v1378, -inf
    %1401 = vmax.xlane.f32.xlu0 %v1400
    %v1402 = vpop.xlane.xlu0 %1401
    %v1403 = vsub.f32 %v1371, %v1381
    %v1404 = vsub.f32 %v1372, %v1384
    %v1405 = vsub.f32 %v1373, %v1387
    %v1406 = vsub.f32 %v1374, %v1390
    %v1407 = vsub.f32 %v1375, %v1393
    %v1408 = vsub.f32 %v1376, %v1396
    %v1409 = vsub.f32 %v1377, %v1399
    %v1410 = vsub.f32 %v1378, %v1402
    %v1411 = vmul.f32 %v1403, 1.442695
    %v1412 = vpow.pop %v1411
    %v1413 = vmul.f32 %v1404, 1.442695
    %v1414 = vpow.pop %v1413
    %v1415 = vmul.f32 %v1405, 1.442695
    %v1416 = vpow.pop %v1415
    %v1417 = vmul.f32 %v1406, 1.442695
    %v1418 = vpow.pop %v1417
    %v1419 = vmul.f32 %v1407, 1.442695
    %v1420 = vpow.pop %v1419
    %v1421 = vmul.f32 %v1408, 1.442695
    %v1422 = vpow.pop %v1421
    %v1423 = vmul.f32 %v1409, 1.442695
    %v1424 = vpow.pop %v1423
    %v1425 = vmul.f32 %v1410, 1.442695
    %v1426 = vpow.pop %v1425
    %v1427 = vsel %vm889, %v1412, 0.0
    %1428 = vadd.xlane.f32.xlu0 %v1427
    %v1429 = vpop.xlane.xlu0 %1428
    %v1430 = vsel %vm889, %v1414, 0.0
    %1431 = vadd.xlane.f32.xlu0 %v1430
    %v1432 = vpop.xlane.xlu0 %1431
    %v1433 = vsel %vm889, %v1416, 0.0
    %1434 = vadd.xlane.f32.xlu0 %v1433
    %v1435 = vpop.xlane.xlu0 %1434
    %v1436 = vsel %vm889, %v1418, 0.0
    %1437 = vadd.xlane.f32.xlu0 %v1436
    %v1438 = vpop.xlane.xlu0 %1437
    %v1439 = vsel %vm889, %v1420, 0.0
    %1440 = vadd.xlane.f32.xlu0 %v1439
    %v1441 = vpop.xlane.xlu0 %1440
    %v1442 = vsel %vm889, %v1422, 0.0
    %1443 = vadd.xlane.f32.xlu0 %v1442
    %v1444 = vpop.xlane.xlu0 %1443
    %v1445 = vsel %vm889, %v1424, 0.0
    %1446 = vadd.xlane.f32.xlu0 %v1445
    %v1447 = vpop.xlane.xlu0 %1446
    %v1448 = vsel %vm889, %v1426, 0.0
    %1449 = vadd.xlane.f32.xlu0 %v1448
    %v1450 = vpop.xlane.xlu0 %1449
    %v1451 = vrcp.pop %v1429
    %v1452 = vrcp.pop %v1432
    %v1453 = vrcp.pop %v1435
    %v1454 = vrcp.pop %v1438
    %v1455 = vrcp.pop %v1441
    %v1456 = vrcp.pop %v1444
    %v1457 = vrcp.pop %v1447
    %v1458 = vrcp.pop %v1450
    %v1459 = vmul.f32 %v1412, %v1451
    %v1460 = vmul.f32 %v1414, %v1452
    %v1461 = vmul.f32 %v1416, %v1453
    %v1462 = vmul.f32 %v1418, %v1454
    %v1463 = vmul.f32 %v1420, %v1455
    %v1464 = vmul.f32 %v1422, %v1456
    %v1465 = vmul.f32 %v1424, %v1457
    %v1466 = vmul.f32 %v1426, %v1458
    %v1467 = vpack.c.bf16 %v1459, %v1459
    %v1468 = vpack.c.bf16 %v1460, %v1460
    %v1469 = vpack.c.bf16 %v1461, %v1461
    %v1470 = vpack.c.bf16 %v1462, %v1462
    %v1471 = vpack.c.bf16 %v1463, %v1463
    %v1472 = vpack.c.bf16 %v1464, %v1464
    %v1473 = vpack.c.bf16 %v1465, %v1465
    %v1474 = vpack.c.bf16 %v1466, %v1466
    %1475 = vrot.lane.b32.xlu0 %v988, 88
    %v1476 = vpop.permute.xlu0 %1475
    %v1478 = vsel %vm706, %v1467, 0
    %v1481 = vsel %vm994, %v1476, 0
    %1483 = vmatpush.bf16.msra.mxu0 0
    %1484 = vmatpush.bf16.msra.mxu0 0
    %1485 = vmatpush.bf16.msra.mxu0 0
    %1486 = vmatpush.bf16.msra.mxu0 0
    %1487 = vmatpush.bf16.msra.mxu0 0
    %1488 = vmatpush.bf16.msra.mxu0 0
    %1489 = vmatpush.bf16.msra.mxu0 0
    %1490 = vmatpush.bf16.msra.mxu0 %v1481
    %1491 = vmatmul.bf16.gmra.mxu0 %v1478
    %v1492 = vpop.f32.mrf.mxu0
    %v1493 = vadd.f32 0.0, %v1492
    %v1494 = vpop.f32.mrf.mxu0
    %1495 = vdwg.mxu0
    %1496 = vrot.lane.b32.xlu0 %v1013, 88
    %v1497 = vpop.permute.xlu0 %1496
    %v1499 = vsel %vm706, %v1468, 0
    %v1502 = vsel %vm994, %v1497, 0
    %1504 = vmatpush.bf16.msra.mxu0 0
    %1505 = vmatpush.bf16.msra.mxu0 0
    %1506 = vmatpush.bf16.msra.mxu0 0
    %1507 = vmatpush.bf16.msra.mxu0 0
    %1508 = vmatpush.bf16.msra.mxu0 0
    %1509 = vmatpush.bf16.msra.mxu0 0
    %1510 = vmatpush.bf16.msra.mxu0 0
    %1511 = vmatpush.bf16.msra.mxu0 %v1502
    %1512 = vmatmul.bf16.gmra.mxu0 %v1499
    %v1513 = vpop.f32.mrf.mxu0
    %v1514 = vadd.f32 0.0, %v1513
    %v1515 = vpop.f32.mrf.mxu0
    %1516 = vdwg.mxu0
    %1517 = vrot.lane.b32.xlu0 %v1037, 88
    %v1518 = vpop.permute.xlu0 %1517
    %v1520 = vsel %vm706, %v1469, 0
    %v1523 = vsel %vm994, %v1518, 0
    %1525 = vmatpush.bf16.msra.mxu0 0
    %1526 = vmatpush.bf16.msra.mxu0 0
    %1527 = vmatpush.bf16.msra.mxu0 0
    %1528 = vmatpush.bf16.msra.mxu0 0
    %1529 = vmatpush.bf16.msra.mxu0 0
    %1530 = vmatpush.bf16.msra.mxu0 0
    %1531 = vmatpush.bf16.msra.mxu0 0
    %1532 = vmatpush.bf16.msra.mxu0 %v1523
    %1533 = vmatmul.bf16.gmra.mxu0 %v1520
    %v1534 = vpop.f32.mrf.mxu0
    %v1535 = vadd.f32 0.0, %v1534
    %v1536 = vpop.f32.mrf.mxu0
    %1537 = vdwg.mxu0
    %1538 = vrot.lane.b32.xlu0 %v1061, 88
    %v1539 = vpop.permute.xlu0 %1538
    %v1541 = vsel %vm706, %v1470, 0
    %v1544 = vsel %vm994, %v1539, 0
    %1546 = vmatpush.bf16.msra.mxu0 0
    %1547 = vmatpush.bf16.msra.mxu0 0
    %1548 = vmatpush.bf16.msra.mxu0 0
    %1549 = vmatpush.bf16.msra.mxu0 0
    %1550 = vmatpush.bf16.msra.mxu0 0
    %1551 = vmatpush.bf16.msra.mxu0 0
    %1552 = vmatpush.bf16.msra.mxu0 0
    %1553 = vmatpush.bf16.msra.mxu0 %v1544
    %1554 = vmatmul.bf16.gmra.mxu0 %v1541
    %v1555 = vpop.f32.mrf.mxu0
    %v1556 = vadd.f32 0.0, %v1555
    %v1557 = vpop.f32.mrf.mxu0
    %1558 = vdwg.mxu0
    %1559 = vrot.lane.b32.xlu0 %v1085, 88
    %v1560 = vpop.permute.xlu0 %1559
    %v1562 = vsel %vm706, %v1471, 0
    %v1565 = vsel %vm994, %v1560, 0
    %1567 = vmatpush.bf16.msra.mxu0 0
    %1568 = vmatpush.bf16.msra.mxu0 0
    %1569 = vmatpush.bf16.msra.mxu0 0
    %1570 = vmatpush.bf16.msra.mxu0 0
    %1571 = vmatpush.bf16.msra.mxu0 0
    %1572 = vmatpush.bf16.msra.mxu0 0
    %1573 = vmatpush.bf16.msra.mxu0 0
    %1574 = vmatpush.bf16.msra.mxu0 %v1565
    %1575 = vmatmul.bf16.gmra.mxu0 %v1562
    %v1576 = vpop.f32.mrf.mxu0
    %v1577 = vadd.f32 0.0, %v1576
    %v1578 = vpop.f32.mrf.mxu0
    %1579 = vdwg.mxu0
    %1580 = vrot.lane.b32.xlu0 %v1109, 88
    %v1581 = vpop.permute.xlu0 %1580
    %v1583 = vsel %vm706, %v1472, 0
    %v1586 = vsel %vm994, %v1581, 0
    %1588 = vmatpush.bf16.msra.mxu0 0
    %1589 = vmatpush.bf16.msra.mxu0 0
    %1590 = vmatpush.bf16.msra.mxu0 0
    %1591 = vmatpush.bf16.msra.mxu0 0
    %1592 = vmatpush.bf16.msra.mxu0 0
    %1593 = vmatpush.bf16.msra.mxu0 0
    %1594 = vmatpush.bf16.msra.mxu0 0
    %1595 = vmatpush.bf16.msra.mxu0 %v1586
    %1596 = vmatmul.bf16.gmra.mxu0 %v1583
    %v1597 = vpop.f32.mrf.mxu0
    %v1598 = vadd.f32 0.0, %v1597
    %v1599 = vpop.f32.mrf.mxu0
    %1600 = vdwg.mxu0
    %1601 = vrot.lane.b32.xlu0 %v1133, 88
    %v1602 = vpop.permute.xlu0 %1601
    %v1604 = vsel %vm706, %v1473, 0
    %v1607 = vsel %vm994, %v1602, 0
    %1609 = vmatpush.bf16.msra.mxu0 0
    %1610 = vmatpush.bf16.msra.mxu0 0
    %1611 = vmatpush.bf16.msra.mxu0 0
    %1612 = vmatpush.bf16.msra.mxu0 0
    %1613 = vmatpush.bf16.msra.mxu0 0
    %1614 = vmatpush.bf16.msra.mxu0 0
    %1615 = vmatpush.bf16.msra.mxu0 0
    %1616 = vmatpush.bf16.msra.mxu0 %v1607
    %1617 = vmatmul.bf16.gmra.mxu0 %v1604
    %v1618 = vpop.f32.mrf.mxu0
    %v1619 = vadd.f32 0.0, %v1618
    %v1620 = vpop.f32.mrf.mxu0
    %1621 = vdwg.mxu0
    %1622 = vrot.lane.b32.xlu0 %v1157, 88
    %v1623 = vpop.permute.xlu0 %1622
    %v1625 = vsel %vm706, %v1474, 0
    %v1628 = vsel %vm994, %v1623, 0
    %1630 = vmatpush.bf16.msra.mxu0 0
    %1631 = vmatpush.bf16.msra.mxu0 0
    %1632 = vmatpush.bf16.msra.mxu0 0
    %1633 = vmatpush.bf16.msra.mxu0 0
    %1634 = vmatpush.bf16.msra.mxu0 0
    %1635 = vmatpush.bf16.msra.mxu0 0
    %1636 = vmatpush.bf16.msra.mxu0 0
    %1637 = vmatpush.bf16.msra.mxu0 %v1628
    %1638 = vmatmul.bf16.gmra.mxu0 %v1625
    %v1639 = vpop.f32.mrf.mxu0
    %v1640 = vadd.f32 0.0, %v1639
    %v1641 = vpop.f32.mrf.mxu0
    %1642 = vdwg.mxu0
    %1643 = vrot.lane.b32.xlu0 %v705, 112
    %v1644 = vpop.permute.xlu0 %1643
    %1645 = vrot.lane.b32.xlu0 %v988, 112
    %v1646 = vpop.permute.xlu0 %1645
    %v1648 = vsel %vm706, %v1644, 0
    %v1651 = vsel %vm706, %v1646, 0
    %1653 = vmatpush.bf16.xpose.msra.mxu0 0
    %1654 = vmatpush.bf16.xpose.msra.mxu0 0
    %1655 = vmatpush.bf16.xpose.msra.mxu0 0
    %1656 = vmatpush.bf16.xpose.msra.mxu0 0
    %1657 = vmatpush.bf16.xpose.msra.mxu0 0
    %1658 = vmatpush.bf16.xpose.msra.mxu0 0
    %1659 = vmatpush.bf16.xpose.msra.mxu0 0
    %1660 = vmatpush.bf16.xpose.msra.mxu0 %v1651
    %1661 = vmatmul.bf16.gmra.mxu0 %v1648
    %v1662 = vpop.f32.mrf.mxu0
    %v1663 = vadd.f32 0.0, %v1662
    %v1664 = vpop.f32.mrf.mxu0
    %1665 = vdwg.mxu0
    %1666 = vrot.lane.b32.xlu0 %v727, 112
    %v1667 = vpop.permute.xlu0 %1666
    %1668 = vrot.lane.b32.xlu0 %v1013, 112
    %v1669 = vpop.permute.xlu0 %1668
    %v1671 = vsel %vm706, %v1667, 0
    %v1674 = vsel %vm706, %v1669, 0
    %1676 = vmatpush.bf16.xpose.msra.mxu0 0
    %1677 = vmatpush.bf16.xpose.msra.mxu0 0
    %1678 = vmatpush.bf16.xpose.msra.mxu0 0
    %1679 = vmatpush.bf16.xpose.msra.mxu0 0
    %1680 = vmatpush.bf16.xpose.msra.mxu0 0
    %1681 = vmatpush.bf16.xpose.msra.mxu0 0
    %1682 = vmatpush.bf16.xpose.msra.mxu0 0
    %1683 = vmatpush.bf16.xpose.msra.mxu0 %v1674
    %1684 = vmatmul.bf16.gmra.mxu0 %v1671
    %v1685 = vpop.f32.mrf.mxu0
    %v1686 = vadd.f32 0.0, %v1685
    %v1687 = vpop.f32.mrf.mxu0
    %1688 = vdwg.mxu0
    %1689 = vrot.lane.b32.xlu0 %v748, 112
    %v1690 = vpop.permute.xlu0 %1689
    %1691 = vrot.lane.b32.xlu0 %v1037, 112
    %v1692 = vpop.permute.xlu0 %1691
    %v1694 = vsel %vm706, %v1690, 0
    %v1697 = vsel %vm706, %v1692, 0
    %1699 = vmatpush.bf16.xpose.msra.mxu0 0
    %1700 = vmatpush.bf16.xpose.msra.mxu0 0
    %1701 = vmatpush.bf16.xpose.msra.mxu0 0
    %1702 = vmatpush.bf16.xpose.msra.mxu0 0
    %1703 = vmatpush.bf16.xpose.msra.mxu0 0
    %1704 = vmatpush.bf16.xpose.msra.mxu0 0
    %1705 = vmatpush.bf16.xpose.msra.mxu0 0
    %1706 = vmatpush.bf16.xpose.msra.mxu0 %v1697
    %1707 = vmatmul.bf16.gmra.mxu0 %v1694
    %v1708 = vpop.f32.mrf.mxu0
    %v1709 = vadd.f32 0.0, %v1708
    %v1710 = vpop.f32.mrf.mxu0
    %1711 = vdwg.mxu0
    %1712 = vrot.lane.b32.xlu0 %v769, 112
    %v1713 = vpop.permute.xlu0 %1712
    %1714 = vrot.lane.b32.xlu0 %v1061, 112
    %v1715 = vpop.permute.xlu0 %1714
    %v1717 = vsel %vm706, %v1713, 0
    %v1720 = vsel %vm706, %v1715, 0
    %1722 = vmatpush.bf16.xpose.msra.mxu0 0
    %1723 = vmatpush.bf16.xpose.msra.mxu0 0
    %1724 = vmatpush.bf16.xpose.msra.mxu0 0
    %1725 = vmatpush.bf16.xpose.msra.mxu0 0
    %1726 = vmatpush.bf16.xpose.msra.mxu0 0
    %1727 = vmatpush.bf16.xpose.msra.mxu0 0
    %1728 = vmatpush.bf16.xpose.msra.mxu0 0
    %1729 = vmatpush.bf16.xpose.msra.mxu0 %v1720
    %1730 = vmatmul.bf16.gmra.mxu0 %v1717
    %v1731 = vpop.f32.mrf.mxu0
    %v1732 = vadd.f32 0.0, %v1731
    %v1733 = vpop.f32.mrf.mxu0
    %1734 = vdwg.mxu0
    %1735 = vrot.lane.b32.xlu0 %v790, 112
    %v1736 = vpop.permute.xlu0 %1735
    %1737 = vrot.lane.b32.xlu0 %v1085, 112
    %v1738 = vpop.permute.xlu0 %1737
    %v1740 = vsel %vm706, %v1736, 0
    %v1743 = vsel %vm706, %v1738, 0
    %1745 = vmatpush.bf16.xpose.msra.mxu0 0
    %1746 = vmatpush.bf16.xpose.msra.mxu0 0
    %1747 = vmatpush.bf16.xpose.msra.mxu0 0
    %1748 = vmatpush.bf16.xpose.msra.mxu0 0
    %1749 = vmatpush.bf16.xpose.msra.mxu0 0
    %1750 = vmatpush.bf16.xpose.msra.mxu0 0
    %1751 = vmatpush.bf16.xpose.msra.mxu0 0
    %1752 = vmatpush.bf16.xpose.msra.mxu0 %v1743
    %1753 = vmatmul.bf16.gmra.mxu0 %v1740
    %v1754 = vpop.f32.mrf.mxu0
    %v1755 = vadd.f32 0.0, %v1754
    %v1756 = vpop.f32.mrf.mxu0
    %1757 = vdwg.mxu0
    %1758 = vrot.lane.b32.xlu0 %v811, 112
    %v1759 = vpop.permute.xlu0 %1758
    %1760 = vrot.lane.b32.xlu0 %v1109, 112
    %v1761 = vpop.permute.xlu0 %1760
    %v1763 = vsel %vm706, %v1759, 0
    %v1766 = vsel %vm706, %v1761, 0
    %1768 = vmatpush.bf16.xpose.msra.mxu0 0
    %1769 = vmatpush.bf16.xpose.msra.mxu0 0
    %1770 = vmatpush.bf16.xpose.msra.mxu0 0
    %1771 = vmatpush.bf16.xpose.msra.mxu0 0
    %1772 = vmatpush.bf16.xpose.msra.mxu0 0
    %1773 = vmatpush.bf16.xpose.msra.mxu0 0
    %1774 = vmatpush.bf16.xpose.msra.mxu0 0
    %1775 = vmatpush.bf16.xpose.msra.mxu0 %v1766
    %1776 = vmatmul.bf16.gmra.mxu0 %v1763
    %v1777 = vpop.f32.mrf.mxu0
    %v1778 = vadd.f32 0.0, %v1777
    %v1779 = vpop.f32.mrf.mxu0
    %1780 = vdwg.mxu0
    %1781 = vrot.lane.b32.xlu0 %v832, 112
    %v1782 = vpop.permute.xlu0 %1781
    %1783 = vrot.lane.b32.xlu0 %v1133, 112
    %v1784 = vpop.permute.xlu0 %1783
    %v1786 = vsel %vm706, %v1782, 0
    %v1789 = vsel %vm706, %v1784, 0
    %1791 = vmatpush.bf16.xpose.msra.mxu0 0
    %1792 = vmatpush.bf16.xpose.msra.mxu0 0
    %1793 = vmatpush.bf16.xpose.msra.mxu0 0
    %1794 = vmatpush.bf16.xpose.msra.mxu0 0
    %1795 = vmatpush.bf16.xpose.msra.mxu0 0
    %1796 = vmatpush.bf16.xpose.msra.mxu0 0
    %1797 = vmatpush.bf16.xpose.msra.mxu0 0
    %1798 = vmatpush.bf16.xpose.msra.mxu0 %v1789
    %1799 = vmatmul.bf16.gmra.mxu0 %v1786
    %v1800 = vpop.f32.mrf.mxu0
    %v1801 = vadd.f32 0.0, %v1800
    %v1802 = vpop.f32.mrf.mxu0
    %1803 = vdwg.mxu0
    %1804 = vrot.lane.b32.xlu0 %v853, 112
    %v1805 = vpop.permute.xlu0 %1804
    %1806 = vrot.lane.b32.xlu0 %v1157, 112
    %v1807 = vpop.permute.xlu0 %1806
    %v1809 = vsel %vm706, %v1805, 0
    %v1812 = vsel %vm706, %v1807, 0
    %1814 = vmatpush.bf16.xpose.msra.mxu0 0
    %1815 = vmatpush.bf16.xpose.msra.mxu0 0
    %1816 = vmatpush.bf16.xpose.msra.mxu0 0
    %1817 = vmatpush.bf16.xpose.msra.mxu0 0
    %1818 = vmatpush.bf16.xpose.msra.mxu0 0
    %1819 = vmatpush.bf16.xpose.msra.mxu0 0
    %1820 = vmatpush.bf16.xpose.msra.mxu0 0
    %1821 = vmatpush.bf16.xpose.msra.mxu0 %v1812
    %1822 = vmatmul.bf16.gmra.mxu0 %v1809
    %v1823 = vpop.f32.mrf.mxu0
    %v1824 = vadd.f32 0.0, %v1823
    %v1825 = vpop.f32.mrf.mxu0
    %1826 = vdwg.mxu0
    %v1827 = vmul.f32 %v1663, 0.35355338
    %v1828 = vmul.f32 %v1686, 0.35355338
    %v1829 = vmul.f32 %v1709, 0.35355338
    %v1830 = vmul.f32 %v1732, 0.35355338
    %v1831 = vmul.f32 %v1755, 0.35355338
    %v1832 = vmul.f32 %v1778, 0.35355338
    %v1833 = vmul.f32 %v1801, 0.35355338
    %v1834 = vmul.f32 %v1824, 0.35355338
    %v1835 = vadd.f32 %v1827, %v688
    %v1836 = vadd.f32 %v1828, %v690
    %v1837 = vadd.f32 %v1829, %v691
    %v1838 = vadd.f32 %v1830, %v692
    %v1839 = vadd.f32 %v1831, %v693
    %v1840 = vadd.f32 %v1832, %v694
    %v1841 = vadd.f32 %v1833, %v695
    %v1842 = vadd.f32 %v1834, %v696
    %v1843 = vsel %vm889, %v1835, -inf
    %1844 = vmax.xlane.f32.xlu0 %v1843
    %v1845 = vpop.xlane.xlu0 %1844
    %v1846 = vsel %vm889, %v1836, -inf
    %1847 = vmax.xlane.f32.xlu0 %v1846
    %v1848 = vpop.xlane.xlu0 %1847
    %v1849 = vsel %vm889, %v1837, -inf
    %1850 = vmax.xlane.f32.xlu0 %v1849
    %v1851 = vpop.xlane.xlu0 %1850
    %v1852 = vsel %vm889, %v1838, -inf
    %1853 = vmax.xlane.f32.xlu0 %v1852
    %v1854 = vpop.xlane.xlu0 %1853
    %v1855 = vsel %vm889, %v1839, -inf
    %1856 = vmax.xlane.f32.xlu0 %v1855
    %v1857 = vpop.xlane.xlu0 %1856
    %v1858 = vsel %vm889, %v1840, -inf
    %1859 = vmax.xlane.f32.xlu0 %v1858
    %v1860 = vpop.xlane.xlu0 %1859
    %v1861 = vsel %vm889, %v1841, -inf
    %1862 = vmax.xlane.f32.xlu0 %v1861
    %v1863 = vpop.xlane.xlu0 %1862
    %v1864 = vsel %vm889, %v1842, -inf
    %1865 = vmax.xlane.f32.xlu0 %v1864
    %v1866 = vpop.xlane.xlu0 %1865
    %v1867 = vsub.f32 %v1835, %v1845
    %v1868 = vsub.f32 %v1836, %v1848
    %v1869 = vsub.f32 %v1837, %v1851
    %v1870 = vsub.f32 %v1838, %v1854
    %v1871 = vsub.f32 %v1839, %v1857
    %v1872 = vsub.f32 %v1840, %v1860
    %v1873 = vsub.f32 %v1841, %v1863
    %v1874 = vsub.f32 %v1842, %v1866
    %v1875 = vmul.f32 %v1867, 1.442695
    %v1876 = vpow.pop %v1875
    %v1877 = vmul.f32 %v1868, 1.442695
    %v1878 = vpow.pop %v1877
    %v1879 = vmul.f32 %v1869, 1.442695
    %v1880 = vpow.pop %v1879
    %v1881 = vmul.f32 %v1870, 1.442695
    %v1882 = vpow.pop %v1881
    %v1883 = vmul.f32 %v1871, 1.442695
    %v1884 = vpow.pop %v1883
    %v1885 = vmul.f32 %v1872, 1.442695
    %v1886 = vpow.pop %v1885
    %v1887 = vmul.f32 %v1873, 1.442695
    %v1888 = vpow.pop %v1887
    %v1889 = vmul.f32 %v1874, 1.442695
    %v1890 = vpow.pop %v1889
    %v1891 = vsel %vm889, %v1876, 0.0
    %1892 = vadd.xlane.f32.xlu0 %v1891
    %v1893 = vpop.xlane.xlu0 %1892
    %v1894 = vsel %vm889, %v1878, 0.0
    %1895 = vadd.xlane.f32.xlu0 %v1894
    %v1896 = vpop.xlane.xlu0 %1895
    %v1897 = vsel %vm889, %v1880, 0.0
    %1898 = vadd.xlane.f32.xlu0 %v1897
    %v1899 = vpop.xlane.xlu0 %1898
    %v1900 = vsel %vm889, %v1882, 0.0
    %1901 = vadd.xlane.f32.xlu0 %v1900
    %v1902 = vpop.xlane.xlu0 %1901
    %v1903 = vsel %vm889, %v1884, 0.0
    %1904 = vadd.xlane.f32.xlu0 %v1903
    %v1905 = vpop.xlane.xlu0 %1904
    %v1906 = vsel %vm889, %v1886, 0.0
    %1907 = vadd.xlane.f32.xlu0 %v1906
    %v1908 = vpop.xlane.xlu0 %1907
    %v1909 = vsel %vm889, %v1888, 0.0
    %1910 = vadd.xlane.f32.xlu0 %v1909
    %v1911 = vpop.xlane.xlu0 %1910
    %v1912 = vsel %vm889, %v1890, 0.0
    %1913 = vadd.xlane.f32.xlu0 %v1912
    %v1914 = vpop.xlane.xlu0 %1913
    %v1915 = vrcp.pop %v1893
    %v1916 = vrcp.pop %v1896
    %v1917 = vrcp.pop %v1899
    %v1918 = vrcp.pop %v1902
    %v1919 = vrcp.pop %v1905
    %v1920 = vrcp.pop %v1908
    %v1921 = vrcp.pop %v1911
    %v1922 = vrcp.pop %v1914
    %v1923 = vmul.f32 %v1876, %v1915
    %v1924 = vmul.f32 %v1878, %v1916
    %v1925 = vmul.f32 %v1880, %v1917
    %v1926 = vmul.f32 %v1882, %v1918
    %v1927 = vmul.f32 %v1884, %v1919
    %v1928 = vmul.f32 %v1886, %v1920
    %v1929 = vmul.f32 %v1888, %v1921
    %v1930 = vmul.f32 %v1890, %v1922
    %v1931 = vpack.c.bf16 %v1923, %v1923
    %v1932 = vpack.c.bf16 %v1924, %v1924
    %v1933 = vpack.c.bf16 %v1925, %v1925
    %v1934 = vpack.c.bf16 %v1926, %v1926
    %v1935 = vpack.c.bf16 %v1927, %v1927
    %v1936 = vpack.c.bf16 %v1928, %v1928
    %v1937 = vpack.c.bf16 %v1929, %v1929
    %v1938 = vpack.c.bf16 %v1930, %v1930
    %1939 = vrot.lane.b32.xlu0 %v988, 80
    %v1940 = vpop.permute.xlu0 %1939
    %v1942 = vsel %vm706, %v1931, 0
    %v1945 = vsel %vm994, %v1940, 0
    %1947 = vmatpush.bf16.msra.mxu0 0
    %1948 = vmatpush.bf16.msra.mxu0 0
    %1949 = vmatpush.bf16.msra.mxu0 0
    %1950 = vmatpush.bf16.msra.mxu0 0
    %1951 = vmatpush.bf16.msra.mxu0 0
    %1952 = vmatpush.bf16.msra.mxu0 0
    %1953 = vmatpush.bf16.msra.mxu0 0
    %1954 = vmatpush.bf16.msra.mxu0 %v1945
    %1955 = vmatmul.bf16.gmra.mxu0 %v1942
    %v1956 = vpop.f32.mrf.mxu0
    %v1957 = vadd.f32 0.0, %v1956
    %v1958 = vpop.f32.mrf.mxu0
    %1959 = vdwg.mxu0
    %1960 = vrot.lane.b32.xlu0 %v1013, 80
    %v1961 = vpop.permute.xlu0 %1960
    %v1963 = vsel %vm706, %v1932, 0
    %v1966 = vsel %vm994, %v1961, 0
    %1968 = vmatpush.bf16.msra.mxu0 0
    %1969 = vmatpush.bf16.msra.mxu0 0
    %1970 = vmatpush.bf16.msra.mxu0 0
    %1971 = vmatpush.bf16.msra.mxu0 0
    %1972 = vmatpush.bf16.msra.mxu0 0
    %1973 = vmatpush.bf16.msra.mxu0 0
    %1974 = vmatpush.bf16.msra.mxu0 0
    %1975 = vmatpush.bf16.msra.mxu0 %v1966
    %1976 = vmatmul.bf16.gmra.mxu0 %v1963
    %v1977 = vpop.f32.mrf.mxu0
    %v1978 = vadd.f32 0.0, %v1977
    %v1979 = vpop.f32.mrf.mxu0
    %1980 = vdwg.mxu0
    %1981 = vrot.lane.b32.xlu0 %v1037, 80
    %v1982 = vpop.permute.xlu0 %1981
    %v1984 = vsel %vm706, %v1933, 0
    %v1987 = vsel %vm994, %v1982, 0
    %1989 = vmatpush.bf16.msra.mxu0 0
    %1990 = vmatpush.bf16.msra.mxu0 0
    %1991 = vmatpush.bf16.msra.mxu0 0
    %1992 = vmatpush.bf16.msra.mxu0 0
    %1993 = vmatpush.bf16.msra.mxu0 0
    %1994 = vmatpush.bf16.msra.mxu0 0
    %1995 = vmatpush.bf16.msra.mxu0 0
    %1996 = vmatpush.bf16.msra.mxu0 %v1987
    %1997 = vmatmul.bf16.gmra.mxu0 %v1984
    %v1998 = vpop.f32.mrf.mxu0
    %v1999 = vadd.f32 0.0, %v1998
    %v2000 = vpop.f32.mrf.mxu0
    %2001 = vdwg.mxu0
    %2002 = vrot.lane.b32.xlu0 %v1061, 80
    %v2003 = vpop.permute.xlu0 %2002
    %v2005 = vsel %vm706, %v1934, 0
    %v2008 = vsel %vm994, %v2003, 0
    %2010 = vmatpush.bf16.msra.mxu0 0
    %2011 = vmatpush.bf16.msra.mxu0 0
    %2012 = vmatpush.bf16.msra.mxu0 0
    %2013 = vmatpush.bf16.msra.mxu0 0
    %2014 = vmatpush.bf16.msra.mxu0 0
    %2015 = vmatpush.bf16.msra.mxu0 0
    %2016 = vmatpush.bf16.msra.mxu0 0
    %2017 = vmatpush.bf16.msra.mxu0 %v2008
    %2018 = vmatmul.bf16.gmra.mxu0 %v2005
    %v2019 = vpop.f32.mrf.mxu0
    %v2020 = vadd.f32 0.0, %v2019
    %v2021 = vpop.f32.mrf.mxu0
    %2022 = vdwg.mxu0
    %2023 = vrot.lane.b32.xlu0 %v1085, 80
    %v2024 = vpop.permute.xlu0 %2023
    %v2026 = vsel %vm706, %v1935, 0
    %v2029 = vsel %vm994, %v2024, 0
    %2031 = vmatpush.bf16.msra.mxu0 0
    %2032 = vmatpush.bf16.msra.mxu0 0
    %2033 = vmatpush.bf16.msra.mxu0 0
    %2034 = vmatpush.bf16.msra.mxu0 0
    %2035 = vmatpush.bf16.msra.mxu0 0
    %2036 = vmatpush.bf16.msra.mxu0 0
    %2037 = vmatpush.bf16.msra.mxu0 0
    %2038 = vmatpush.bf16.msra.mxu0 %v2029
    %2039 = vmatmul.bf16.gmra.mxu0 %v2026
    %v2040 = vpop.f32.mrf.mxu0
    %v2041 = vadd.f32 0.0, %v2040
    %v2042 = vpop.f32.mrf.mxu0
    %2043 = vdwg.mxu0
    %2044 = vrot.lane.b32.xlu0 %v1109, 80
    %v2045 = vpop.permute.xlu0 %2044
    %v2047 = vsel %vm706, %v1936, 0
    %v2050 = vsel %vm994, %v2045, 0
    %2052 = vmatpush.bf16.msra.mxu0 0
    %2053 = vmatpush.bf16.msra.mxu0 0
    %2054 = vmatpush.bf16.msra.mxu0 0
    %2055 = vmatpush.bf16.msra.mxu0 0
    %2056 = vmatpush.bf16.msra.mxu0 0
    %2057 = vmatpush.bf16.msra.mxu0 0
    %2058 = vmatpush.bf16.msra.mxu0 0
    %2059 = vmatpush.bf16.msra.mxu0 %v2050
    %2060 = vmatmul.bf16.gmra.mxu0 %v2047
    %v2061 = vpop.f32.mrf.mxu0
    %v2062 = vadd.f32 0.0, %v2061
    %v2063 = vpop.f32.mrf.mxu0
    %2064 = vdwg.mxu0
    %2065 = vrot.lane.b32.xlu0 %v1133, 80
    %v2066 = vpop.permute.xlu0 %2065
    %v2068 = vsel %vm706, %v1937, 0
    %v2071 = vsel %vm994, %v2066, 0
    %2073 = vmatpush.bf16.msra.mxu0 0
    %2074 = vmatpush.bf16.msra.mxu0 0
    %2075 = vmatpush.bf16.msra.mxu0 0
    %2076 = vmatpush.bf16.msra.mxu0 0
    %2077 = vmatpush.bf16.msra.mxu0 0
    %2078 = vmatpush.bf16.msra.mxu0 0
    %2079 = vmatpush.bf16.msra.mxu0 0
    %2080 = vmatpush.bf16.msra.mxu0 %v2071
    %2081 = vmatmul.bf16.gmra.mxu0 %v2068
    %v2082 = vpop.f32.mrf.mxu0
    %v2083 = vadd.f32 0.0, %v2082
    %v2084 = vpop.f32.mrf.mxu0
    %2085 = vdwg.mxu0
    %2086 = vrot.lane.b32.xlu0 %v1157, 80
    %v2087 = vpop.permute.xlu0 %2086
    %v2089 = vsel %vm706, %v1938, 0
    %v2092 = vsel %vm994, %v2087, 0
    %2094 = vmatpush.bf16.msra.mxu0 0
    %2095 = vmatpush.bf16.msra.mxu0 0
    %2096 = vmatpush.bf16.msra.mxu0 0
    %2097 = vmatpush.bf16.msra.mxu0 0
    %2098 = vmatpush.bf16.msra.mxu0 0
    %2099 = vmatpush.bf16.msra.mxu0 0
    %2100 = vmatpush.bf16.msra.mxu0 0
    %2101 = vmatpush.bf16.msra.mxu0 %v2092
    %2102 = vmatmul.bf16.gmra.mxu0 %v2089
    %v2103 = vpop.f32.mrf.mxu0
    %v2104 = vadd.f32 0.0, %v2103
    %v2105 = vpop.f32.mrf.mxu0
    %2106 = vdwg.mxu0
    %2107 = vrot.lane.b32.xlu0 %v705, 104
    %v2108 = vpop.permute.xlu0 %2107
    %2109 = vrot.lane.b32.xlu0 %v988, 104
    %v2110 = vpop.permute.xlu0 %2109
    %v2112 = vsel %vm706, %v2108, 0
    %v2115 = vsel %vm706, %v2110, 0
    %2117 = vmatpush.bf16.xpose.msra.mxu0 0
    %2118 = vmatpush.bf16.xpose.msra.mxu0 0
    %2119 = vmatpush.bf16.xpose.msra.mxu0 0
    %2120 = vmatpush.bf16.xpose.msra.mxu0 0
    %2121 = vmatpush.bf16.xpose.msra.mxu0 0
    %2122 = vmatpush.bf16.xpose.msra.mxu0 0
    %2123 = vmatpush.bf16.xpose.msra.mxu0 0
    %2124 = vmatpush.bf16.xpose.msra.mxu0 %v2115
    %2125 = vmatmul.bf16.gmra.mxu0 %v2112
    %v2126 = vpop.f32.mrf.mxu0
    %v2127 = vadd.f32 0.0, %v2126
    %v2128 = vpop.f32.mrf.mxu0
    %2129 = vdwg.mxu0
    %2130 = vrot.lane.b32.xlu0 %v727, 104
    %v2131 = vpop.permute.xlu0 %2130
    %2132 = vrot.lane.b32.xlu0 %v1013, 104
    %v2133 = vpop.permute.xlu0 %2132
    %v2135 = vsel %vm706, %v2131, 0
    %v2138 = vsel %vm706, %v2133, 0
    %2140 = vmatpush.bf16.xpose.msra.mxu0 0
    %2141 = vmatpush.bf16.xpose.msra.mxu0 0
    %2142 = vmatpush.bf16.xpose.msra.mxu0 0
    %2143 = vmatpush.bf16.xpose.msra.mxu0 0
    %2144 = vmatpush.bf16.xpose.msra.mxu0 0
    %2145 = vmatpush.bf16.xpose.msra.mxu0 0
    %2146 = vmatpush.bf16.xpose.msra.mxu0 0
    %2147 = vmatpush.bf16.xpose.msra.mxu0 %v2138
    %2148 = vmatmul.bf16.gmra.mxu0 %v2135
    %v2149 = vpop.f32.mrf.mxu0
    %v2150 = vadd.f32 0.0, %v2149
    %v2151 = vpop.f32.mrf.mxu0
    %2152 = vdwg.mxu0
    %2153 = vrot.lane.b32.xlu0 %v748, 104
    %v2154 = vpop.permute.xlu0 %2153
    %2155 = vrot.lane.b32.xlu0 %v1037, 104
    %v2156 = vpop.permute.xlu0 %2155
    %v2158 = vsel %vm706, %v2154, 0
    %v2161 = vsel %vm706, %v2156, 0
    %2163 = vmatpush.bf16.xpose.msra.mxu0 0
    %2164 = vmatpush.bf16.xpose.msra.mxu0 0
    %2165 = vmatpush.bf16.xpose.msra.mxu0 0
    %2166 = vmatpush.bf16.xpose.msra.mxu0 0
    %2167 = vmatpush.bf16.xpose.msra.mxu0 0
    %2168 = vmatpush.bf16.xpose.msra.mxu0 0
    %2169 = vmatpush.bf16.xpose.msra.mxu0 0
    %2170 = vmatpush.bf16.xpose.msra.mxu0 %v2161
    %2171 = vmatmul.bf16.gmra.mxu0 %v2158
    %v2172 = vpop.f32.mrf.mxu0
    %v2173 = vadd.f32 0.0, %v2172
    %v2174 = vpop.f32.mrf.mxu0
    %2175 = vdwg.mxu0
    %2176 = vrot.lane.b32.xlu0 %v769, 104
    %v2177 = vpop.permute.xlu0 %2176
    %2178 = vrot.lane.b32.xlu0 %v1061, 104
    %v2179 = vpop.permute.xlu0 %2178
    %v2181 = vsel %vm706, %v2177, 0
    %v2184 = vsel %vm706, %v2179, 0
    %2186 = vmatpush.bf16.xpose.msra.mxu0 0
    %2187 = vmatpush.bf16.xpose.msra.mxu0 0
    %2188 = vmatpush.bf16.xpose.msra.mxu0 0
    %2189 = vmatpush.bf16.xpose.msra.mxu0 0
    %2190 = vmatpush.bf16.xpose.msra.mxu0 0
    %2191 = vmatpush.bf16.xpose.msra.mxu0 0
    %2192 = vmatpush.bf16.xpose.msra.mxu0 0
    %2193 = vmatpush.bf16.xpose.msra.mxu0 %v2184
    %2194 = vmatmul.bf16.gmra.mxu0 %v2181
    %v2195 = vpop.f32.mrf.mxu0
    %v2196 = vadd.f32 0.0, %v2195
    %v2197 = vpop.f32.mrf.mxu0
    %2198 = vdwg.mxu0
    %2199 = vrot.lane.b32.xlu0 %v790, 104
    %v2200 = vpop.permute.xlu0 %2199
    %2201 = vrot.lane.b32.xlu0 %v1085, 104
    %v2202 = vpop.permute.xlu0 %2201
    %v2204 = vsel %vm706, %v2200, 0
    %v2207 = vsel %vm706, %v2202, 0
    %2209 = vmatpush.bf16.xpose.msra.mxu0 0
    %2210 = vmatpush.bf16.xpose.msra.mxu0 0
    %2211 = vmatpush.bf16.xpose.msra.mxu0 0
    %2212 = vmatpush.bf16.xpose.msra.mxu0 0
    %2213 = vmatpush.bf16.xpose.msra.mxu0 0
    %2214 = vmatpush.bf16.xpose.msra.mxu0 0
    %2215 = vmatpush.bf16.xpose.msra.mxu0 0
    %2216 = vmatpush.bf16.xpose.msra.mxu0 %v2207
    %2217 = vmatmul.bf16.gmra.mxu0 %v2204
    %v2218 = vpop.f32.mrf.mxu0
    %v2219 = vadd.f32 0.0, %v2218
    %v2220 = vpop.f32.mrf.mxu0
    %2221 = vdwg.mxu0
    %2222 = vrot.lane.b32.xlu0 %v811, 104
    %v2223 = vpop.permute.xlu0 %2222
    %2224 = vrot.lane.b32.xlu0 %v1109, 104
    %v2225 = vpop.permute.xlu0 %2224
    %v2227 = vsel %vm706, %v2223, 0
    %v2230 = vsel %vm706, %v2225, 0
    %2232 = vmatpush.bf16.xpose.msra.mxu0 0
    %2233 = vmatpush.bf16.xpose.msra.mxu0 0
    %2234 = vmatpush.bf16.xpose.msra.mxu0 0
    %2235 = vmatpush.bf16.xpose.msra.mxu0 0
    %2236 = vmatpush.bf16.xpose.msra.mxu0 0
    %2237 = vmatpush.bf16.xpose.msra.mxu0 0
    %2238 = vmatpush.bf16.xpose.msra.mxu0 0
    %2239 = vmatpush.bf16.xpose.msra.mxu0 %v2230
    %2240 = vmatmul.bf16.gmra.mxu0 %v2227
    %v2241 = vpop.f32.mrf.mxu0
    %v2242 = vadd.f32 0.0, %v2241
    %v2243 = vpop.f32.mrf.mxu0
    %2244 = vdwg.mxu0
    %2245 = vrot.lane.b32.xlu0 %v832, 104
    %v2246 = vpop.permute.xlu0 %2245
    %2247 = vrot.lane.b32.xlu0 %v1133, 104
    %v2248 = vpop.permute.xlu0 %2247
    %v2250 = vsel %vm706, %v2246, 0
    %v2253 = vsel %vm706, %v2248, 0
    %2255 = vmatpush.bf16.xpose.msra.mxu0 0
    %2256 = vmatpush.bf16.xpose.msra.mxu0 0
    %2257 = vmatpush.bf16.xpose.msra.mxu0 0
    %2258 = vmatpush.bf16.xpose.msra.mxu0 0
    %2259 = vmatpush.bf16.xpose.msra.mxu0 0
    %2260 = vmatpush.bf16.xpose.msra.mxu0 0
    %2261 = vmatpush.bf16.xpose.msra.mxu0 0
    %2262 = vmatpush.bf16.xpose.msra.mxu0 %v2253
    %2263 = vmatmul.bf16.gmra.mxu0 %v2250
    %v2264 = vpop.f32.mrf.mxu0
    %v2265 = vadd.f32 0.0, %v2264
    %v2266 = vpop.f32.mrf.mxu0
    %2267 = vdwg.mxu0
    %2268 = vrot.lane.b32.xlu0 %v853, 104
    %v2269 = vpop.permute.xlu0 %2268
    %2270 = vrot.lane.b32.xlu0 %v1157, 104
    %v2271 = vpop.permute.xlu0 %2270
    %v2273 = vsel %vm706, %v2269, 0
    %v2276 = vsel %vm706, %v2271, 0
    %2278 = vmatpush.bf16.xpose.msra.mxu0 0
    %2279 = vmatpush.bf16.xpose.msra.mxu0 0
    %2280 = vmatpush.bf16.xpose.msra.mxu0 0
    %2281 = vmatpush.bf16.xpose.msra.mxu0 0
    %2282 = vmatpush.bf16.xpose.msra.mxu0 0
    %2283 = vmatpush.bf16.xpose.msra.mxu0 0
    %2284 = vmatpush.bf16.xpose.msra.mxu0 0
    %2285 = vmatpush.bf16.xpose.msra.mxu0 %v2276
    %2286 = vmatmul.bf16.gmra.mxu0 %v2273
    %v2287 = vpop.f32.mrf.mxu0
    %v2288 = vadd.f32 0.0, %v2287
    %v2289 = vpop.f32.mrf.mxu0
    %2290 = vdwg.mxu0
    %v2291 = vmul.f32 %v2127, 0.35355338
    %v2292 = vmul.f32 %v2150, 0.35355338
    %v2293 = vmul.f32 %v2173, 0.35355338
    %v2294 = vmul.f32 %v2196, 0.35355338
    %v2295 = vmul.f32 %v2219, 0.35355338
    %v2296 = vmul.f32 %v2242, 0.35355338
    %v2297 = vmul.f32 %v2265, 0.35355338
    %v2298 = vmul.f32 %v2288, 0.35355338
    %v2299 = vadd.f32 %v2291, %v688
    %v2300 = vadd.f32 %v2292, %v690
    %v2301 = vadd.f32 %v2293, %v691
    %v2302 = vadd.f32 %v2294, %v692
    %v2303 = vadd.f32 %v2295, %v693
    %v2304 = vadd.f32 %v2296, %v694
    %v2305 = vadd.f32 %v2297, %v695
    %v2306 = vadd.f32 %v2298, %v696
    %v2307 = vsel %vm889, %v2299, -inf
    %2308 = vmax.xlane.f32.xlu0 %v2307
    %v2309 = vpop.xlane.xlu0 %2308
    %v2310 = vsel %vm889, %v2300, -inf
    %2311 = vmax.xlane.f32.xlu0 %v2310
    %v2312 = vpop.xlane.xlu0 %2311
    %v2313 = vsel %vm889, %v2301, -inf
    %2314 = vmax.xlane.f32.xlu0 %v2313
    %v2315 = vpop.xlane.xlu0 %2314
    %v2316 = vsel %vm889, %v2302, -inf
    %2317 = vmax.xlane.f32.xlu0 %v2316
    %v2318 = vpop.xlane.xlu0 %2317
    %v2319 = vsel %vm889, %v2303, -inf
    %2320 = vmax.xlane.f32.xlu0 %v2319
    %v2321 = vpop.xlane.xlu0 %2320
    %v2322 = vsel %vm889, %v2304, -inf
    %2323 = vmax.xlane.f32.xlu0 %v2322
    %v2324 = vpop.xlane.xlu0 %2323
    %v2325 = vsel %vm889, %v2305, -inf
    %2326 = vmax.xlane.f32.xlu0 %v2325
    %v2327 = vpop.xlane.xlu0 %2326
    %v2328 = vsel %vm889, %v2306, -inf
    %2329 = vmax.xlane.f32.xlu0 %v2328
    %v2330 = vpop.xlane.xlu0 %2329
    %v2331 = vsub.f32 %v2299, %v2309
    %v2332 = vsub.f32 %v2300, %v2312
    %v2333 = vsub.f32 %v2301, %v2315
    %v2334 = vsub.f32 %v2302, %v2318
    %v2335 = vsub.f32 %v2303, %v2321
    %v2336 = vsub.f32 %v2304, %v2324
    %v2337 = vsub.f32 %v2305, %v2327
    %v2338 = vsub.f32 %v2306, %v2330
    %v2339 = vmul.f32 %v2331, 1.442695
    %v2340 = vpow.pop %v2339
    %v2341 = vmul.f32 %v2332, 1.442695
    %v2342 = vpow.pop %v2341
    %v2343 = vmul.f32 %v2333, 1.442695
    %v2344 = vpow.pop %v2343
    %v2345 = vmul.f32 %v2334, 1.442695
    %v2346 = vpow.pop %v2345
    %v2347 = vmul.f32 %v2335, 1.442695
    %v2348 = vpow.pop %v2347
    %v2349 = vmul.f32 %v2336, 1.442695
    %v2350 = vpow.pop %v2349
    %v2351 = vmul.f32 %v2337, 1.442695
    %v2352 = vpow.pop %v2351
    %v2353 = vmul.f32 %v2338, 1.442695
    %v2354 = vpow.pop %v2353
    %v2355 = vsel %vm889, %v2340, 0.0
    %2356 = vadd.xlane.f32.xlu0 %v2355
    %v2357 = vpop.xlane.xlu0 %2356
    %v2358 = vsel %vm889, %v2342, 0.0
    %2359 = vadd.xlane.f32.xlu0 %v2358
    %v2360 = vpop.xlane.xlu0 %2359
    %v2361 = vsel %vm889, %v2344, 0.0
    %2362 = vadd.xlane.f32.xlu0 %v2361
    %v2363 = vpop.xlane.xlu0 %2362
    %v2364 = vsel %vm889, %v2346, 0.0
    %2365 = vadd.xlane.f32.xlu0 %v2364
    %v2366 = vpop.xlane.xlu0 %2365
    %v2367 = vsel %vm889, %v2348, 0.0
    %2368 = vadd.xlane.f32.xlu0 %v2367
    %v2369 = vpop.xlane.xlu0 %2368
    %v2370 = vsel %vm889, %v2350, 0.0
    %2371 = vadd.xlane.f32.xlu0 %v2370
    %v2372 = vpop.xlane.xlu0 %2371
    %v2373 = vsel %vm889, %v2352, 0.0
    %2374 = vadd.xlane.f32.xlu0 %v2373
    %v2375 = vpop.xlane.xlu0 %2374
    %v2376 = vsel %vm889, %v2354, 0.0
    %2377 = vadd.xlane.f32.xlu0 %v2376
    %v2378 = vpop.xlane.xlu0 %2377
    %v2379 = vrcp.pop %v2357
    %v2380 = vrcp.pop %v2360
    %v2381 = vrcp.pop %v2363
    %v2382 = vrcp.pop %v2366
    %v2383 = vrcp.pop %v2369
    %v2384 = vrcp.pop %v2372
    %v2385 = vrcp.pop %v2375
    %v2386 = vrcp.pop %v2378
    %v2387 = vmul.f32 %v2340, %v2379
    %v2388 = vmul.f32 %v2342, %v2380
    %v2389 = vmul.f32 %v2344, %v2381
    %v2390 = vmul.f32 %v2346, %v2382
    %v2391 = vmul.f32 %v2348, %v2383
    %v2392 = vmul.f32 %v2350, %v2384
    %v2393 = vmul.f32 %v2352, %v2385
    %v2394 = vmul.f32 %v2354, %v2386
    %v2395 = vpack.c.bf16 %v2387, %v2387
    %v2396 = vpack.c.bf16 %v2388, %v2388
    %v2397 = vpack.c.bf16 %v2389, %v2389
    %v2398 = vpack.c.bf16 %v2390, %v2390
    %v2399 = vpack.c.bf16 %v2391, %v2391
    %v2400 = vpack.c.bf16 %v2392, %v2392
    %v2401 = vpack.c.bf16 %v2393, %v2393
    %v2402 = vpack.c.bf16 %v2394, %v2394
    %2403 = vrot.lane.b32.xlu0 %v988, 72
    %v2404 = vpop.permute.xlu0 %2403
    %v2406 = vsel %vm706, %v2395, 0
    %v2409 = vsel %vm994, %v2404, 0
    %2411 = vmatpush.bf16.msra.mxu0 0
    %2412 = vmatpush.bf16.msra.mxu0 0
    %2413 = vmatpush.bf16.msra.mxu0 0
    %2414 = vmatpush.bf16.msra.mxu0 0
    %2415 = vmatpush.bf16.msra.mxu0 0
    %2416 = vmatpush.bf16.msra.mxu0 0
    %2417 = vmatpush.bf16.msra.mxu0 0
    %2418 = vmatpush.bf16.msra.mxu0 %v2409
    %2419 = vmatmul.bf16.gmra.mxu0 %v2406
    %v2420 = vpop.f32.mrf.mxu0
    %v2421 = vadd.f32 0.0, %v2420
    %v2422 = vpop.f32.mrf.mxu0
    %2423 = vdwg.mxu0
    %2424 = vrot.lane.b32.xlu0 %v1013, 72
    %v2425 = vpop.permute.xlu0 %2424
    %v2427 = vsel %vm706, %v2396, 0
    %v2430 = vsel %vm994, %v2425, 0
    %2432 = vmatpush.bf16.msra.mxu0 0
    %2433 = vmatpush.bf16.msra.mxu0 0
    %2434 = vmatpush.bf16.msra.mxu0 0
    %2435 = vmatpush.bf16.msra.mxu0 0
    %2436 = vmatpush.bf16.msra.mxu0 0
    %2437 = vmatpush.bf16.msra.mxu0 0
    %2438 = vmatpush.bf16.msra.mxu0 0
    %2439 = vmatpush.bf16.msra.mxu0 %v2430
    %2440 = vmatmul.bf16.gmra.mxu0 %v2427
    %v2441 = vpop.f32.mrf.mxu0
    %v2442 = vadd.f32 0.0, %v2441
    %v2443 = vpop.f32.mrf.mxu0
    %2444 = vdwg.mxu0
    %2445 = vrot.lane.b32.xlu0 %v1037, 72
    %v2446 = vpop.permute.xlu0 %2445
    %v2448 = vsel %vm706, %v2397, 0
    %v2451 = vsel %vm994, %v2446, 0
    %2453 = vmatpush.bf16.msra.mxu0 0
    %2454 = vmatpush.bf16.msra.mxu0 0
    %2455 = vmatpush.bf16.msra.mxu0 0
    %2456 = vmatpush.bf16.msra.mxu0 0
    %2457 = vmatpush.bf16.msra.mxu0 0
    %2458 = vmatpush.bf16.msra.mxu0 0
    %2459 = vmatpush.bf16.msra.mxu0 0
    %2460 = vmatpush.bf16.msra.mxu0 %v2451
    %2461 = vmatmul.bf16.gmra.mxu0 %v2448
    %v2462 = vpop.f32.mrf.mxu0
    %v2463 = vadd.f32 0.0, %v2462
    %v2464 = vpop.f32.mrf.mxu0
    %2465 = vdwg.mxu0
    %2466 = vrot.lane.b32.xlu0 %v1061, 72
    %v2467 = vpop.permute.xlu0 %2466
    %v2469 = vsel %vm706, %v2398, 0
    %v2472 = vsel %vm994, %v2467, 0
    %2474 = vmatpush.bf16.msra.mxu0 0
    %2475 = vmatpush.bf16.msra.mxu0 0
    %2476 = vmatpush.bf16.msra.mxu0 0
    %2477 = vmatpush.bf16.msra.mxu0 0
    %2478 = vmatpush.bf16.msra.mxu0 0
    %2479 = vmatpush.bf16.msra.mxu0 0
    %2480 = vmatpush.bf16.msra.mxu0 0
    %2481 = vmatpush.bf16.msra.mxu0 %v2472
    %2482 = vmatmul.bf16.gmra.mxu0 %v2469
    %v2483 = vpop.f32.mrf.mxu0
    %v2484 = vadd.f32 0.0, %v2483
    %v2485 = vpop.f32.mrf.mxu0
    %2486 = vdwg.mxu0
    %2487 = vrot.lane.b32.xlu0 %v1085, 72
    %v2488 = vpop.permute.xlu0 %2487
    %v2490 = vsel %vm706, %v2399, 0
    %v2493 = vsel %vm994, %v2488, 0
    %2495 = vmatpush.bf16.msra.mxu0 0
    %2496 = vmatpush.bf16.msra.mxu0 0
    %2497 = vmatpush.bf16.msra.mxu0 0
    %2498 = vmatpush.bf16.msra.mxu0 0
    %2499 = vmatpush.bf16.msra.mxu0 0
    %2500 = vmatpush.bf16.msra.mxu0 0
    %2501 = vmatpush.bf16.msra.mxu0 0
    %2502 = vmatpush.bf16.msra.mxu0 %v2493
    %2503 = vmatmul.bf16.gmra.mxu0 %v2490
    %v2504 = vpop.f32.mrf.mxu0
    %v2505 = vadd.f32 0.0, %v2504
    %v2506 = vpop.f32.mrf.mxu0
    %2507 = vdwg.mxu0
    %2508 = vrot.lane.b32.xlu0 %v1109, 72
    %v2509 = vpop.permute.xlu0 %2508
    %v2511 = vsel %vm706, %v2400, 0
    %v2514 = vsel %vm994, %v2509, 0
    %2516 = vmatpush.bf16.msra.mxu0 0
    %2517 = vmatpush.bf16.msra.mxu0 0
    %2518 = vmatpush.bf16.msra.mxu0 0
    %2519 = vmatpush.bf16.msra.mxu0 0
    %2520 = vmatpush.bf16.msra.mxu0 0
    %2521 = vmatpush.bf16.msra.mxu0 0
    %2522 = vmatpush.bf16.msra.mxu0 0
    %2523 = vmatpush.bf16.msra.mxu0 %v2514
    %2524 = vmatmul.bf16.gmra.mxu0 %v2511
    %v2525 = vpop.f32.mrf.mxu0
    %v2526 = vadd.f32 0.0, %v2525
    %v2527 = vpop.f32.mrf.mxu0
    %2528 = vdwg.mxu0
    %2529 = vrot.lane.b32.xlu0 %v1133, 72
    %v2530 = vpop.permute.xlu0 %2529
    %v2532 = vsel %vm706, %v2401, 0
    %v2535 = vsel %vm994, %v2530, 0
    %2537 = vmatpush.bf16.msra.mxu0 0
    %2538 = vmatpush.bf16.msra.mxu0 0
    %2539 = vmatpush.bf16.msra.mxu0 0
    %2540 = vmatpush.bf16.msra.mxu0 0
    %2541 = vmatpush.bf16.msra.mxu0 0
    %2542 = vmatpush.bf16.msra.mxu0 0
    %2543 = vmatpush.bf16.msra.mxu0 0
    %2544 = vmatpush.bf16.msra.mxu0 %v2535
    %2545 = vmatmul.bf16.gmra.mxu0 %v2532
    %v2546 = vpop.f32.mrf.mxu0
    %v2547 = vadd.f32 0.0, %v2546
    %v2548 = vpop.f32.mrf.mxu0
    %2549 = vdwg.mxu0
    %2550 = vrot.lane.b32.xlu0 %v1157, 72
    %v2551 = vpop.permute.xlu0 %2550
    %v2553 = vsel %vm706, %v2402, 0
    %v2556 = vsel %vm994, %v2551, 0
    %2558 = vmatpush.bf16.msra.mxu0 0
    %2559 = vmatpush.bf16.msra.mxu0 0
    %2560 = vmatpush.bf16.msra.mxu0 0
    %2561 = vmatpush.bf16.msra.mxu0 0
    %2562 = vmatpush.bf16.msra.mxu0 0
    %2563 = vmatpush.bf16.msra.mxu0 0
    %2564 = vmatpush.bf16.msra.mxu0 0
    %2565 = vmatpush.bf16.msra.mxu0 %v2556
    %2566 = vmatmul.bf16.gmra.mxu0 %v2553
    %v2567 = vpop.f32.mrf.mxu0
    %v2568 = vadd.f32 0.0, %v2567
    %v2569 = vpop.f32.mrf.mxu0
    %2570 = vdwg.mxu0
    %2579 = vrot.lane.b32.xlu0 %v1493, 8
    %v2580 = vpop.permute.xlu0 %2579
    %2581 = vrot.lane.b32.xlu0 %v1514, 8
    %v2582 = vpop.permute.xlu0 %2581
    %2583 = vrot.lane.b32.xlu0 %v1535, 8
    %v2584 = vpop.permute.xlu0 %2583
    %2585 = vrot.lane.b32.xlu0 %v1556, 8
    %v2586 = vpop.permute.xlu0 %2585
    %2587 = vrot.lane.b32.xlu0 %v1577, 8
    %v2588 = vpop.permute.xlu0 %2587
    %2589 = vrot.lane.b32.xlu0 %v1598, 8
    %v2590 = vpop.permute.xlu0 %2589
    %2591 = vrot.lane.b32.xlu0 %v1619, 8
    %v2592 = vpop.permute.xlu0 %2591
    %2593 = vrot.lane.b32.xlu0 %v1640, 8
    %v2594 = vpop.permute.xlu0 %2593
    %2611 = vrot.lane.b32.xlu0 %v1957, 16
    %v2612 = vpop.permute.xlu0 %2611
    %2613 = vrot.lane.b32.xlu0 %v1978, 16
    %v2614 = vpop.permute.xlu0 %2613
    %2615 = vrot.lane.b32.xlu0 %v1999, 16
    %v2616 = vpop.permute.xlu0 %2615
    %2617 = vrot.lane.b32.xlu0 %v2020, 16
    %v2618 = vpop.permute.xlu0 %2617
    %2619 = vrot.lane.b32.xlu0 %v2041, 16
    %v2620 = vpop.permute.xlu0 %2619
    %2621 = vrot.lane.b32.xlu0 %v2062, 16
    %v2622 = vpop.permute.xlu0 %2621
    %2623 = vrot.lane.b32.xlu0 %v2083, 16
    %v2624 = vpop.permute.xlu0 %2623
    %2625 = vrot.lane.b32.xlu0 %v2104, 16
    %v2626 = vpop.permute.xlu0 %2625
    %2643 = vrot.lane.b32.xlu0 %v2421, 24
    %v2644 = vpop.permute.xlu0 %2643
    %2645 = vrot.lane.b32.xlu0 %v2442, 24
    %v2646 = vpop.permute.xlu0 %2645
    %2647 = vrot.lane.b32.xlu0 %v2463, 24
    %v2648 = vpop.permute.xlu0 %2647
    %2649 = vrot.lane.b32.xlu0 %v2484, 24
    %v2650 = vpop.permute.xlu0 %2649
    %2651 = vrot.lane.b32.xlu0 %v2505, 24
    %v2652 = vpop.permute.xlu0 %2651
    %2653 = vrot.lane.b32.xlu0 %v2526, 24
    %v2654 = vpop.permute.xlu0 %2653
    %2655 = vrot.lane.b32.xlu0 %v2547, 24
    %v2656 = vpop.permute.xlu0 %2655
    %2657 = vrot.lane.b32.xlu0 %v2568, 24
    %v2658 = vpop.permute.xlu0 %2657
    %v2667 = vsel %vm706, %v1008, %v2580
    %v2668 = vsel %vm706, %v1032, %v2582
    %v2669 = vsel %vm706, %v1056, %v2584
    %v2670 = vsel %vm706, %v1080, %v2586
    %v2671 = vsel %vm706, %v1104, %v2588
    %v2672 = vsel %vm706, %v1128, %v2590
    %v2673 = vsel %vm706, %v1152, %v2592
    %v2674 = vsel %vm706, %v1176, %v2594
    %vm2675 = vcmask 130048
    %v2676 = vsel %vm2675, %v2667, %v2612
    %v2677 = vsel %vm2675, %v2668, %v2614
    %v2678 = vsel %vm2675, %v2669, %v2616
    %v2679 = vsel %vm2675, %v2670, %v2618
    %v2680 = vsel %vm2675, %v2671, %v2620
    %v2681 = vsel %vm2675, %v2672, %v2622
    %v2682 = vsel %vm2675, %v2673, %v2624
    %v2683 = vsel %vm2675, %v2674, %v2626
    %vm2684 = vcmask 195584
    %v2685 = vsel %vm2684, %v2676, %v2644
    %v2686 = vsel %vm2684, %v2677, %v2646
    %v2687 = vsel %vm2684, %v2678, %v2648
    %v2688 = vsel %vm2684, %v2679, %v2650
    %v2689 = vsel %vm2684, %v2680, %v2652
    %v2690 = vsel %vm2684, %v2681, %v2654
    %v2691 = vsel %vm2684, %v2682, %v2656
    %v2692 = vsel %vm2684, %v2683, %v2658
    %v2693 = vpack.c.bf16 %v2685, %v2685
    %v2694 = vpack.c.bf16 %v2686, %v2686
    %v2695 = vpack.c.bf16 %v2687, %v2687
    %v2696 = vpack.c.bf16 %v2688, %v2688
    %v2697 = vpack.c.bf16 %v2689, %v2689
    %v2698 = vpack.c.bf16 %v2690, %v2690
    %v2699 = vpack.c.bf16 %v2691, %v2691
    %v2700 = vpack.c.bf16 %v2692, %v2692
    %v2701 = vld [vmem:[#allocation6] sm:$0xf]
    %v2702 = vld [vmem:[#allocation6 + $0x4] sm:$0xf]
    %v2703 = vld [vmem:[#allocation6 + $0x8] sm:$0xf]
    %v2704 = vld [vmem:[#allocation6 + $0xc] sm:$0xf]
    %v2705 = vperm.slane %v163, 2
    %v2714 = vunpack.c.l.b16 %v2693
    %v2715 = vunpack.c.l.b16 %v2694
    %v2716 = vunpack.c.l.b16 %v2695
    %v2717 = vunpack.c.l.b16 %v2696
    %v2718 = vunpack.c.l.b16 %v2697
    %v2719 = vunpack.c.l.b16 %v2698
    %v2720 = vunpack.c.l.b16 %v2699
    %v2721 = vunpack.c.l.b16 %v2700
    %v2722 = vrot.slane %v2715, 7
    %v2723 = vsel %vm665, %v2722, %v2714
    %v2724 = vrot.slane %v2716, 6
    %v2725 = vsel %vm669, %v2724, %v2723
    %v2726 = vrot.slane %v2717, 5
    %v2727 = vsel %vm673, %v2726, %v2725
    %v2728 = vrot.slane %v2718, 4
    %vm2729 = vcmask 1044484
    %v2730 = vsel %vm2729, %v2728, %v2727
    %v2731 = vrot.slane %v2719, 3
    %vm2732 = vcmask 1045509
    %v2733 = vsel %vm2732, %v2731, %v2730
    %v2734 = vrot.slane %v2720, 2
    %vm2735 = vcmask 1046534
    %v2736 = vsel %vm2735, %v2734, %v2733
    %v2737 = vrot.slane %v2721, 1
    %vm2738 = vcmask 1047559
    %v2739 = vsel %vm2738, %v2737, %v2736
    %v2740 = vpack.c.b16 %v2739, %v2739
    %v2745 = vunpack.c.l.b16 %v2701
    %v2746 = vunpack.c.l.b16 %v2702
    %v2747 = vunpack.c.l.b16 %v2703
    %v2748 = vunpack.c.l.b16 %v2704
    %v2749 = vpack.c.b16 %v2746, %v2745
    %v2750 = vpack.c.b16 %v2748, %v2747
    %v2754 = vsel %vm298, %v2740, 0
    %2756 = vmatpush.bf16.msra.mxu0 0
    %2757 = vmatpush.bf16.msra.mxu0 0
    %2758 = vmatpush.bf16.msra.mxu0 0
    %2759 = vmatpush.bf16.msra.mxu0 0
    %2760 = vmatpush.bf16.msra.mxu0 0
    %2761 = vmatpush.bf16.msra.mxu0 0
    %2762 = vmatpush.bf16.msra.mxu0 %v2750
    %2763 = vmatpush.bf16.msra.mxu0 %v2749
    %2764 = vmatmul.bf16.gmra.mxu0 %v2754
    %v2765 = vpop.f32.mrf.mxu0
    %v2766 = vadd.f32 %v2705, %v2765
    %v2767 = vpop.f32.mrf.mxu0
    %2768 = vdwg.mxu0
    %v2769 = vadd.f32 %v552, %v2766
    %v2770 = vsel %vm298, %v2769, 0.0
    %2771 = vadd.xlane.f32.xlu0 %v2770
    %v2772 = vpop.xlane.xlu0 %2771
    %v2773 = vmul.f32 %v2772, %v329
    %v2774 = vsub.f32 %v2769, %v2773
    %v2775 = vmul.f32 %v2774, %v2774
    %v2776 = vsel %vm298, %v2775, 0.0
    %2777 = vadd.xlane.f32.xlu0 %v2776
    %v2778 = vpop.xlane.xlu0 %2777
    %v2779 = vmul.f32 %v2778, %v329
    %v2780 = vadd.f32 %v2779, 1e-12
    %v2781 = vrsqrt.pop %v2780
    %v2782 = vmul.f32 %v2781, %v2780
    %v2783 = vmul.f32 %v2782, %v2781
    %v2784 = vmul.f32 0.5, %v2783
    %v2785 = vsub.f32 1.5, %v2784
    %v2786 = vmul.f32 %v2781, %v2785
    %vm2787 = vweird.f32 %v2780
    %vm2788 = vweird.f32 %v2781
    %vm2789 = vmor %vm2787, %vm2788
    %v2790 = vsel %vm2789, %v2781, %v2786
    %v2791 = vmul.f32 %v2774, %v2790
    %v2792 = vperm.slane %v163, 5
    %v2793 = vmul.f32 %v2791, %v2792
    %v2794 = vperm.slane %v163, 6
    %v2795 = vadd.f32 %v2793, %v2794
    %v2796 = vpack.c.bf16 %v2795, %v2795
    %v2797 = vld [vmem:[#allocation7] sm:$0xf]
    %v2798 = vld [vmem:[#allocation7 + $0x4] sm:$0xf]
    %v2799 = vld [vmem:[#allocation7 + $0x8] sm:$0xf]
    %v2800 = vld [vmem:[#allocation7 + $0xc] sm:$0xf]
    %v2801 = vperm.slane %v163, 3
    %v2806 = vunpack.c.l.b16 %v2797
    %v2807 = vunpack.c.l.b16 %v2798
    %v2808 = vunpack.c.l.b16 %v2799
    %v2809 = vunpack.c.l.b16 %v2800
    %v2810 = vpack.c.b16 %v2807, %v2806
    %v2811 = vpack.c.b16 %v2809, %v2808
    %v2815 = vsel %vm298, %v2796, 0
    %2817 = vmatpush.bf16.msra.mxu0 0
    %2818 = vmatpush.bf16.msra.mxu0 0
    %2819 = vmatpush.bf16.msra.mxu0 0
    %2820 = vmatpush.bf16.msra.mxu0 0
    %2821 = vmatpush.bf16.msra.mxu0 0
    %2822 = vmatpush.bf16.msra.mxu0 0
    %2823 = vmatpush.bf16.msra.mxu0 %v2811
    %2824 = vmatpush.bf16.msra.mxu0 %v2810
    %2825 = vmatmul.bf16.gmra.mxu0 %v2815
    %v2826 = vpop.f32.mrf.mxu0
    %v2827 = vadd.f32 %v2801, %v2826
    %v2828 = vpop.f32.mrf.mxu0
    %2829 = vdwg.mxu0
    %v2830 = vmul.f32 %v2827, %v2827
    %v2831 = vmul.f32 %v2827, %v2830
    %v2832 = vmul.f32 %v2831, 0.044715
    %v2833 = vadd.f32 %v2827, %v2832
    %v2834 = vmul.f32 %v2833, 0.7978846
    %v2835 = vtanh.pop %v2834
    %v2836 = vadd.f32 %v2835, 1.0
    %v2837 = vmul.f32 %v2836, 0.5
    %v2838 = vmul.f32 %v2827, %v2837
    %v2839 = vpack.c.bf16 %v2838, %v2838
    %v2840 = vld [vmem:[%s11] sm:$0xf]
    %v2841 = vld [vmem:[%s11 + $0x4] sm:$0xf]
    %v2842 = vld [vmem:[%s11 + $0x8] sm:$0xf]
    %v2843 = vld [vmem:[%s11 + $0xc] sm:$0xf]
    %v2844 = vld [vmem:[%s11 + $0x10] sm:$0xf]
    %v2845 = vld [vmem:[%s11 + $0x14] sm:$0xf]
    %v2846 = vld [vmem:[%s11 + $0x18] sm:$0xf]
    %v2847 = vld [vmem:[%s11 + $0x1c] sm:$0xf]
    %v2848 = vld [vmem:[%s11 + $0x20] sm:$0xf]
    %v2849 = vld [vmem:[%s11 + $0x24] sm:$0xf]
    %v2850 = vld [vmem:[%s11 + $0x28] sm:$0xf]
    %v2851 = vld [vmem:[%s11 + $0x2c] sm:$0xf]
    %v2852 = vld [vmem:[%s11 + $0x30] sm:$0xf]
    %v2853 = vld [vmem:[%s11 + $0x34] sm:$0xf]
    %v2854 = vld [vmem:[%s11 + $0x38] sm:$0xf]
    %v2855 = vld [vmem:[%s11 + $0x3c] sm:$0xf]
    %v2856 = vperm.slane %v163, 4
    %v2873 = vunpack.c.l.b16 %v2840
    %v2874 = vunpack.c.l.b16 %v2841
    %v2875 = vunpack.c.l.b16 %v2842
    %v2876 = vunpack.c.l.b16 %v2843
    %v2877 = vunpack.c.l.b16 %v2844
    %v2878 = vunpack.c.l.b16 %v2845
    %v2879 = vunpack.c.l.b16 %v2846
    %v2880 = vunpack.c.l.b16 %v2847
    %v2881 = vunpack.c.l.b16 %v2848
    %v2882 = vunpack.c.l.b16 %v2849
    %v2883 = vunpack.c.l.b16 %v2850
    %v2884 = vunpack.c.l.b16 %v2851
    %v2885 = vunpack.c.l.b16 %v2852
    %v2886 = vunpack.c.l.b16 %v2853
    %v2887 = vunpack.c.l.b16 %v2854
    %v2888 = vunpack.c.l.b16 %v2855
    %v2889 = vpack.c.b16 %v2874, %v2873
    %v2890 = vpack.c.b16 %v2876, %v2875
    %v2891 = vpack.c.b16 %v2878, %v2877
    %v2892 = vpack.c.b16 %v2880, %v2879
    %v2893 = vpack.c.b16 %v2882, %v2881
    %v2894 = vpack.c.b16 %v2884, %v2883
    %v2895 = vpack.c.b16 %v2886, %v2885
    %v2896 = vpack.c.b16 %v2888, %v2887
    %2905 = vmatpush.bf16.msra.mxu0 %v2896
    %2906 = vmatpush.bf16.msra.mxu0 %v2895
    %2907 = vmatpush.bf16.msra.mxu0 %v2894
    %2908 = vmatpush.bf16.msra.mxu0 %v2893
    %2909 = vmatpush.bf16.msra.mxu0 %v2892
    %2910 = vmatpush.bf16.msra.mxu0 %v2891
    %2911 = vmatpush.bf16.msra.mxu0 %v2890
    %2912 = vmatpush.bf16.msra.mxu0 %v2889
    %2913 = vmatmul.bf16.gmra.mxu0 %v2839
    %v2914 = vpop.f32.mrf.mxu0
    %v2915 = vadd.f32 %v2856, %v2914
    %v2916 = vpop.f32.mrf.mxu0
    %2917 = vdwg.mxu0
    %v2918 = vadd.f32 %v2795, %v2915
    %v2919 = vsel %vm298, %v2918, 0.0
    %2920 = vadd.xlane.f32.xlu0 %v2919
    %v2921 = vpop.xlane.xlu0 %2920
    %v2922 = vmul.f32 %v2921, %v329
    %v2923 = vsub.f32 %v2918, %v2922
    %v2924 = vmul.f32 %v2923, %v2923
    %v2925 = vsel %vm298, %v2924, 0.0
    %2926 = vadd.xlane.f32.xlu0 %v2925
    %v2927 = vpop.xlane.xlu0 %2926
    %v2928 = vmul.f32 %v2927, %v329
    %v2929 = vadd.f32 %v2928, 1e-12
    %v2930 = vrsqrt.pop %v2929
    %v2931 = vmul.f32 %v2930, %v2929
    %v2932 = vmul.f32 %v2931, %v2930
    %v2933 = vmul.f32 0.5, %v2932
    %v2934 = vsub.f32 1.5, %v2933
    %v2935 = vmul.f32 %v2930, %v2934
    %vm2936 = vweird.f32 %v2929
    %vm2937 = vweird.f32 %v2930
    %vm2938 = vmor %vm2936, %vm2937
    %v2939 = vsel %vm2938, %v2930, %v2935
    %v2940 = vmul.f32 %v2923, %v2939
    %v2941 = vperm.slane %v163, 7
    %v2942 = vmul.f32 %v2940, %v2941
    %v2943 = vperm.slane %v164, 0
    %v2944 = vadd.f32 %v2942, %v2943
    %v2945 = vld [vmem:[%s2] sm:$0xff]
    %2946 = vset.pattern.permute.xlu0 0
    %2947 = vperm.xlu0 %2946, %v2945
    %v2948 = vpop.permute.xlu0 %2947
    %vm2949 = vcmp.eq.s32.totalorder %v183, %v2948
    %v2950 = vsel %vm2949, 1, 0
    %v2951 = vcvt.s32.f32 %v2950
    %v2952 = vld [vmem:[%s6] sm:$0xff]
    %v2953 = vld [vmem:[%s6 + $0x8] sm:$0xff]
    %v2955 = vsel %vm2675, %v2951, 0
    %2957 = vmatpush.msra.mxu0 0.0
    %2958 = vmatpush.msra.mxu0 0.0
    %2959 = vmatpush.msra.mxu0 0.0
    %2960 = vmatpush.msra.mxu0 0.0
    %2961 = vmatpush.msra.mxu0 0.0
    %2962 = vmatpush.msra.mxu0 0.0
    %2963 = vmatpush.msra.mxu0 0.0
    %2964 = vmatpush.msra.mxu0 0.0
    %2965 = vmatpush.msra.mxu0 0.0
    %2966 = vmatpush.msra.mxu0 0.0
    %2967 = vmatpush.msra.mxu0 0.0
    %2968 = vmatpush.msra.mxu0 0.0
    %2969 = vmatpush.msra.mxu0 0.0
    %2970 = vmatpush.msra.mxu0 0.0
    %2971 = vmatpush.msra.mxu0 %v2953
    %2972 = vmatpush.msra.mxu0 %v2952
    %2973 = vmatmul.f32.gmra.mxu0 %v2955
    %v2974 = vpop.f32.mrf.mxu0
    %v2975 = vadd.f32 0.0, %v2974
    %2976 = vdwg.mxu0
    %v2977 = vld [vmem:[#allocation12] sm:$0x77]
    %v2978 = vld [vmem:[#allocation12 + $0x8] sm:$0x77]
    %v2979 = vpack.c.bf16 %v2944, %v2944
    %v2980 = vld [vmem:[%s13] sm:$0xff]
    %v2981 = vld [vmem:[%s13 + $0x8] sm:$0xff]
    %v2982 = vld [vmem:[%s13 + $0x10] sm:$0xff]
    %v2983 = vld [vmem:[%s13 + $0x18] sm:$0xff]
    %v2984 = vld [vmem:[%s13 + $0x20] sm:$0xff]
    %v2985 = vld [vmem:[%s13 + $0x28] sm:$0xff]
    %v2986 = vld [vmem:[%s13 + $0x30] sm:$0xff]
    %v2987 = vld [vmem:[%s13 + $0x38] sm:$0xff]
    %v2988 = vpack.c.bf16 %v2975, %v2975
    %v2989 = vld [vmem:[%s14] sm:$0xff]
    %v2990 = vld [vmem:[%s14 + $0x8] sm:$0xff]
    %v2991 = vld [vmem:[%s14 + $0x10] sm:$0xff]
    %v2992 = vld [vmem:[%s14 + $0x18] sm:$0xff]
    %v2997 = vunpack.c.l.b16 %v2989
    %v2998 = vunpack.c.h.b16 %v2989
    %v2999 = vunpack.c.l.b16 %v2990
    %v3000 = vunpack.c.h.b16 %v2990
    %v3001 = vunpack.c.l.b16 %v2991
    %v3002 = vunpack.c.h.b16 %v2991
    %v3003 = vunpack.c.l.b16 %v2992
    %v3004 = vunpack.c.h.b16 %v2992
    %v3005 = vpack.c.b16 %v3001, %v2997
    %v3006 = vpack.c.b16 %v3002, %v2998
    %v3007 = vpack.c.b16 %v3003, %v2999
    %v3008 = vpack.c.b16 %v3004, %v3000
    %v3014 = vsel %vm2675, %v2988, 0
    %3016 = vmatpush.bf16.msra.mxu0 0
    %3017 = vmatpush.bf16.msra.mxu0 0
    %3018 = vmatpush.bf16.msra.mxu0 0
    %3019 = vmatpush.bf16.msra.mxu0 0
    %3020 = vmatpush.bf16.msra.mxu0 0
    %3021 = vmatpush.bf16.msra.mxu0 0
    %3022 = vmatpush.bf16.msra.mxu0 0
    %3023 = vmatpush.bf16.msra.mxu0 %v3005
    %3024 = vmatmul.bf16.gmra.mxu0 %v3014
    %v3025 = vpop.f32.mrf.mxu0
    %v3026 = vadd.f32 0.0, %v3025
    %v3027 = vpop.f32.mrf.mxu0
    %3028 = vdwg.mxu0
    %3029 = vmatpush.bf16.msra.mxu0 0
    %3030 = vmatpush.bf16.msra.mxu0 0
    %3031 = vmatpush.bf16.msra.mxu0 0
    %3032 = vmatpush.bf16.msra.mxu0 0
    %3033 = vmatpush.bf16.msra.mxu0 0
    %3034 = vmatpush.bf16.msra.mxu0 0
    %3035 = vmatpush.bf16.msra.mxu0 0
    %3036 = vmatpush.bf16.msra.mxu0 %v3006
    %3037 = vmatmul.bf16.gmra.mxu0 %v3014
    %v3038 = vpop.f32.mrf.mxu0
    %v3039 = vadd.f32 0.0, %v3038
    %v3040 = vpop.f32.mrf.mxu0
    %3041 = vdwg.mxu0
    %3042 = vmatpush.bf16.msra.mxu0 0
    %3043 = vmatpush.bf16.msra.mxu0 0
    %3044 = vmatpush.bf16.msra.mxu0 0
    %3045 = vmatpush.bf16.msra.mxu0 0
    %3046 = vmatpush.bf16.msra.mxu0 0
    %3047 = vmatpush.bf16.msra.mxu0 0
    %3048 = vmatpush.bf16.msra.mxu0 0
    %3049 = vmatpush.bf16.msra.mxu0 %v3007
    %3050 = vmatmul.bf16.gmra.mxu0 %v3014
    %v3051 = vpop.f32.mrf.mxu0
    %v3052 = vadd.f32 0.0, %v3051
    %v3053 = vpop.f32.mrf.mxu0
    %3054 = vdwg.mxu0
    %3055 = vmatpush.bf16.msra.mxu0 0
    %3056 = vmatpush.bf16.msra.mxu0 0
    %3057 = vmatpush.bf16.msra.mxu0 0
    %3058 = vmatpush.bf16.msra.mxu0 0
    %3059 = vmatpush.bf16.msra.mxu0 0
    %3060 = vmatpush.bf16.msra.mxu0 0
    %3061 = vmatpush.bf16.msra.mxu0 0
    %3062 = vmatpush.bf16.msra.mxu0 %v3008
    %3063 = vmatmul.bf16.gmra.mxu0 %v3014
    %v3064 = vpop.f32.mrf.mxu0
    %v3065 = vadd.f32 0.0, %v3064
    %v3066 = vpop.f32.mrf.mxu0
    %3067 = vdwg.mxu0
    %v3076 = vunpack.c.l.b16 %v2980
    %v3077 = vunpack.c.h.b16 %v2980
    %v3078 = vunpack.c.l.b16 %v2981
    %v3079 = vunpack.c.h.b16 %v2981
    %v3080 = vunpack.c.l.b16 %v2982
    %v3081 = vunpack.c.h.b16 %v2982
    %v3082 = vunpack.c.l.b16 %v2983
    %v3083 = vunpack.c.h.b16 %v2983
    %v3084 = vunpack.c.l.b16 %v2984
    %v3085 = vunpack.c.h.b16 %v2984
    %v3086 = vunpack.c.l.b16 %v2985
    %v3087 = vunpack.c.h.b16 %v2985
    %v3088 = vunpack.c.l.b16 %v2986
    %v3089 = vunpack.c.h.b16 %v2986
    %v3090 = vunpack.c.l.b16 %v2987
    %v3091 = vunpack.c.h.b16 %v2987
    %v3092 = vpack.c.b16 %v3080, %v3076
    %v3093 = vpack.c.b16 %v3081, %v3077
    %v3094 = vpack.c.b16 %v3082, %v3078
    %v3095 = vpack.c.b16 %v3083, %v3079
    %v3096 = vpack.c.b16 %v3088, %v3084
    %v3097 = vpack.c.b16 %v3089, %v3085
    %v3098 = vpack.c.b16 %v3090, %v3086
    %v3099 = vpack.c.b16 %v3091, %v3087
    %v3109 = vsel %vm298, %v2979, 0
    %3111 = vmatpush.bf16.msra.mxu0 0
    %3112 = vmatpush.bf16.msra.mxu0 0
    %3113 = vmatpush.bf16.msra.mxu0 0
    %3114 = vmatpush.bf16.msra.mxu0 0
    %3115 = vmatpush.bf16.msra.mxu0 0
    %3116 = vmatpush.bf16.msra.mxu0 0
    %3117 = vmatpush.bf16.msra.mxu0 %v3096
    %3118 = vmatpush.bf16.msra.mxu0 %v3092
    %3119 = vmatmul.bf16.gmra.mxu0 %v3109
    %v3120 = vpop.f32.mrf.mxu0
    %v3121 = vadd.f32 %v3026, %v3120
    %v3122 = vpop.f32.mrf.mxu0
    %3123 = vdwg.mxu0
    %3124 = vmatpush.bf16.msra.mxu0 0
    %3125 = vmatpush.bf16.msra.mxu0 0
    %3126 = vmatpush.bf16.msra.mxu0 0
    %3127 = vmatpush.bf16.msra.mxu0 0
    %3128 = vmatpush.bf16.msra.mxu0 0
    %3129 = vmatpush.bf16.msra.mxu0 0
    %3130 = vmatpush.bf16.msra.mxu0 %v3097
    %3131 = vmatpush.bf16.msra.mxu0 %v3093
    %3132 = vmatmul.bf16.gmra.mxu0 %v3109
    %v3133 = vpop.f32.mrf.mxu0
    %v3134 = vadd.f32 %v3039, %v3133
    %v3135 = vpop.f32.mrf.mxu0
    %3136 = vdwg.mxu0
    %3137 = vmatpush.bf16.msra.mxu0 0
    %3138 = vmatpush.bf16.msra.mxu0 0
    %3139 = vmatpush.bf16.msra.mxu0 0
    %3140 = vmatpush.bf16.msra.mxu0 0
    %3141 = vmatpush.bf16.msra.mxu0 0
    %3142 = vmatpush.bf16.msra.mxu0 0
    %3143 = vmatpush.bf16.msra.mxu0 %v3098
    %3144 = vmatpush.bf16.msra.mxu0 %v3094
    %3145 = vmatmul.bf16.gmra.mxu0 %v3109
    %v3146 = vpop.f32.mrf.mxu0
    %v3147 = vadd.f32 %v3052, %v3146
    %v3148 = vpop.f32.mrf.mxu0
    %3149 = vdwg.mxu0
    %3150 = vmatpush.bf16.msra.mxu0 0
    %3151 = vmatpush.bf16.msra.mxu0 0
    %3152 = vmatpush.bf16.msra.mxu0 0
    %3153 = vmatpush.bf16.msra.mxu0 0
    %3154 = vmatpush.bf16.msra.mxu0 0
    %3155 = vmatpush.bf16.msra.mxu0 0
    %3156 = vmatpush.bf16.msra.mxu0 %v3099
    %3157 = vmatpush.bf16.msra.mxu0 %v3095
    %3158 = vmatmul.bf16.gmra.mxu0 %v3109
    %v3159 = vpop.f32.mrf.mxu0
    %v3160 = vadd.f32 %v3065, %v3159
    %v3161 = vpop.f32.mrf.mxu0
    %3162 = vdwg.mxu0
    %v3165 = vperm.slane %v2977, 0
    %v3166 = vperm.slane %v2977, 4
    %v3167 = vperm.slane %v2978, 0
    %v3168 = vperm.slane %v2978, 4
    %v3173 = vperm.slane %v3165, 0
    %v3174 = vperm.slane %v3166, 0
    %v3175 = vperm.slane %v3167, 0
    %v3176 = vperm.slane %v3168, 0
    %v3177 = vadd.f32 %v3121, %v3173
    %v3178 = vadd.f32 %v3134, %v3174
    %v3179 = vadd.f32 %v3147, %v3175
    %v3180 = vadd.f32 %v3160, %v3176
    %v3181 = vmax.f32 %v3177, 0.0
    %v3182 = vmax.f32 %v3178, 0.0
    %v3183 = vmax.f32 %v3179, 0.0
    %v3184 = vmax.f32 %v3180, 0.0
    %v3185 = vpack.c.bf16 %v3181, %v3181
    %v3186 = vpack.c.bf16 %v3182, %v3182
    %v3187 = vpack.c.bf16 %v3183, %v3183
    %v3188 = vpack.c.bf16 %v3184, %v3184
    %v3189 = vld [vmem:[#allocation10] sm:$0xff]
    %v3190 = vld [vmem:[#allocation10 + $0x8] sm:$0xff]
    %v3191 = vld [vmem:[#allocation10 + $0x10] sm:$0xff]
    %v3192 = vld [vmem:[#allocation10 + $0x18] sm:$0xff]
    %v3193 = vld [vmem:[#allocation10 + $0x20] sm:$0xff]
    %v3194 = vld [vmem:[#allocation10 + $0x28] sm:$0xff]
    %v3195 = vld [vmem:[#allocation10 + $0x30] sm:$0xff]
    %v3196 = vld [vmem:[#allocation10 + $0x38] sm:$0xff]
    %v3197 = vld [vmem:[#allocation10 + $0x40] sm:$0xff]
    %v3198 = vld [vmem:[#allocation10 + $0x48] sm:$0xff]
    %v3199 = vld [vmem:[#allocation10 + $0x50] sm:$0xff]
    %v3200 = vld [vmem:[#allocation10 + $0x58] sm:$0xff]
    %v3201 = vld [vmem:[#allocation10 + $0x60] sm:$0xff]
    %v3202 = vld [vmem:[#allocation10 + $0x68] sm:$0xff]
    %v3203 = vld [vmem:[#allocation10 + $0x70] sm:$0xff]
    %v3204 = vld [vmem:[#allocation10 + $0x78] sm:$0xff]
    %v3205 = vld [vmem:[#allocation10 + $0x80] sm:$0xff]
    %v3206 = vld [vmem:[#allocation10 + $0x88] sm:$0xff]
    %v3207 = vld [vmem:[#allocation10 + $0x90] sm:$0xff]
    %v3208 = vld [vmem:[#allocation10 + $0x98] sm:$0xff]
    %v3209 = vld [vmem:[#allocation10 + $0xa0] sm:$0xff]
    %v3210 = vld [vmem:[#allocation10 + $0xa8] sm:$0xff]
    %v3211 = vld [vmem:[#allocation10 + $0xb0] sm:$0xff]
    %v3212 = vld [vmem:[#allocation10 + $0xb8] sm:$0xff]
    %v3213 = vld [vmem:[#allocation10 + $0xc0] sm:$0xff]
    %v3214 = vld [vmem:[#allocation10 + $0xc8] sm:$0xff]
    %v3215 = vld [vmem:[#allocation10 + $0xd0] sm:$0xff]
    %v3216 = vld [vmem:[#allocation10 + $0xd8] sm:$0xff]
    %v3217 = vld [vmem:[#allocation10 + $0xe0] sm:$0xff]
    %v3218 = vld [vmem:[#allocation10 + $0xe8] sm:$0xff]
    %v3219 = vld [vmem:[#allocation10 + $0xf0] sm:$0xff]
    %v3220 = vld [vmem:[#allocation10 + $0xf8] sm:$0xff]
    %v3221 = vld [vmem:[#allocation10 + $0x100] sm:$0xff]
    %v3222 = vld [vmem:[#allocation10 + $0x108] sm:$0xff]
    %v3223 = vld [vmem:[#allocation10 + $0x110] sm:$0xff]
    %v3224 = vld [vmem:[#allocation10 + $0x118] sm:$0xff]
    %v3225 = vld [vmem:[#allocation10 + $0x120] sm:$0xff]
    %v3226 = vld [vmem:[#allocation10 + $0x128] sm:$0xff]
    %v3227 = vld [vmem:[#allocation10 + $0x130] sm:$0xff]
    %v3228 = vld [vmem:[#allocation10 + $0x138] sm:$0xff]
    %v3229 = vld [vmem:[#allocation10 + $0x140] sm:$0xff]
    %v3230 = vld [vmem:[#allocation10 + $0x148] sm:$0xff]
    %v3231 = vld [vmem:[#allocation10 + $0x150] sm:$0xff]
    %v3232 = vld [vmem:[#allocation10 + $0x158] sm:$0xff]
    %v3233 = vld [vmem:[#allocation10 + $0x160] sm:$0xff]
    %v3234 = vld [vmem:[#allocation10 + $0x168] sm:$0xff]
    %v3235 = vld [vmem:[#allocation10 + $0x170] sm:$0xff]
    %v3236 = vld [vmem:[#allocation10 + $0x178] sm:$0xff]
    %v3237 = vld [vmem:[#allocation10 + $0x180] sm:$0xff]
    %v3238 = vld [vmem:[#allocation10 + $0x188] sm:$0xff]
    %v3239 = vld [vmem:[#allocation10 + $0x190] sm:$0xff]
    %v3240 = vld [vmem:[#allocation10 + $0x198] sm:$0xff]
    %v3241 = vld [vmem:[#allocation10 + $0x1a0] sm:$0xff]
    %v3242 = vld [vmem:[#allocation10 + $0x1a8] sm:$0xff]
    %v3243 = vld [vmem:[#allocation10 + $0x1b0] sm:$0xff]
    %v3244 = vld [vmem:[#allocation10 + $0x1b8] sm:$0xff]
    %v3245 = vld [vmem:[#allocation10 + $0x1c0] sm:$0xff]
    %v3246 = vld [vmem:[#allocation10 + $0x1c8] sm:$0xff]
    %v3247 = vld [vmem:[#allocation10 + $0x1d0] sm:$0xff]
    %v3248 = vld [vmem:[#allocation10 + $0x1d8] sm:$0xff]
    %v3249 = vld [vmem:[#allocation10 + $0x1e0] sm:$0xff]
    %v3250 = vld [vmem:[#allocation10 + $0x1e8] sm:$0xff]
    %v3251 = vld [vmem:[#allocation10 + $0x1f0] sm:$0xff]
    %v3252 = vld [vmem:[#allocation10 + $0x1f8] sm:$0xff]
    %v3253 = vperm.slane %v2977, 1
    %v3254 = vperm.slane %v2977, 5
    %v3257 = vperm.slane %v3253, 1
    %v3258 = vperm.slane %v3254, 1
    %v3323 = vunpack.c.l.b16 %v3189
    %v3324 = vunpack.c.h.b16 %v3189
    %v3325 = vunpack.c.l.b16 %v3190
    %v3326 = vunpack.c.h.b16 %v3190
    %v3327 = vunpack.c.l.b16 %v3191
    %v3328 = vunpack.c.h.b16 %v3191
    %v3329 = vunpack.c.l.b16 %v3192
    %v3330 = vunpack.c.h.b16 %v3192
    %v3331 = vunpack.c.l.b16 %v3193
    %v3332 = vunpack.c.h.b16 %v3193
    %v3333 = vunpack.c.l.b16 %v3194
    %v3334 = vunpack.c.h.b16 %v3194
    %v3335 = vunpack.c.l.b16 %v3195
    %v3336 = vunpack.c.h.b16 %v3195
    %v3337 = vunpack.c.l.b16 %v3196
    %v3338 = vunpack.c.h.b16 %v3196
    %v3339 = vunpack.c.l.b16 %v3197
    %v3340 = vunpack.c.h.b16 %v3197
    %v3341 = vunpack.c.l.b16 %v3198
    %v3342 = vunpack.c.h.b16 %v3198
    %v3343 = vunpack.c.l.b16 %v3199
    %v3344 = vunpack.c.h.b16 %v3199
    %v3345 = vunpack.c.l.b16 %v3200
    %v3346 = vunpack.c.h.b16 %v3200
    %v3347 = vunpack.c.l.b16 %v3201
    %v3348 = vunpack.c.h.b16 %v3201
    %v3349 = vunpack.c.l.b16 %v3202
    %v3350 = vunpack.c.h.b16 %v3202
    %v3351 = vunpack.c.l.b16 %v3203
    %v3352 = vunpack.c.h.b16 %v3203
    %v3353 = vunpack.c.l.b16 %v3204
    %v3354 = vunpack.c.h.b16 %v3204
    %v3355 = vunpack.c.l.b16 %v3205
    %v3356 = vunpack.c.h.b16 %v3205
    %v3357 = vunpack.c.l.b16 %v3206
    %v3358 = vunpack.c.h.b16 %v3206
    %v3359 = vunpack.c.l.b16 %v3207
    %v3360 = vunpack.c.h.b16 %v3207
    %v3361 = vunpack.c.l.b16 %v3208
    %v3362 = vunpack.c.h.b16 %v3208
    %v3363 = vunpack.c.l.b16 %v3209
    %v3364 = vunpack.c.h.b16 %v3209
    %v3365 = vunpack.c.l.b16 %v3210
    %v3366 = vunpack.c.h.b16 %v3210
    %v3367 = vunpack.c.l.b16 %v3211
    %v3368 = vunpack.c.h.b16 %v3211
    %v3369 = vunpack.c.l.b16 %v3212
    %v3370 = vunpack.c.h.b16 %v3212
    %v3371 = vunpack.c.l.b16 %v3213
    %v3372 = vunpack.c.h.b16 %v3213
    %v3373 = vunpack.c.l.b16 %v3214
    %v3374 = vunpack.c.h.b16 %v3214
    %v3375 = vunpack.c.l.b16 %v3215
    %v3376 = vunpack.c.h.b16 %v3215
    %v3377 = vunpack.c.l.b16 %v3216
    %v3378 = vunpack.c.h.b16 %v3216
    %v3379 = vunpack.c.l.b16 %v3217
    %v3380 = vunpack.c.h.b16 %v3217
    %v3381 = vunpack.c.l.b16 %v3218
    %v3382 = vunpack.c.h.b16 %v3218
    %v3383 = vunpack.c.l.b16 %v3219
    %v3384 = vunpack.c.h.b16 %v3219
    %v3385 = vunpack.c.l.b16 %v3220
    %v3386 = vunpack.c.h.b16 %v3220
    %v3387 = vunpack.c.l.b16 %v3221
    %v3388 = vunpack.c.h.b16 %v3221
    %v3389 = vunpack.c.l.b16 %v3222
    %v3390 = vunpack.c.h.b16 %v3222
    %v3391 = vunpack.c.l.b16 %v3223
    %v3392 = vunpack.c.h.b16 %v3223
    %v3393 = vunpack.c.l.b16 %v3224
    %v3394 = vunpack.c.h.b16 %v3224
    %v3395 = vunpack.c.l.b16 %v3225
    %v3396 = vunpack.c.h.b16 %v3225
    %v3397 = vunpack.c.l.b16 %v3226
    %v3398 = vunpack.c.h.b16 %v3226
    %v3399 = vunpack.c.l.b16 %v3227
    %v3400 = vunpack.c.h.b16 %v3227
    %v3401 = vunpack.c.l.b16 %v3228
    %v3402 = vunpack.c.h.b16 %v3228
    %v3403 = vunpack.c.l.b16 %v3229
    %v3404 = vunpack.c.h.b16 %v3229
    %v3405 = vunpack.c.l.b16 %v3230
    %v3406 = vunpack.c.h.b16 %v3230
    %v3407 = vunpack.c.l.b16 %v3231
    %v3408 = vunpack.c.h.b16 %v3231
    %v3409 = vunpack.c.l.b16 %v3232
    %v3410 = vunpack.c.h.b16 %v3232
    %v3411 = vunpack.c.l.b16 %v3233
    %v3412 = vunpack.c.h.b16 %v3233
    %v3413 = vunpack.c.l.b16 %v3234
    %v3414 = vunpack.c.h.b16 %v3234
    %v3415 = vunpack.c.l.b16 %v3235
    %v3416 = vunpack.c.h.b16 %v3235
    %v3417 = vunpack.c.l.b16 %v3236
    %v3418 = vunpack.c.h.b16 %v3236
    %v3419 = vunpack.c.l.b16 %v3237
    %v3420 = vunpack.c.h.b16 %v3237
    %v3421 = vunpack.c.l.b16 %v3238
    %v3422 = vunpack.c.h.b16 %v3238
    %v3423 = vunpack.c.l.b16 %v3239
    %v3424 = vunpack.c.h.b16 %v3239
    %v3425 = vunpack.c.l.b16 %v3240
    %v3426 = vunpack.c.h.b16 %v3240
    %v3427 = vunpack.c.l.b16 %v3241
    %v3428 = vunpack.c.h.b16 %v3241
    %v3429 = vunpack.c.l.b16 %v3242
    %v3430 = vunpack.c.h.b16 %v3242
    %v3431 = vunpack.c.l.b16 %v3243
    %v3432 = vunpack.c.h.b16 %v3243
    %v3433 = vunpack.c.l.b16 %v3244
    %v3434 = vunpack.c.h.b16 %v3244
    %v3435 = vunpack.c.l.b16 %v3245
    %v3436 = vunpack.c.h.b16 %v3245
    %v3437 = vunpack.c.l.b16 %v3246
    %v3438 = vunpack.c.h.b16 %v3246
    %v3439 = vunpack.c.l.b16 %v3247
    %v3440 = vunpack.c.h.b16 %v3247
    %v3441 = vunpack.c.l.b16 %v3248
    %v3442 = vunpack.c.h.b16 %v3248
    %v3443 = vunpack.c.l.b16 %v3249
    %v3444 = vunpack.c.h.b16 %v3249
    %v3445 = vunpack.c.l.b16 %v3250
    %v3446 = vunpack.c.h.b16 %v3250
    %v3447 = vunpack.c.l.b16 %v3251
    %v3448 = vunpack.c.h.b16 %v3251
    %v3449 = vunpack.c.l.b16 %v3252
    %v3450 = vunpack.c.h.b16 %v3252
    %v3451 = vpack.c.b16 %v3325, %v3323
    %v3452 = vpack.c.b16 %v3326, %v3324
    %v3453 = vpack.c.b16 %v3329, %v3327
    %v3454 = vpack.c.b16 %v3330, %v3328
    %v3455 = vpack.c.b16 %v3333, %v3331
    %v3456 = vpack.c.b16 %v3334, %v3332
    %v3457 = vpack.c.b16 %v3337, %v3335
    %v3458 = vpack.c.b16 %v3338, %v3336
    %v3459 = vpack.c.b16 %v3341, %v3339
    %v3460 = vpack.c.b16 %v3342, %v3340
    %v3461 = vpack.c.b16 %v3345, %v3343
    %v3462 = vpack.c.b16 %v3346, %v3344
    %v3463 = vpack.c.b16 %v3349, %v3347
    %v3464 = vpack.c.b16 %v3350, %v3348
    %v3465 = vpack.c.b16 %v3353, %v3351
    %v3466 = vpack.c.b16 %v3354, %v3352
    %v3467 = vpack.c.b16 %v3357, %v3355
    %v3468 = vpack.c.b16 %v3358, %v3356
    %v3469 = vpack.c.b16 %v3361, %v3359
    %v3470 = vpack.c.b16 %v3362, %v3360
    %v3471 = vpack.c.b16 %v3365, %v3363
    %v3472 = vpack.c.b16 %v3366, %v3364
    %v3473 = vpack.c.b16 %v3369, %v3367
    %v3474 = vpack.c.b16 %v3370, %v3368
    %v3475 = vpack.c.b16 %v3373, %v3371
    %v3476 = vpack.c.b16 %v3374, %v3372
    %v3477 = vpack.c.b16 %v3377, %v3375
    %v3478 = vpack.c.b16 %v3378, %v3376
    %v3479 = vpack.c.b16 %v3381, %v3379
    %v3480 = vpack.c.b16 %v3382, %v3380
    %v3481 = vpack.c.b16 %v3385, %v3383
    %v3482 = vpack.c.b16 %v3386, %v3384
    %v3483 = vpack.c.b16 %v3389, %v3387
    %v3484 = vpack.c.b16 %v3390, %v3388
    %v3485 = vpack.c.b16 %v3393, %v3391
    %v3486 = vpack.c.b16 %v3394, %v3392
    %v3487 = vpack.c.b16 %v3397, %v3395
    %v3488 = vpack.c.b16 %v3398, %v3396
    %v3489 = vpack.c.b16 %v3401, %v3399
    %v3490 = vpack.c.b16 %v3402, %v3400
    %v3491 = vpack.c.b16 %v3405, %v3403
    %v3492 = vpack.c.b16 %v3406, %v3404
    %v3493 = vpack.c.b16 %v3409, %v3407
    %v3494 = vpack.c.b16 %v3410, %v3408
    %v3495 = vpack.c.b16 %v3413, %v3411
    %v3496 = vpack.c.b16 %v3414, %v3412
    %v3497 = vpack.c.b16 %v3417, %v3415
    %v3498 = vpack.c.b16 %v3418, %v3416
    %v3499 = vpack.c.b16 %v3421, %v3419
    %v3500 = vpack.c.b16 %v3422, %v3420
    %v3501 = vpack.c.b16 %v3425, %v3423
    %v3502 = vpack.c.b16 %v3426, %v3424
    %v3503 = vpack.c.b16 %v3429, %v3427
    %v3504 = vpack.c.b16 %v3430, %v3428
    %v3505 = vpack.c.b16 %v3433, %v3431
    %v3506 = vpack.c.b16 %v3434, %v3432
    %v3507 = vpack.c.b16 %v3437, %v3435
    %v3508 = vpack.c.b16 %v3438, %v3436
    %v3509 = vpack.c.b16 %v3441, %v3439
    %v3510 = vpack.c.b16 %v3442, %v3440
    %v3511 = vpack.c.b16 %v3445, %v3443
    %v3512 = vpack.c.b16 %v3446, %v3444
    %v3513 = vpack.c.b16 %v3449, %v3447
    %v3514 = vpack.c.b16 %v3450, %v3448
    %3579 = vmatpush.bf16.msra.mxu0 %v3465
    %3580 = vmatpush.bf16.msra.mxu0 %v3463
    %3581 = vmatpush.bf16.msra.mxu0 %v3461
    %3582 = vmatpush.bf16.msra.mxu0 %v3459
    %3583 = vmatpush.bf16.msra.mxu0 %v3457
    %3584 = vmatpush.bf16.msra.mxu0 %v3455
    %3585 = vmatpush.bf16.msra.mxu0 %v3453
    %3586 = vmatpush.bf16.msra.mxu0 %v3451
    %3587 = vmatmul.bf16.gmra.mxu0 %v3185
    %v3588 = vpop.f32.mrf.mxu0
    %v3589 = vadd.f32 %v3257, %v3588
    %v3590 = vpop.f32.mrf.mxu0
    %3591 = vdwg.mxu0
    %3592 = vmatpush.bf16.msra.mxu0 %v3481
    %3593 = vmatpush.bf16.msra.mxu0 %v3479
    %3594 = vmatpush.bf16.msra.mxu0 %v3477
    %3595 = vmatpush.bf16.msra.mxu0 %v3475
    %3596 = vmatpush.bf16.msra.mxu0 %v3473
    %3597 = vmatpush.bf16.msra.mxu0 %v3471
    %3598 = vmatpush.bf16.msra.mxu0 %v3469
    %3599 = vmatpush.bf16.msra.mxu0 %v3467
    %3600 = vmatmul.bf16.gmra.mxu0 %v3186
    %v3601 = vpop.f32.mrf.mxu0
    %v3602 = vadd.f32 %v3589, %v3601
    %v3603 = vpop.f32.mrf.mxu0
    %3604 = vdwg.mxu0
    %3605 = vmatpush.bf16.msra.mxu0 %v3497
    %3606 = vmatpush.bf16.msra.mxu0 %v3495
    %3607 = vmatpush.bf16.msra.mxu0 %v3493
    %3608 = vmatpush.bf16.msra.mxu0 %v3491
    %3609 = vmatpush.bf16.msra.mxu0 %v3489
    %3610 = vmatpush.bf16.msra.mxu0 %v3487
    %3611 = vmatpush.bf16.msra.mxu0 %v3485
    %3612 = vmatpush.bf16.msra.mxu0 %v3483
    %3613 = vmatmul.bf16.gmra.mxu0 %v3187
    %v3614 = vpop.f32.mrf.mxu0
    %v3615 = vadd.f32 %v3602, %v3614
    %v3616 = vpop.f32.mrf.mxu0
    %3617 = vdwg.mxu0
    %3618 = vmatpush.bf16.msra.mxu0 %v3513
    %3619 = vmatpush.bf16.msra.mxu0 %v3511
    %3620 = vmatpush.bf16.msra.mxu0 %v3509
    %3621 = vmatpush.bf16.msra.mxu0 %v3507
    %3622 = vmatpush.bf16.msra.mxu0 %v3505
    %3623 = vmatpush.bf16.msra.mxu0 %v3503
    %3624 = vmatpush.bf16.msra.mxu0 %v3501
    %3625 = vmatpush.bf16.msra.mxu0 %v3499
    %3626 = vmatmul.bf16.gmra.mxu0 %v3188
    %v3627 = vpop.f32.mrf.mxu0
    %v3628 = vadd.f32 %v3615, %v3627
    %v3629 = vpop.f32.mrf.mxu0
    %3630 = vdwg.mxu0
    %3631 = vmatpush.bf16.msra.mxu0 %v3466
    %3632 = vmatpush.bf16.msra.mxu0 %v3464
    %3633 = vmatpush.bf16.msra.mxu0 %v3462
    %3634 = vmatpush.bf16.msra.mxu0 %v3460
    %3635 = vmatpush.bf16.msra.mxu0 %v3458
    %3636 = vmatpush.bf16.msra.mxu0 %v3456
    %3637 = vmatpush.bf16.msra.mxu0 %v3454
    %3638 = vmatpush.bf16.msra.mxu0 %v3452
    %3639 = vmatmul.bf16.gmra.mxu0 %v3185
    %v3640 = vpop.f32.mrf.mxu0
    %v3641 = vadd.f32 %v3258, %v3640
    %v3642 = vpop.f32.mrf.mxu0
    %3643 = vdwg.mxu0
    %3644 = vmatpush.bf16.msra.mxu0 %v3482
    %3645 = vmatpush.bf16.msra.mxu0 %v3480
    %3646 = vmatpush.bf16.msra.mxu0 %v3478
    %3647 = vmatpush.bf16.msra.mxu0 %v3476
    %3648 = vmatpush.bf16.msra.mxu0 %v3474
    %3649 = vmatpush.bf16.msra.mxu0 %v3472
    %3650 = vmatpush.bf16.msra.mxu0 %v3470
    %3651 = vmatpush.bf16.msra.mxu0 %v3468
    %3652 = vmatmul.bf16.gmra.mxu0 %v3186
    %v3653 = vpop.f32.mrf.mxu0
    %v3654 = vadd.f32 %v3641, %v3653
    %v3655 = vpop.f32.mrf.mxu0
    %3656 = vdwg.mxu0
    %3657 = vmatpush.bf16.msra.mxu0 %v3498
    %3658 = vmatpush.bf16.msra.mxu0 %v3496
    %3659 = vmatpush.bf16.msra.mxu0 %v3494
    %3660 = vmatpush.bf16.msra.mxu0 %v3492
    %3661 = vmatpush.bf16.msra.mxu0 %v3490
    %3662 = vmatpush.bf16.msra.mxu0 %v3488
    %3663 = vmatpush.bf16.msra.mxu0 %v3486
    %3664 = vmatpush.bf16.msra.mxu0 %v3484
    %3665 = vmatmul.bf16.gmra.mxu0 %v3187
    %v3666 = vpop.f32.mrf.mxu0
    %v3667 = vadd.f32 %v3654, %v3666
    %v3668 = vpop.f32.mrf.mxu0
    %3669 = vdwg.mxu0
    %3670 = vmatpush.bf16.msra.mxu0 %v3514
    %3671 = vmatpush.bf16.msra.mxu0 %v3512
    %3672 = vmatpush.bf16.msra.mxu0 %v3510
    %3673 = vmatpush.bf16.msra.mxu0 %v3508
    %3674 = vmatpush.bf16.msra.mxu0 %v3506
    %3675 = vmatpush.bf16.msra.mxu0 %v3504
    %3676 = vmatpush.bf16.msra.mxu0 %v3502
    %3677 = vmatpush.bf16.msra.mxu0 %v3500
    %3678 = vmatmul.bf16.gmra.mxu0 %v3188
    %v3679 = vpop.f32.mrf.mxu0
    %v3680 = vadd.f32 %v3667, %v3679
    %v3681 = vpop.f32.mrf.mxu0
    %3682 = vdwg.mxu0
    %v3683 = vmax.f32 %v3628, 0.0
    %v3684 = vmax.f32 %v3680, 0.0
    %v3685 = vpack.c.bf16 %v3683, %v3683
    %v3686 = vpack.c.bf16 %v3684, %v3684
    %v3687 = vld [vmem:[%s16] sm:$0xf]
    %v3688 = vld [vmem:[%s16 + $0x4] sm:$0xf]
    %v3689 = vld [vmem:[%s16 + $0x8] sm:$0xf]
    %v3690 = vld [vmem:[%s16 + $0xc] sm:$0xf]
    %v3691 = vld [vmem:[%s16 + $0x10] sm:$0xf]
    %v3692 = vld [vmem:[%s16 + $0x14] sm:$0xf]
    %v3693 = vld [vmem:[%s16 + $0x18] sm:$0xf]
    %v3694 = vld [vmem:[%s16 + $0x1c] sm:$0xf]
    %v3695 = vld [vmem:[%s16 + $0x20] sm:$0xf]
    %v3696 = vld [vmem:[%s16 + $0x24] sm:$0xf]
    %v3697 = vld [vmem:[%s16 + $0x28] sm:$0xf]
    %v3698 = vld [vmem:[%s16 + $0x2c] sm:$0xf]
    %v3699 = vld [vmem:[%s16 + $0x30] sm:$0xf]
    %v3700 = vld [vmem:[%s16 + $0x34] sm:$0xf]
    %v3701 = vld [vmem:[%s16 + $0x38] sm:$0xf]
    %v3702 = vld [vmem:[%s16 + $0x3c] sm:$0xf]
    %v3703 = vld [vmem:[%s16 + $0x40] sm:$0xf]
    %v3704 = vld [vmem:[%s16 + $0x44] sm:$0xf]
    %v3705 = vld [vmem:[%s16 + $0x48] sm:$0xf]
    %v3706 = vld [vmem:[%s16 + $0x4c] sm:$0xf]
    %v3707 = vld [vmem:[%s16 + $0x50] sm:$0xf]
    %v3708 = vld [vmem:[%s16 + $0x54] sm:$0xf]
    %v3709 = vld [vmem:[%s16 + $0x58] sm:$0xf]
    %v3710 = vld [vmem:[%s16 + $0x5c] sm:$0xf]
    %v3711 = vld [vmem:[%s16 + $0x60] sm:$0xf]
    %v3712 = vld [vmem:[%s16 + $0x64] sm:$0xf]
    %v3713 = vld [vmem:[%s16 + $0x68] sm:$0xf]
    %v3714 = vld [vmem:[%s16 + $0x6c] sm:$0xf]
    %v3715 = vld [vmem:[%s16 + $0x70] sm:$0xf]
    %v3716 = vld [vmem:[%s16 + $0x74] sm:$0xf]
    %v3717 = vld [vmem:[%s16 + $0x78] sm:$0xf]
    %v3718 = vld [vmem:[%s16 + $0x7c] sm:$0xf]
    %v3719 = vperm.slane %v2977, 2
    %v3752 = vunpack.c.l.b16 %v3687
    %v3753 = vunpack.c.l.b16 %v3688
    %v3754 = vunpack.c.l.b16 %v3689
    %v3755 = vunpack.c.l.b16 %v3690
    %v3756 = vunpack.c.l.b16 %v3691
    %v3757 = vunpack.c.l.b16 %v3692
    %v3758 = vunpack.c.l.b16 %v3693
    %v3759 = vunpack.c.l.b16 %v3694
    %v3760 = vunpack.c.l.b16 %v3695
    %v3761 = vunpack.c.l.b16 %v3696
    %v3762 = vunpack.c.l.b16 %v3697
    %v3763 = vunpack.c.l.b16 %v3698
    %v3764 = vunpack.c.l.b16 %v3699
    %v3765 = vunpack.c.l.b16 %v3700
    %v3766 = vunpack.c.l.b16 %v3701
    %v3767 = vunpack.c.l.b16 %v3702
    %v3768 = vunpack.c.l.b16 %v3703
    %v3769 = vunpack.c.l.b16 %v3704
    %v3770 = vunpack.c.l.b16 %v3705
    %v3771 = vunpack.c.l.b16 %v3706
    %v3772 = vunpack.c.l.b16 %v3707
    %v3773 = vunpack.c.l.b16 %v3708
    %v3774 = vunpack.c.l.b16 %v3709
    %v3775 = vunpack.c.l.b16 %v3710
    %v3776 = vunpack.c.l.b16 %v3711
    %v3777 = vunpack.c.l.b16 %v3712
    %v3778 = vunpack.c.l.b16 %v3713
    %v3779 = vunpack.c.l.b16 %v3714
    %v3780 = vunpack.c.l.b16 %v3715
    %v3781 = vunpack.c.l.b16 %v3716
    %v3782 = vunpack.c.l.b16 %v3717
    %v3783 = vunpack.c.l.b16 %v3718
    %v3784 = vpack.c.b16 %v3753, %v3752
    %v3785 = vpack.c.b16 %v3755, %v3754
    %v3786 = vpack.c.b16 %v3757, %v3756
    %v3787 = vpack.c.b16 %v3759, %v3758
    %v3788 = vpack.c.b16 %v3761, %v3760
    %v3789 = vpack.c.b16 %v3763, %v3762
    %v3790 = vpack.c.b16 %v3765, %v3764
    %v3791 = vpack.c.b16 %v3767, %v3766
    %v3792 = vpack.c.b16 %v3769, %v3768
    %v3793 = vpack.c.b16 %v3771, %v3770
    %v3794 = vpack.c.b16 %v3773, %v3772
    %v3795 = vpack.c.b16 %v3775, %v3774
    %v3796 = vpack.c.b16 %v3777, %v3776
    %v3797 = vpack.c.b16 %v3779, %v3778
    %v3798 = vpack.c.b16 %v3781, %v3780
    %v3799 = vpack.c.b16 %v3783, %v3782
    %3816 = vmatpush.bf16.msra.mxu0 %v3791
    %3817 = vmatpush.bf16.msra.mxu0 %v3790
    %3818 = vmatpush.bf16.msra.mxu0 %v3789
    %3819 = vmatpush.bf16.msra.mxu0 %v3788
    %3820 = vmatpush.bf16.msra.mxu0 %v3787
    %3821 = vmatpush.bf16.msra.mxu0 %v3786
    %3822 = vmatpush.bf16.msra.mxu0 %v3785
    %3823 = vmatpush.bf16.msra.mxu0 %v3784
    %3824 = vmatmul.bf16.gmra.mxu0 %v3685
    %v3825 = vpop.f32.mrf.mxu0
    %v3826 = vadd.f32 %v3719, %v3825
    %v3827 = vpop.f32.mrf.mxu0
    %3828 = vdwg.mxu0
    %3829 = vmatpush.bf16.msra.mxu0 %v3799
    %3830 = vmatpush.bf16.msra.mxu0 %v3798
    %3831 = vmatpush.bf16.msra.mxu0 %v3797
    %3832 = vmatpush.bf16.msra.mxu0 %v3796
    %3833 = vmatpush.bf16.msra.mxu0 %v3795
    %3834 = vmatpush.bf16.msra.mxu0 %v3794
    %3835 = vmatpush.bf16.msra.mxu0 %v3793
    %3836 = vmatpush.bf16.msra.mxu0 %v3792
    %3837 = vmatmul.bf16.gmra.mxu0 %v3686
    %v3838 = vpop.f32.mrf.mxu0
    %v3839 = vadd.f32 %v3826, %v3838
    %v3840 = vpop.f32.mrf.mxu0
    %3841 = vdwg.mxu0
    %3842 = vst [vmem:[%s18] sm:$0xff] %v3839
    // Predicated region
    $region102: #{transformer_entity_regressor.1} parent=1 // pred_check
      _
    $region103: #{transformer_entity_regressor.1} parent=1 // pred_check_branch
      %3844 = sbr.rel (0) target = $region105
    $region104: #{transformer_entity_regressor.1} parent=1 // pred_region
      _
    $region105: #{transformer_entity_regressor.1} parent=1 // pred_fallthru
      _
    // Predicated region
    $region106: #{transformer_entity_regressor.1} parent=1 // pred_check
      _
    $region107: #{transformer_entity_regressor.1} parent=1 // pred_check_branch
      %3846 = sbr.rel (0) target = $region109
    $region108: #{transformer_entity_regressor.1} parent=1 // pred_region
      _
    $region109: #{transformer_entity_regressor.1} parent=1 // pred_fallthru
      _
    %3847 = vsyncpa [#allocation3], 1
    %3848 = vsyncpa [#allocation5], 1
    %3849 = vsyncpa [#allocation8], 1
    %3850 = vsyncpa [#allocation11], 1

</llo_original>
